<compile_context>
chip_gen: v6e
topology: v6e:2x2x1
jax: 0.10.0
libtpu: 0.0.40
codegen_flags: <defaults>
</compile_context>

<pallas_src>
import numpy as np
import jax
import jax.numpy as jnp
from jax.experimental import pallas as pl
from jax.experimental.pallas import tpu as pltpu


def _make_kernel(B, L, F, K):
    P = K // 2
    L1 = L + 2 * P - K + 1       # conv1 output length
    L2 = L1 + 2 * P - K + 1      # conv2 output length
    L3 = L + 2 * P - K + 1       # conv3 output length (its input has length L)
    eps = 1e-5

    def pad_lanes(t):
        """Zero-pad a (B, L_t) slab by P on each side of the lane axis."""
        if P == 0:
            return t
        z = jnp.zeros(t.shape[:-1] + (P,), jnp.float32)
        return jnp.concatenate([z, t, z], axis=-1)

    def bn_relu(h, gamma, beta, n):
        """Training-mode BatchNorm (biased variance) + ReLU on one channel."""
        inv_n = 1.0 / n
        m = jnp.sum(h) * inv_n
        hc = h - m                              # centered value reused below
        v = jnp.sum(hc * hc) * inv_n
        scale = gamma * jax.lax.rsqrt(v + eps)
        return jnp.maximum(hc * scale + beta, 0.0)

    def kernel(x_ref, w1_ref, w2_ref, w3_ref, wr_ref,
               g1_ref, b1_ref, g2_ref, b2_ref, a_ref, y_ref):
        x = x_ref[...]                                      # (B, L) f32

        # ---- conv1 (1 -> F) + bn1 + relu ---------------------------------
        xp = pad_lanes(x)                                   # (B, L + 2P)
        xs = [xp[:, k:k + L1] for k in range(K)]            # shared shifted views
        h1 = []
        for f in range(F):
            acc = xs[0] * w1_ref[f * K]
            for k in range(1, K):
                acc = acc + xs[k] * w1_ref[f * K + k]
            h1.append(bn_relu(acc, g1_ref[f], b1_ref[f], B * L1))

        # ---- shifted conv2 inputs, hoisted out of the output-channel loop --
        h1s = []                                            # h1s[f][k]: (B, L2)
        for f in range(F):
            hp = pad_lanes(h1[f])                           # (B, L1 + 2P)
            h1s.append([hp[:, k:k + L2] for k in range(K)])

        a0 = a_ref[0]
        a1 = a_ref[1]
        a2 = a_ref[2]

        y = None
        for g in range(F):
            # ---- conv2 (F -> F): F*K scalar FMAs for this output channel --
            acc = None
            for f in range(F):
                base = g * F * K + f * K
                for k in range(K):
                    term = h1s[f][k] * w2_ref[base + k]
                    acc = term if acc is None else acc + term
            h2 = bn_relu(acc, g2_ref[g], b2_ref[g], B * L2)

            # ---- crop, residual add, polynomial (Horner) -------------------
            z = h2[:, :L] + wr_ref[g] * x                   # (B, L)
            z = z * (a0 + z * (a1 + a2 * z))

            # ---- conv3 (F -> 1): accumulate straight into the output slab --
            zp = pad_lanes(z)                               # (B, L + 2P)
            for k in range(K):
                term = zp[:, k:k + L3] * w3_ref[g * K + k]
                y = term if y is None else y + term

        y_ref[...] = y                                      # (B, L3) lane-dense

    return kernel


def wh_channel_net_forward(x, params):
    """x: (B, 1, L) float32 (PyTorch NCL). Returns (B, 1, L_out)."""
    B, cin, L = x.shape
    assert cin == 1
    w1 = params['conv1']          # (F, 1, K)
    w2 = params['conv2']          # (F, F, K)
    w3 = params['conv3']          # (1, F, K)
    wr = params['residual']       # (F, 1, 1)
    F, _, K = w1.shape
    P = K // 2
    L3 = L + 2 * P - K + 1

    # Lane-dense input / flat scalar parameter tables (all tiny, SMEM-bound).
    x2d = x[:, 0, :].astype(jnp.float32)                   # (B, L)
    w1f = w1.reshape(F * K).astype(jnp.float32)            # [f*K + k]
    w2f = w2.reshape(F * F * K).astype(jnp.float32)        # [g*F*K + f*K + k]
    w3f = w3.reshape(F * K).astype(jnp.float32)            # [f*K + k]
    wrf = wr.reshape(F).astype(jnp.float32)
    a = jnp.stack([params['a0'], params['a1'], params['a2']]).astype(jnp.float32)

    vmem = pl.BlockSpec(memory_space=pltpu.MemorySpace.VMEM)
    smem = pl.BlockSpec(memory_space=pltpu.MemorySpace.SMEM)

    y2d = pl.pallas_call(
        _make_kernel(B, L, F, K),
        out_shape=jax.ShapeDtypeStruct((B, L3), jnp.float32),
        in_specs=[vmem] + [smem] * 9,
        out_specs=vmem,
    )(x2d, w1f, w2f, w3f, wrf,
      params['bn1_gamma'], params['bn1_beta'],
      params['bn2_gamma'], params['bn2_beta'], a)

    return y2d[:, None, :]                                  # (B, 1, L3)


# ------------------------- deterministic parameters --------------------------
def init_params(key, filter_length, num_filters, coeffs):
    K, F = filter_length, num_filters
    keys = jax.random.split(key, 4)

    def xavier(k, shape):
        rf = int(np.prod(shape[2:]))
        fan_out = shape[0] * rf
        fan_in = shape[1] * rf
        bound = float(np.sqrt(6.0 / (fan_in + fan_out)))
        return jax.random.uniform(k, shape, jnp.float32, -bound, bound)

    return dict(
        conv1=xavier(keys[0], (F, 1, K)),
        conv2=xavier(keys[1], (F, F, K)),
        conv3=xavier(keys[2], (1, F, K)),
        residual=xavier(keys[3], (F, 1, 1)),
        bn1_gamma=jnp.ones((F,), jnp.float32),
        bn1_beta=jnp.zeros((F,), jnp.float32),
        bn2_gamma=jnp.ones((F,), jnp.float32),
        bn2_beta=jnp.zeros((F,), jnp.float32),
        a0=jnp.float32(coeffs[0]),
        a1=jnp.float32(coeffs[1]),
        a2=jnp.float32(coeffs[2]),
    )


# ------------------------- plain-JAX reference (for check) -------------------
def _bn_train(h, gamma, beta, eps=1e-5):
    m = jnp.mean(h, axis=(0, 2), keepdims=True)
    v = jnp.mean((h - m) ** 2, axis=(0, 2), keepdims=True)
    return (h - m) * jax.lax.rsqrt(v + eps) * gamma[None, :, None] + beta[None, :, None]


def reference_forward(x, params):
    dn = ('NCH', 'OIH', 'NCH')

    def conv(inp, w, pad):
        return jax.lax.conv_general_dilated(
            inp, w, window_strides=(1,), padding=[(pad, pad)],
            dimension_numbers=dn, precision=jax.lax.Precision.HIGHEST)

    K = params['conv1'].shape[-1]
    P = K // 2
    res = conv(x, params['residual'], 0)
    h = conv(x, params['conv1'], P)
    h = jnp.maximum(_bn_train(h, params['bn1_gamma'], params['bn1_beta']), 0.0)
    h = conv(h, params['conv2'], P)
    h = jnp.maximum(_bn_train(h, params['bn2_gamma'], params['bn2_beta']), 0.0)
    h = h[:, :, :res.shape[2]] + res
    h = params['a0'] * h + params['a1'] * h ** 2 + params['a2'] * h ** 3
    return conv(h, params['conv3'], P)


if __name__ == "__main__":
    key = jax.random.PRNGKey(0)
    kp, kx = jax.random.split(key)

    filter_length = 3          # odd -> "same" length convolutions
    num_filters = 8
    B, L = 4, 64

    params = init_params(kp, filter_length, num_filters,
                         coeffs=(1.0, 0.1, 0.01))
    x = jax.random.normal(kx, (B, 1, L), jnp.float32)

    y = wh_channel_net_forward(x, params)
    y = jax.block_until_ready(y)

    y_ref = reference_forward(x, params)
    assert y.shape == y_ref.shape == (B, 1, L)
    np.testing.assert_allclose(np.asarray(y), np.asarray(y_ref),
                               rtol=1e-4, atol=1e-4)
    print("KERNEL_OK")
</pallas_src>

<mosaic_0001>
module attributes {stable_mosaic.version = 11 : i64} {
  func.func @kernel(%arg0: memref<4x64xf32, #tpu.memory_space<vmem>>, %arg1: memref<24xf32, #tpu.memory_space<smem>>, %arg2: memref<192xf32, #tpu.memory_space<smem>>, %arg3: memref<24xf32, #tpu.memory_space<smem>>, %arg4: memref<8xf32, #tpu.memory_space<smem>>, %arg5: memref<8xf32, #tpu.memory_space<smem>>, %arg6: memref<8xf32, #tpu.memory_space<smem>>, %arg7: memref<8xf32, #tpu.memory_space<smem>>, %arg8: memref<8xf32, #tpu.memory_space<smem>>, %arg9: memref<3xf32, #tpu.memory_space<smem>>, %arg10: memref<4x64xf32, #tpu.memory_space<vmem>>) attributes {dimension_semantics = [], scalar_prefetch = 0 : i64, scratch_operands = 0 : i64, tpu.core_type = #tpu.core_type<tc>} {
    %c0 = arith.constant 0 : index
    %c0_0 = arith.constant 0 : index
    %0 = vector.load %arg0[%c0, %c0_0] : memref<4x64xf32, #tpu.memory_space<vmem>>, vector<4x64xf32>
    %cst = arith.constant 0.000000e+00 : f32
    %1 = vector.broadcast %cst : f32 to vector<4x1xf32>
    %2 = tpu.concatenate %1, %0, %1 in 1 : vector<4x1xf32>, vector<4x64xf32>, vector<4x1xf32> -> vector<4x66xf32>
    %3 = vector.extract_strided_slice %2 {offsets = [0, 0], sizes = [4, 64], strides = [1, 1]} : vector<4x66xf32> to vector<4x64xf32>
    %4 = vector.extract_strided_slice %2 {offsets = [0, 1], sizes = [4, 64], strides = [1, 1]} : vector<4x66xf32> to vector<4x64xf32>
    %5 = vector.extract_strided_slice %2 {offsets = [0, 2], sizes = [4, 64], strides = [1, 1]} : vector<4x66xf32> to vector<4x64xf32>
    %c0_1 = arith.constant 0 : index
    %6 = memref.load %arg1[%c0_1] : memref<24xf32, #tpu.memory_space<smem>>
    %7 = vector.broadcast %6 : f32 to vector<4x64xf32>
    %8 = arith.mulf %3, %7 : vector<4x64xf32>
    %c1 = arith.constant 1 : index
    %9 = memref.load %arg1[%c1] : memref<24xf32, #tpu.memory_space<smem>>
    %10 = vector.broadcast %9 : f32 to vector<4x64xf32>
    %11 = arith.mulf %4, %10 : vector<4x64xf32>
    %12 = arith.addf %8, %11 : vector<4x64xf32>
    %c2 = arith.constant 2 : index
    %13 = memref.load %arg1[%c2] : memref<24xf32, #tpu.memory_space<smem>>
    %14 = vector.broadcast %13 : f32 to vector<4x64xf32>
    %15 = arith.mulf %5, %14 : vector<4x64xf32>
    %16 = arith.addf %12, %15 : vector<4x64xf32>
    %c0_2 = arith.constant 0 : index
    %17 = memref.load %arg5[%c0_2] : memref<8xf32, #tpu.memory_space<smem>>
    %c0_3 = arith.constant 0 : index
    %18 = memref.load %arg6[%c0_3] : memref<8xf32, #tpu.memory_space<smem>>
    %19 = vector.shape_cast %16 : vector<4x64xf32> to vector<1x4x64xf32>
    %cst_4 = arith.constant dense<0.000000e+00> : vector<1xf32>
    %20 = vector.multi_reduction <add>, %19, %cst_4 [1, 2] : vector<1x4x64xf32> to vector<1xf32>
    %21 = vector.shape_cast %20 : vector<1xf32> to vector<1x1x1xf32>
    %22 = vector.extract %21[0, 0, 0] : f32 from vector<1x1x1xf32>
    %cst_5 = arith.constant 3.906250e-03 : f32
    %23 = arith.mulf %22, %cst_5 : f32
    %24 = vector.broadcast %23 : f32 to vector<4x64xf32>
    %25 = arith.subf %16, %24 : vector<4x64xf32>
    %26 = arith.mulf %25, %25 : vector<4x64xf32>
    %27 = vector.shape_cast %26 : vector<4x64xf32> to vector<1x4x64xf32>
    %cst_6 = arith.constant dense<0.000000e+00> : vector<1xf32>
    %28 = vector.multi_reduction <add>, %27, %cst_6 [1, 2] : vector<1x4x64xf32> to vector<1xf32>
    %29 = vector.shape_cast %28 : vector<1xf32> to vector<1x1x1xf32>
    %30 = vector.extract %29[0, 0, 0] : f32 from vector<1x1x1xf32>
    %cst_7 = arith.constant 3.906250e-03 : f32
    %31 = arith.mulf %30, %cst_7 : f32
    %cst_8 = arith.constant 9.99999974E-6 : f32
    %32 = arith.addf %31, %cst_8 : f32
    %33 = math.rsqrt %32 : f32
    %34 = arith.mulf %17, %33 : f32
    %35 = vector.broadcast %34 : f32 to vector<4x64xf32>
    %36 = arith.mulf %25, %35 : vector<4x64xf32>
    %37 = vector.broadcast %18 : f32 to vector<4x64xf32>
    %38 = arith.addf %36, %37 : vector<4x64xf32>
    %cst_9 = arith.constant 0.000000e+00 : f32
    %39 = vector.broadcast %cst_9 : f32 to vector<4x64xf32>
    %40 = arith.maximumf %38, %39 : vector<4x64xf32>
    %c3 = arith.constant 3 : index
    %41 = memref.load %arg1[%c3] : memref<24xf32, #tpu.memory_space<smem>>
    %42 = vector.broadcast %41 : f32 to vector<4x64xf32>
    %43 = arith.mulf %3, %42 : vector<4x64xf32>
    %c4 = arith.constant 4 : index
    %44 = memref.load %arg1[%c4] : memref<24xf32, #tpu.memory_space<smem>>
    %45 = vector.broadcast %44 : f32 to vector<4x64xf32>
    %46 = arith.mulf %4, %45 : vector<4x64xf32>
    %47 = arith.addf %43, %46 : vector<4x64xf32>
    %c5 = arith.constant 5 : index
    %48 = memref.load %arg1[%c5] : memref<24xf32, #tpu.memory_space<smem>>
    %49 = vector.broadcast %48 : f32 to vector<4x64xf32>
    %50 = arith.mulf %5, %49 : vector<4x64xf32>
    %51 = arith.addf %47, %50 : vector<4x64xf32>
    %c1_10 = arith.constant 1 : index
    %52 = memref.load %arg5[%c1_10] : memref<8xf32, #tpu.memory_space<smem>>
    %c1_11 = arith.constant 1 : index
    %53 = memref.load %arg6[%c1_11] : memref<8xf32, #tpu.memory_space<smem>>
    %54 = vector.shape_cast %51 : vector<4x64xf32> to vector<1x4x64xf32>
    %cst_12 = arith.constant dense<0.000000e+00> : vector<1xf32>
    %55 = vector.multi_reduction <add>, %54, %cst_12 [1, 2] : vector<1x4x64xf32> to vector<1xf32>
    %56 = vector.shape_cast %55 : vector<1xf32> to vector<1x1x1xf32>
    %57 = vector.extract %56[0, 0, 0] : f32 from vector<1x1x1xf32>
    %cst_13 = arith.constant 3.906250e-03 : f32
    %58 = arith.mulf %57, %cst_13 : f32
    %59 = vector.broadcast %58 : f32 to vector<4x64xf32>
    %60 = arith.subf %51, %59 : vector<4x64xf32>
    %61 = arith.mulf %60, %60 : vector<4x64xf32>
    %62 = vector.shape_cast %61 : vector<4x64xf32> to vector<1x4x64xf32>
    %cst_14 = arith.constant dense<0.000000e+00> : vector<1xf32>
    %63 = vector.multi_reduction <add>, %62, %cst_14 [1, 2] : vector<1x4x64xf32> to vector<1xf32>
    %64 = vector.shape_cast %63 : vector<1xf32> to vector<1x1x1xf32>
    %65 = vector.extract %64[0, 0, 0] : f32 from vector<1x1x1xf32>
    %cst_15 = arith.constant 3.906250e-03 : f32
    %66 = arith.mulf %65, %cst_15 : f32
    %cst_16 = arith.constant 9.99999974E-6 : f32
    %67 = arith.addf %66, %cst_16 : f32
    %68 = math.rsqrt %67 : f32
    %69 = arith.mulf %52, %68 : f32
    %70 = vector.broadcast %69 : f32 to vector<4x64xf32>
    %71 = arith.mulf %60, %70 : vector<4x64xf32>
    %72 = vector.broadcast %53 : f32 to vector<4x64xf32>
    %73 = arith.addf %71, %72 : vector<4x64xf32>
    %cst_17 = arith.constant 0.000000e+00 : f32
    %74 = vector.broadcast %cst_17 : f32 to vector<4x64xf32>
    %75 = arith.maximumf %73, %74 : vector<4x64xf32>
    %c6 = arith.constant 6 : index
    %76 = memref.load %arg1[%c6] : memref<24xf32, #tpu.memory_space<smem>>
    %77 = vector.broadcast %76 : f32 to vector<4x64xf32>
    %78 = arith.mulf %3, %77 : vector<4x64xf32>
    %c7 = arith.constant 7 : index
    %79 = memref.load %arg1[%c7] : memref<24xf32, #tpu.memory_space<smem>>
    %80 = vector.broadcast %79 : f32 to vector<4x64xf32>
    %81 = arith.mulf %4, %80 : vector<4x64xf32>
    %82 = arith.addf %78, %81 : vector<4x64xf32>
    %c8 = arith.constant 8 : index
    %83 = memref.load %arg1[%c8] : memref<24xf32, #tpu.memory_space<smem>>
    %84 = vector.broadcast %83 : f32 to vector<4x64xf32>
    %85 = arith.mulf %5, %84 : vector<4x64xf32>
    %86 = arith.addf %82, %85 : vector<4x64xf32>
    %c2_18 = arith.constant 2 : index
    %87 = memref.load %arg5[%c2_18] : memref<8xf32, #tpu.memory_space<smem>>
    %c2_19 = arith.constant 2 : index
    %88 = memref.load %arg6[%c2_19] : memref<8xf32, #tpu.memory_space<smem>>
    %89 = vector.shape_cast %86 : vector<4x64xf32> to vector<1x4x64xf32>
    %cst_20 = arith.constant dense<0.000000e+00> : vector<1xf32>
    %90 = vector.multi_reduction <add>, %89, %cst_20 [1, 2] : vector<1x4x64xf32> to vector<1xf32>
    %91 = vector.shape_cast %90 : vector<1xf32> to vector<1x1x1xf32>
    %92 = vector.extract %91[0, 0, 0] : f32 from vector<1x1x1xf32>
    %cst_21 = arith.constant 3.906250e-03 : f32
    %93 = arith.mulf %92, %cst_21 : f32
    %94 = vector.broadcast %93 : f32 to vector<4x64xf32>
    %95 = arith.subf %86, %94 : vector<4x64xf32>
    %96 = arith.mulf %95, %95 : vector<4x64xf32>
    %97 = vector.shape_cast %96 : vector<4x64xf32> to vector<1x4x64xf32>
    %cst_22 = arith.constant dense<0.000000e+00> : vector<1xf32>
    %98 = vector.multi_reduction <add>, %97, %cst_22 [1, 2] : vector<1x4x64xf32> to vector<1xf32>
    %99 = vector.shape_cast %98 : vector<1xf32> to vector<1x1x1xf32>
    %100 = vector.extract %99[0, 0, 0] : f32 from vector<1x1x1xf32>
    %cst_23 = arith.constant 3.906250e-03 : f32
    %101 = arith.mulf %100, %cst_23 : f32
    %cst_24 = arith.constant 9.99999974E-6 : f32
    %102 = arith.addf %101, %cst_24 : f32
    %103 = math.rsqrt %102 : f32
    %104 = arith.mulf %87, %103 : f32
    %105 = vector.broadcast %104 : f32 to vector<4x64xf32>
    %106 = arith.mulf %95, %105 : vector<4x64xf32>
    %107 = vector.broadcast %88 : f32 to vector<4x64xf32>
    %108 = arith.addf %106, %107 : vector<4x64xf32>
    %cst_25 = arith.constant 0.000000e+00 : f32
    %109 = vector.broadcast %cst_25 : f32 to vector<4x64xf32>
    %110 = arith.maximumf %108, %109 : vector<4x64xf32>
    %c9 = arith.constant 9 : index
    %111 = memref.load %arg1[%c9] : memref<24xf32, #tpu.memory_space<smem>>
    %112 = vector.broadcast %111 : f32 to vector<4x64xf32>
    %113 = arith.mulf %3, %112 : vector<4x64xf32>
    %c10 = arith.constant 10 : index
    %114 = memref.load %arg1[%c10] : memref<24xf32, #tpu.memory_space<smem>>
    %115 = vector.broadcast %114 : f32 to vector<4x64xf32>
    %116 = arith.mulf %4, %115 : vector<4x64xf32>
    %117 = arith.addf %113, %116 : vector<4x64xf32>
    %c11 = arith.constant 11 : index
    %118 = memref.load %arg1[%c11] : memref<24xf32, #tpu.memory_space<smem>>
    %119 = vector.broadcast %118 : f32 to vector<4x64xf32>
    %120 = arith.mulf %5, %119 : vector<4x64xf32>
    %121 = arith.addf %117, %120 : vector<4x64xf32>
    %c3_26 = arith.constant 3 : index
    %122 = memref.load %arg5[%c3_26] : memref<8xf32, #tpu.memory_space<smem>>
    %c3_27 = arith.constant 3 : index
    %123 = memref.load %arg6[%c3_27] : memref<8xf32, #tpu.memory_space<smem>>
    %124 = vector.shape_cast %121 : vector<4x64xf32> to vector<1x4x64xf32>
    %cst_28 = arith.constant dense<0.000000e+00> : vector<1xf32>
    %125 = vector.multi_reduction <add>, %124, %cst_28 [1, 2] : vector<1x4x64xf32> to vector<1xf32>
    %126 = vector.shape_cast %125 : vector<1xf32> to vector<1x1x1xf32>
    %127 = vector.extract %126[0, 0, 0] : f32 from vector<1x1x1xf32>
    %cst_29 = arith.constant 3.906250e-03 : f32
    %128 = arith.mulf %127, %cst_29 : f32
    %129 = vector.broadcast %128 : f32 to vector<4x64xf32>
    %130 = arith.subf %121, %129 : vector<4x64xf32>
    %131 = arith.mulf %130, %130 : vector<4x64xf32>
    %132 = vector.shape_cast %131 : vector<4x64xf32> to vector<1x4x64xf32>
    %cst_30 = arith.constant dense<0.000000e+00> : vector<1xf32>
    %133 = vector.multi_reduction <add>, %132, %cst_30 [1, 2] : vector<1x4x64xf32> to vector<1xf32>
    %134 = vector.shape_cast %133 : vector<1xf32> to vector<1x1x1xf32>
    %135 = vector.extract %134[0, 0, 0] : f32 from vector<1x1x1xf32>
    %cst_31 = arith.constant 3.906250e-03 : f32
    %136 = arith.mulf %135, %cst_31 : f32
    %cst_32 = arith.constant 9.99999974E-6 : f32
    %137 = arith.addf %136, %cst_32 : f32
    %138 = math.rsqrt %137 : f32
    %139 = arith.mulf %122, %138 : f32
    %140 = vector.broadcast %139 : f32 to vector<4x64xf32>
    %141 = arith.mulf %130, %140 : vector<4x64xf32>
    %142 = vector.broadcast %123 : f32 to vector<4x64xf32>
    %143 = arith.addf %141, %142 : vector<4x64xf32>
    %cst_33 = arith.constant 0.000000e+00 : f32
    %144 = vector.broadcast %cst_33 : f32 to vector<4x64xf32>
    %145 = arith.maximumf %143, %144 : vector<4x64xf32>
    %c12 = arith.constant 12 : index
    %146 = memref.load %arg1[%c12] : memref<24xf32, #tpu.memory_space<smem>>
    %147 = vector.broadcast %146 : f32 to vector<4x64xf32>
    %148 = arith.mulf %3, %147 : vector<4x64xf32>
    %c13 = arith.constant 13 : index
    %149 = memref.load %arg1[%c13] : memref<24xf32, #tpu.memory_space<smem>>
    %150 = vector.broadcast %149 : f32 to vector<4x64xf32>
    %151 = arith.mulf %4, %150 : vector<4x64xf32>
    %152 = arith.addf %148, %151 : vector<4x64xf32>
    %c14 = arith.constant 14 : index
    %153 = memref.load %arg1[%c14] : memref<24xf32, #tpu.memory_space<smem>>
    %154 = vector.broadcast %153 : f32 to vector<4x64xf32>
    %155 = arith.mulf %5, %154 : vector<4x64xf32>
    %156 = arith.addf %152, %155 : vector<4x64xf32>
    %c4_34 = arith.constant 4 : index
    %157 = memref.load %arg5[%c4_34] : memref<8xf32, #tpu.memory_space<smem>>
    %c4_35 = arith.constant 4 : index
    %158 = memref.load %arg6[%c4_35] : memref<8xf32, #tpu.memory_space<smem>>
    %159 = vector.shape_cast %156 : vector<4x64xf32> to vector<1x4x64xf32>
    %cst_36 = arith.constant dense<0.000000e+00> : vector<1xf32>
    %160 = vector.multi_reduction <add>, %159, %cst_36 [1, 2] : vector<1x4x64xf32> to vector<1xf32>
    %161 = vector.shape_cast %160 : vector<1xf32> to vector<1x1x1xf32>
    %162 = vector.extract %161[0, 0, 0] : f32 from vector<1x1x1xf32>
    %cst_37 = arith.constant 3.906250e-03 : f32
    %163 = arith.mulf %162, %cst_37 : f32
    %164 = vector.broadcast %163 : f32 to vector<4x64xf32>
    %165 = arith.subf %156, %164 : vector<4x64xf32>
    %166 = arith.mulf %165, %165 : vector<4x64xf32>
    %167 = vector.shape_cast %166 : vector<4x64xf32> to vector<1x4x64xf32>
    %cst_38 = arith.constant dense<0.000000e+00> : vector<1xf32>
    %168 = vector.multi_reduction <add>, %167, %cst_38 [1, 2] : vector<1x4x64xf32> to vector<1xf32>
    %169 = vector.shape_cast %168 : vector<1xf32> to vector<1x1x1xf32>
    %170 = vector.extract %169[0, 0, 0] : f32 from vector<1x1x1xf32>
    %cst_39 = arith.constant 3.906250e-03 : f32
    %171 = arith.mulf %170, %cst_39 : f32
    %cst_40 = arith.constant 9.99999974E-6 : f32
    %172 = arith.addf %171, %cst_40 : f32
    %173 = math.rsqrt %172 : f32
    %174 = arith.mulf %157, %173 : f32
    %175 = vector.broadcast %174 : f32 to vector<4x64xf32>
    %176 = arith.mulf %165, %175 : vector<4x64xf32>
    %177 = vector.broadcast %158 : f32 to vector<4x64xf32>
    %178 = arith.addf %176, %177 : vector<4x64xf32>
    %cst_41 = arith.constant 0.000000e+00 : f32
    %179 = vector.broadcast %cst_41 : f32 to vector<4x64xf32>
    %180 = arith.maximumf %178, %179 : vector<4x64xf32>
    %c15 = arith.constant 15 : index
    %181 = memref.load %arg1[%c15] : memref<24xf32, #tpu.memory_space<smem>>
    %182 = vector.broadcast %181 : f32 to vector<4x64xf32>
    %183 = arith.mulf %3, %182 : vector<4x64xf32>
    %c16 = arith.constant 16 : index
    %184 = memref.load %arg1[%c16] : memref<24xf32, #tpu.memory_space<smem>>
    %185 = vector.broadcast %184 : f32 to vector<4x64xf32>
    %186 = arith.mulf %4, %185 : vector<4x64xf32>
    %187 = arith.addf %183, %186 : vector<4x64xf32>
    %c17 = arith.constant 17 : index
    %188 = memref.load %arg1[%c17] : memref<24xf32, #tpu.memory_space<smem>>
    %189 = vector.broadcast %188 : f32 to vector<4x64xf32>
    %190 = arith.mulf %5, %189 : vector<4x64xf32>
    %191 = arith.addf %187, %190 : vector<4x64xf32>
    %c5_42 = arith.constant 5 : index
    %192 = memref.load %arg5[%c5_42] : memref<8xf32, #tpu.memory_space<smem>>
    %c5_43 = arith.constant 5 : index
    %193 = memref.load %arg6[%c5_43] : memref<8xf32, #tpu.memory_space<smem>>
    %194 = vector.shape_cast %191 : vector<4x64xf32> to vector<1x4x64xf32>
    %cst_44 = arith.constant dense<0.000000e+00> : vector<1xf32>
    %195 = vector.multi_reduction <add>, %194, %cst_44 [1, 2] : vector<1x4x64xf32> to vector<1xf32>
    %196 = vector.shape_cast %195 : vector<1xf32> to vector<1x1x1xf32>
    %197 = vector.extract %196[0, 0, 0] : f32 from vector<1x1x1xf32>
    %cst_45 = arith.constant 3.906250e-03 : f32
    %198 = arith.mulf %197, %cst_45 : f32
    %199 = vector.broadcast %198 : f32 to vector<4x64xf32>
    %200 = arith.subf %191, %199 : vector<4x64xf32>
    %201 = arith.mulf %200, %200 : vector<4x64xf32>
    %202 = vector.shape_cast %201 : vector<4x64xf32> to vector<1x4x64xf32>
    %cst_46 = arith.constant dense<0.000000e+00> : vector<1xf32>
    %203 = vector.multi_reduction <add>, %202, %cst_46 [1, 2] : vector<1x4x64xf32> to vector<1xf32>
    %204 = vector.shape_cast %203 : vector<1xf32> to vector<1x1x1xf32>
    %205 = vector.extract %204[0, 0, 0] : f32 from vector<1x1x1xf32>
    %cst_47 = arith.constant 3.906250e-03 : f32
    %206 = arith.mulf %205, %cst_47 : f32
    %cst_48 = arith.constant 9.99999974E-6 : f32
    %207 = arith.addf %206, %cst_48 : f32
    %208 = math.rsqrt %207 : f32
    %209 = arith.mulf %192, %208 : f32
    %210 = vector.broadcast %209 : f32 to vector<4x64xf32>
    %211 = arith.mulf %200, %210 : vector<4x64xf32>
    %212 = vector.broadcast %193 : f32 to vector<4x64xf32>
    %213 = arith.addf %211, %212 : vector<4x64xf32>
    %cst_49 = arith.constant 0.000000e+00 : f32
    %214 = vector.broadcast %cst_49 : f32 to vector<4x64xf32>
    %215 = arith.maximumf %213, %214 : vector<4x64xf32>
    %c18 = arith.constant 18 : index
    %216 = memref.load %arg1[%c18] : memref<24xf32, #tpu.memory_space<smem>>
    %217 = vector.broadcast %216 : f32 to vector<4x64xf32>
    %218 = arith.mulf %3, %217 : vector<4x64xf32>
    %c19 = arith.constant 19 : index
    %219 = memref.load %arg1[%c19] : memref<24xf32, #tpu.memory_space<smem>>
    %220 = vector.broadcast %219 : f32 to vector<4x64xf32>
    %221 = arith.mulf %4, %220 : vector<4x64xf32>
    %222 = arith.addf %218, %221 : vector<4x64xf32>
    %c20 = arith.constant 20 : index
    %223 = memref.load %arg1[%c20] : memref<24xf32, #tpu.memory_space<smem>>
    %224 = vector.broadcast %223 : f32 to vector<4x64xf32>
    %225 = arith.mulf %5, %224 : vector<4x64xf32>
    %226 = arith.addf %222, %225 : vector<4x64xf32>
    %c6_50 = arith.constant 6 : index
    %227 = memref.load %arg5[%c6_50] : memref<8xf32, #tpu.memory_space<smem>>
    %c6_51 = arith.constant 6 : index
    %228 = memref.load %arg6[%c6_51] : memref<8xf32, #tpu.memory_space<smem>>
    %229 = vector.shape_cast %226 : vector<4x64xf32> to vector<1x4x64xf32>
    %cst_52 = arith.constant dense<0.000000e+00> : vector<1xf32>
    %230 = vector.multi_reduction <add>, %229, %cst_52 [1, 2] : vector<1x4x64xf32> to vector<1xf32>
    %231 = vector.shape_cast %230 : vector<1xf32> to vector<1x1x1xf32>
    %232 = vector.extract %231[0, 0, 0] : f32 from vector<1x1x1xf32>
    %cst_53 = arith.constant 3.906250e-03 : f32
    %233 = arith.mulf %232, %cst_53 : f32
    %234 = vector.broadcast %233 : f32 to vector<4x64xf32>
    %235 = arith.subf %226, %234 : vector<4x64xf32>
    %236 = arith.mulf %235, %235 : vector<4x64xf32>
    %237 = vector.shape_cast %236 : vector<4x64xf32> to vector<1x4x64xf32>
    %cst_54 = arith.constant dense<0.000000e+00> : vector<1xf32>
    %238 = vector.multi_reduction <add>, %237, %cst_54 [1, 2] : vector<1x4x64xf32> to vector<1xf32>
    %239 = vector.shape_cast %238 : vector<1xf32> to vector<1x1x1xf32>
    %240 = vector.extract %239[0, 0, 0] : f32 from vector<1x1x1xf32>
    %cst_55 = arith.constant 3.906250e-03 : f32
    %241 = arith.mulf %240, %cst_55 : f32
    %cst_56 = arith.constant 9.99999974E-6 : f32
    %242 = arith.addf %241, %cst_56 : f32
    %243 = math.rsqrt %242 : f32
    %244 = arith.mulf %227, %243 : f32
    %245 = vector.broadcast %244 : f32 to vector<4x64xf32>
    %246 = arith.mulf %235, %245 : vector<4x64xf32>
    %247 = vector.broadcast %228 : f32 to vector<4x64xf32>
    %248 = arith.addf %246, %247 : vector<4x64xf32>
    %cst_57 = arith.constant 0.000000e+00 : f32
    %249 = vector.broadcast %cst_57 : f32 to vector<4x64xf32>
    %250 = arith.maximumf %248, %249 : vector<4x64xf32>
    %c21 = arith.constant 21 : index
    %251 = memref.load %arg1[%c21] : memref<24xf32, #tpu.memory_space<smem>>
    %252 = vector.broadcast %251 : f32 to vector<4x64xf32>
    %253 = arith.mulf %3, %252 : vector<4x64xf32>
    %c22 = arith.constant 22 : index
    %254 = memref.load %arg1[%c22] : memref<24xf32, #tpu.memory_space<smem>>
    %255 = vector.broadcast %254 : f32 to vector<4x64xf32>
    %256 = arith.mulf %4, %255 : vector<4x64xf32>
    %257 = arith.addf %253, %256 : vector<4x64xf32>
    %c23 = arith.constant 23 : index
    %258 = memref.load %arg1[%c23] : memref<24xf32, #tpu.memory_space<smem>>
    %259 = vector.broadcast %258 : f32 to vector<4x64xf32>
    %260 = arith.mulf %5, %259 : vector<4x64xf32>
    %261 = arith.addf %257, %260 : vector<4x64xf32>
    %c7_58 = arith.constant 7 : index
    %262 = memref.load %arg5[%c7_58] : memref<8xf32, #tpu.memory_space<smem>>
    %c7_59 = arith.constant 7 : index
    %263 = memref.load %arg6[%c7_59] : memref<8xf32, #tpu.memory_space<smem>>
    %264 = vector.shape_cast %261 : vector<4x64xf32> to vector<1x4x64xf32>
    %cst_60 = arith.constant dense<0.000000e+00> : vector<1xf32>
    %265 = vector.multi_reduction <add>, %264, %cst_60 [1, 2] : vector<1x4x64xf32> to vector<1xf32>
    %266 = vector.shape_cast %265 : vector<1xf32> to vector<1x1x1xf32>
    %267 = vector.extract %266[0, 0, 0] : f32 from vector<1x1x1xf32>
    %cst_61 = arith.constant 3.906250e-03 : f32
    %268 = arith.mulf %267, %cst_61 : f32
    %269 = vector.broadcast %268 : f32 to vector<4x64xf32>
    %270 = arith.subf %261, %269 : vector<4x64xf32>
    %271 = arith.mulf %270, %270 : vector<4x64xf32>
    %272 = vector.shape_cast %271 : vector<4x64xf32> to vector<1x4x64xf32>
    %cst_62 = arith.constant dense<0.000000e+00> : vector<1xf32>
    %273 = vector.multi_reduction <add>, %272, %cst_62 [1, 2] : vector<1x4x64xf32> to vector<1xf32>
    %274 = vector.shape_cast %273 : vector<1xf32> to vector<1x1x1xf32>
    %275 = vector.extract %274[0, 0, 0] : f32 from vector<1x1x1xf32>
    %cst_63 = arith.constant 3.906250e-03 : f32
    %276 = arith.mulf %275, %cst_63 : f32
    %cst_64 = arith.constant 9.99999974E-6 : f32
    %277 = arith.addf %276, %cst_64 : f32
    %278 = math.rsqrt %277 : f32
    %279 = arith.mulf %262, %278 : f32
    %280 = vector.broadcast %279 : f32 to vector<4x64xf32>
    %281 = arith.mulf %270, %280 : vector<4x64xf32>
    %282 = vector.broadcast %263 : f32 to vector<4x64xf32>
    %283 = arith.addf %281, %282 : vector<4x64xf32>
    %cst_65 = arith.constant 0.000000e+00 : f32
    %284 = vector.broadcast %cst_65 : f32 to vector<4x64xf32>
    %285 = arith.maximumf %283, %284 : vector<4x64xf32>
    %cst_66 = arith.constant 0.000000e+00 : f32
    %286 = vector.broadcast %cst_66 : f32 to vector<4x1xf32>
    %287 = tpu.concatenate %286, %40, %286 in 1 : vector<4x1xf32>, vector<4x64xf32>, vector<4x1xf32> -> vector<4x66xf32>
    %288 = vector.extract_strided_slice %287 {offsets = [0, 0], sizes = [4, 64], strides = [1, 1]} : vector<4x66xf32> to vector<4x64xf32>
    %289 = vector.extract_strided_slice %287 {offsets = [0, 1], sizes = [4, 64], strides = [1, 1]} : vector<4x66xf32> to vector<4x64xf32>
    %290 = vector.extract_strided_slice %287 {offsets = [0, 2], sizes = [4, 64], strides = [1, 1]} : vector<4x66xf32> to vector<4x64xf32>
    %cst_67 = arith.constant 0.000000e+00 : f32
    %291 = vector.broadcast %cst_67 : f32 to vector<4x1xf32>
    %292 = tpu.concatenate %291, %75, %291 in 1 : vector<4x1xf32>, vector<4x64xf32>, vector<4x1xf32> -> vector<4x66xf32>
    %293 = vector.extract_strided_slice %292 {offsets = [0, 0], sizes = [4, 64], strides = [1, 1]} : vector<4x66xf32> to vector<4x64xf32>
    %294 = vector.extract_strided_slice %292 {offsets = [0, 1], sizes = [4, 64], strides = [1, 1]} : vector<4x66xf32> to vector<4x64xf32>
    %295 = vector.extract_strided_slice %292 {offsets = [0, 2], sizes = [4, 64], strides = [1, 1]} : vector<4x66xf32> to vector<4x64xf32>
    %cst_68 = arith.constant 0.000000e+00 : f32
    %296 = vector.broadcast %cst_68 : f32 to vector<4x1xf32>
    %297 = tpu.concatenate %296, %110, %296 in 1 : vector<4x1xf32>, vector<4x64xf32>, vector<4x1xf32> -> vector<4x66xf32>
    %298 = vector.extract_strided_slice %297 {offsets = [0, 0], sizes = [4, 64], strides = [1, 1]} : vector<4x66xf32> to vector<4x64xf32>
    %299 = vector.extract_strided_slice %297 {offsets = [0, 1], sizes = [4, 64], strides = [1, 1]} : vector<4x66xf32> to vector<4x64xf32>
    %300 = vector.extract_strided_slice %297 {offsets = [0, 2], sizes = [4, 64], strides = [1, 1]} : vector<4x66xf32> to vector<4x64xf32>
    %cst_69 = arith.constant 0.000000e+00 : f32
    %301 = vector.broadcast %cst_69 : f32 to vector<4x1xf32>
    %302 = tpu.concatenate %301, %145, %301 in 1 : vector<4x1xf32>, vector<4x64xf32>, vector<4x1xf32> -> vector<4x66xf32>
    %303 = vector.extract_strided_slice %302 {offsets = [0, 0], sizes = [4, 64], strides = [1, 1]} : vector<4x66xf32> to vector<4x64xf32>
    %304 = vector.extract_strided_slice %302 {offsets = [0, 1], sizes = [4, 64], strides = [1, 1]} : vector<4x66xf32> to vector<4x64xf32>
    %305 = vector.extract_strided_slice %302 {offsets = [0, 2], sizes = [4, 64], strides = [1, 1]} : vector<4x66xf32> to vector<4x64xf32>
    %cst_70 = arith.constant 0.000000e+00 : f32
    %306 = vector.broadcast %cst_70 : f32 to vector<4x1xf32>
    %307 = tpu.concatenate %306, %180, %306 in 1 : vector<4x1xf32>, vector<4x64xf32>, vector<4x1xf32> -> vector<4x66xf32>
    %308 = vector.extract_strided_slice %307 {offsets = [0, 0], sizes = [4, 64], strides = [1, 1]} : vector<4x66xf32> to vector<4x64xf32>
    %309 = vector.extract_strided_slice %307 {offsets = [0, 1], sizes = [4, 64], strides = [1, 1]} : vector<4x66xf32> to vector<4x64xf32>
    %310 = vector.extract_strided_slice %307 {offsets = [0, 2], sizes = [4, 64], strides = [1, 1]} : vector<4x66xf32> to vector<4x64xf32>
    %cst_71 = arith.constant 0.000000e+00 : f32
    %311 = vector.broadcast %cst_71 : f32 to vector<4x1xf32>
    %312 = tpu.concatenate %311, %215, %311 in 1 : vector<4x1xf32>, vector<4x64xf32>, vector<4x1xf32> -> vector<4x66xf32>
    %313 = vector.extract_strided_slice %312 {offsets = [0, 0], sizes = [4, 64], strides = [1, 1]} : vector<4x66xf32> to vector<4x64xf32>
    %314 = vector.extract_strided_slice %312 {offsets = [0, 1], sizes = [4, 64], strides = [1, 1]} : vector<4x66xf32> to vector<4x64xf32>
    %315 = vector.extract_strided_slice %312 {offsets = [0, 2], sizes = [4, 64], strides = [1, 1]} : vector<4x66xf32> to vector<4x64xf32>
    %cst_72 = arith.constant 0.000000e+00 : f32
    %316 = vector.broadcast %cst_72 : f32 to vector<4x1xf32>
    %317 = tpu.concatenate %316, %250, %316 in 1 : vector<4x1xf32>, vector<4x64xf32>, vector<4x1xf32> -> vector<4x66xf32>
    %318 = vector.extract_strided_slice %317 {offsets = [0, 0], sizes = [4, 64], strides = [1, 1]} : vector<4x66xf32> to vector<4x64xf32>
    %319 = vector.extract_strided_slice %317 {offsets = [0, 1], sizes = [4, 64], strides = [1, 1]} : vector<4x66xf32> to vector<4x64xf32>
    %320 = vector.extract_strided_slice %317 {offsets = [0, 2], sizes = [4, 64], strides = [1, 1]} : vector<4x66xf32> to vector<4x64xf32>
    %cst_73 = arith.constant 0.000000e+00 : f32
    %321 = vector.broadcast %cst_73 : f32 to vector<4x1xf32>
    %322 = tpu.concatenate %321, %285, %321 in 1 : vector<4x1xf32>, vector<4x64xf32>, vector<4x1xf32> -> vector<4x66xf32>
    %323 = vector.extract_strided_slice %322 {offsets = [0, 0], sizes = [4, 64], strides = [1, 1]} : vector<4x66xf32> to vector<4x64xf32>
    %324 = vector.extract_strided_slice %322 {offsets = [0, 1], sizes = [4, 64], strides = [1, 1]} : vector<4x66xf32> to vector<4x64xf32>
    %325 = vector.extract_strided_slice %322 {offsets = [0, 2], sizes = [4, 64], strides = [1, 1]} : vector<4x66xf32> to vector<4x64xf32>
    %c0_74 = arith.constant 0 : index
    %326 = memref.load %arg9[%c0_74] : memref<3xf32, #tpu.memory_space<smem>>
    %c1_75 = arith.constant 1 : index
    %327 = memref.load %arg9[%c1_75] : memref<3xf32, #tpu.memory_space<smem>>
    %c2_76 = arith.constant 2 : index
    %328 = memref.load %arg9[%c2_76] : memref<3xf32, #tpu.memory_space<smem>>
    %c0_77 = arith.constant 0 : index
    %329 = memref.load %arg2[%c0_77] : memref<192xf32, #tpu.memory_space<smem>>
    %330 = vector.broadcast %329 : f32 to vector<4x64xf32>
    %331 = arith.mulf %288, %330 : vector<4x64xf32>
    %c1_78 = arith.constant 1 : index
    %332 = memref.load %arg2[%c1_78] : memref<192xf32, #tpu.memory_space<smem>>
    %333 = vector.broadcast %332 : f32 to vector<4x64xf32>
    %334 = arith.mulf %289, %333 : vector<4x64xf32>
    %335 = arith.addf %331, %334 : vector<4x64xf32>
    %c2_79 = arith.constant 2 : index
    %336 = memref.load %arg2[%c2_79] : memref<192xf32, #tpu.memory_space<smem>>
    %337 = vector.broadcast %336 : f32 to vector<4x64xf32>
    %338 = arith.mulf %290, %337 : vector<4x64xf32>
    %339 = arith.addf %335, %338 : vector<4x64xf32>
    %c3_80 = arith.constant 3 : index
    %340 = memref.load %arg2[%c3_80] : memref<192xf32, #tpu.memory_space<smem>>
    %341 = vector.broadcast %340 : f32 to vector<4x64xf32>
    %342 = arith.mulf %293, %341 : vector<4x64xf32>
    %343 = arith.addf %339, %342 : vector<4x64xf32>
    %c4_81 = arith.constant 4 : index
    %344 = memref.load %arg2[%c4_81] : memref<192xf32, #tpu.memory_space<smem>>
    %345 = vector.broadcast %344 : f32 to vector<4x64xf32>
    %346 = arith.mulf %294, %345 : vector<4x64xf32>
    %347 = arith.addf %343, %346 : vector<4x64xf32>
    %c5_82 = arith.constant 5 : index
    %348 = memref.load %arg2[%c5_82] : memref<192xf32, #tpu.memory_space<smem>>
    %349 = vector.broadcast %348 : f32 to vector<4x64xf32>
    %350 = arith.mulf %295, %349 : vector<4x64xf32>
    %351 = arith.addf %347, %350 : vector<4x64xf32>
    %c6_83 = arith.constant 6 : index
    %352 = memref.load %arg2[%c6_83] : memref<192xf32, #tpu.memory_space<smem>>
    %353 = vector.broadcast %352 : f32 to vector<4x64xf32>
    %354 = arith.mulf %298, %353 : vector<4x64xf32>
    %355 = arith.addf %351, %354 : vector<4x64xf32>
    %c7_84 = arith.constant 7 : index
    %356 = memref.load %arg2[%c7_84] : memref<192xf32, #tpu.memory_space<smem>>
    %357 = vector.broadcast %356 : f32 to vector<4x64xf32>
    %358 = arith.mulf %299, %357 : vector<4x64xf32>
    %359 = arith.addf %355, %358 : vector<4x64xf32>
    %c8_85 = arith.constant 8 : index
    %360 = memref.load %arg2[%c8_85] : memref<192xf32, #tpu.memory_space<smem>>
    %361 = vector.broadcast %360 : f32 to vector<4x64xf32>
    %362 = arith.mulf %300, %361 : vector<4x64xf32>
    %363 = arith.addf %359, %362 : vector<4x64xf32>
    %c9_86 = arith.constant 9 : index
    %364 = memref.load %arg2[%c9_86] : memref<192xf32, #tpu.memory_space<smem>>
    %365 = vector.broadcast %364 : f32 to vector<4x64xf32>
    %366 = arith.mulf %303, %365 : vector<4x64xf32>
    %367 = arith.addf %363, %366 : vector<4x64xf32>
    %c10_87 = arith.constant 10 : index
    %368 = memref.load %arg2[%c10_87] : memref<192xf32, #tpu.memory_space<smem>>
    %369 = vector.broadcast %368 : f32 to vector<4x64xf32>
    %370 = arith.mulf %304, %369 : vector<4x64xf32>
    %371 = arith.addf %367, %370 : vector<4x64xf32>
    %c11_88 = arith.constant 11 : index
    %372 = memref.load %arg2[%c11_88] : memref<192xf32, #tpu.memory_space<smem>>
    %373 = vector.broadcast %372 : f32 to vector<4x64xf32>
    %374 = arith.mulf %305, %373 : vector<4x64xf32>
    %375 = arith.addf %371, %374 : vector<4x64xf32>
    %c12_89 = arith.constant 12 : index
    %376 = memref.load %arg2[%c12_89] : memref<192xf32, #tpu.memory_space<smem>>
    %377 = vector.broadcast %376 : f32 to vector<4x64xf32>
    %378 = arith.mulf %308, %377 : vector<4x64xf32>
    %379 = arith.addf %375, %378 : vector<4x64xf32>
    %c13_90 = arith.constant 13 : index
    %380 = memref.load %arg2[%c13_90] : memref<192xf32, #tpu.memory_space<smem>>
    %381 = vector.broadcast %380 : f32 to vector<4x64xf32>
    %382 = arith.mulf %309, %381 : vector<4x64xf32>
    %383 = arith.addf %379, %382 : vector<4x64xf32>
    %c14_91 = arith.constant 14 : index
    %384 = memref.load %arg2[%c14_91] : memref<192xf32, #tpu.memory_space<smem>>
    %385 = vector.broadcast %384 : f32 to vector<4x64xf32>
    %386 = arith.mulf %310, %385 : vector<4x64xf32>
    %387 = arith.addf %383, %386 : vector<4x64xf32>
    %c15_92 = arith.constant 15 : index
    %388 = memref.load %arg2[%c15_92] : memref<192xf32, #tpu.memory_space<smem>>
    %389 = vector.broadcast %388 : f32 to vector<4x64xf32>
    %390 = arith.mulf %313, %389 : vector<4x64xf32>
    %391 = arith.addf %387, %390 : vector<4x64xf32>
    %c16_93 = arith.constant 16 : index
    %392 = memref.load %arg2[%c16_93] : memref<192xf32, #tpu.memory_space<smem>>
    %393 = vector.broadcast %392 : f32 to vector<4x64xf32>
    %394 = arith.mulf %314, %393 : vector<4x64xf32>
    %395 = arith.addf %391, %394 : vector<4x64xf32>
    %c17_94 = arith.constant 17 : index
    %396 = memref.load %arg2[%c17_94] : memref<192xf32, #tpu.memory_space<smem>>
    %397 = vector.broadcast %396 : f32 to vector<4x64xf32>
    %398 = arith.mulf %315, %397 : vector<4x64xf32>
    %399 = arith.addf %395, %398 : vector<4x64xf32>
    %c18_95 = arith.constant 18 : index
    %400 = memref.load %arg2[%c18_95] : memref<192xf32, #tpu.memory_space<smem>>
    %401 = vector.broadcast %400 : f32 to vector<4x64xf32>
    %402 = arith.mulf %318, %401 : vector<4x64xf32>
    %403 = arith.addf %399, %402 : vector<4x64xf32>
    %c19_96 = arith.constant 19 : index
    %404 = memref.load %arg2[%c19_96] : memref<192xf32, #tpu.memory_space<smem>>
    %405 = vector.broadcast %404 : f32 to vector<4x64xf32>
    %406 = arith.mulf %319, %405 : vector<4x64xf32>
    %407 = arith.addf %403, %406 : vector<4x64xf32>
    %c20_97 = arith.constant 20 : index
    %408 = memref.load %arg2[%c20_97] : memref<192xf32, #tpu.memory_space<smem>>
    %409 = vector.broadcast %408 : f32 to vector<4x64xf32>
    %410 = arith.mulf %320, %409 : vector<4x64xf32>
    %411 = arith.addf %407, %410 : vector<4x64xf32>
    %c21_98 = arith.constant 21 : index
    %412 = memref.load %arg2[%c21_98] : memref<192xf32, #tpu.memory_space<smem>>
    %413 = vector.broadcast %412 : f32 to vector<4x64xf32>
    %414 = arith.mulf %323, %413 : vector<4x64xf32>
    %415 = arith.addf %411, %414 : vector<4x64xf32>
    %c22_99 = arith.constant 22 : index
    %416 = memref.load %arg2[%c22_99] : memref<192xf32, #tpu.memory_space<smem>>
    %417 = vector.broadcast %416 : f32 to vector<4x64xf32>
    %418 = arith.mulf %324, %417 : vector<4x64xf32>
    %419 = arith.addf %415, %418 : vector<4x64xf32>
    %c23_100 = arith.constant 23 : index
    %420 = memref.load %arg2[%c23_100] : memref<192xf32, #tpu.memory_space<smem>>
    %421 = vector.broadcast %420 : f32 to vector<4x64xf32>
    %422 = arith.mulf %325, %421 : vector<4x64xf32>
    %423 = arith.addf %419, %422 : vector<4x64xf32>
    %c0_101 = arith.constant 0 : index
    %424 = memref.load %arg7[%c0_101] : memref<8xf32, #tpu.memory_space<smem>>
    %c0_102 = arith.constant 0 : index
    %425 = memref.load %arg8[%c0_102] : memref<8xf32, #tpu.memory_space<smem>>
    %426 = vector.shape_cast %423 : vector<4x64xf32> to vector<1x4x64xf32>
    %cst_103 = arith.constant dense<0.000000e+00> : vector<1xf32>
    %427 = vector.multi_reduction <add>, %426, %cst_103 [1, 2] : vector<1x4x64xf32> to vector<1xf32>
    %428 = vector.shape_cast %427 : vector<1xf32> to vector<1x1x1xf32>
    %429 = vector.extract %428[0, 0, 0] : f32 from vector<1x1x1xf32>
    %cst_104 = arith.constant 3.906250e-03 : f32
    %430 = arith.mulf %429, %cst_104 : f32
    %431 = vector.broadcast %430 : f32 to vector<4x64xf32>
    %432 = arith.subf %423, %431 : vector<4x64xf32>
    %433 = arith.mulf %432, %432 : vector<4x64xf32>
    %434 = vector.shape_cast %433 : vector<4x64xf32> to vector<1x4x64xf32>
    %cst_105 = arith.constant dense<0.000000e+00> : vector<1xf32>
    %435 = vector.multi_reduction <add>, %434, %cst_105 [1, 2] : vector<1x4x64xf32> to vector<1xf32>
    %436 = vector.shape_cast %435 : vector<1xf32> to vector<1x1x1xf32>
    %437 = vector.extract %436[0, 0, 0] : f32 from vector<1x1x1xf32>
    %cst_106 = arith.constant 3.906250e-03 : f32
    %438 = arith.mulf %437, %cst_106 : f32
    %cst_107 = arith.constant 9.99999974E-6 : f32
    %439 = arith.addf %438, %cst_107 : f32
    %440 = math.rsqrt %439 : f32
    %441 = arith.mulf %424, %440 : f32
    %442 = vector.broadcast %441 : f32 to vector<4x64xf32>
    %443 = arith.mulf %432, %442 : vector<4x64xf32>
    %444 = vector.broadcast %425 : f32 to vector<4x64xf32>
    %445 = arith.addf %443, %444 : vector<4x64xf32>
    %cst_108 = arith.constant 0.000000e+00 : f32
    %446 = vector.broadcast %cst_108 : f32 to vector<4x64xf32>
    %447 = arith.maximumf %445, %446 : vector<4x64xf32>
    %c0_109 = arith.constant 0 : index
    %448 = memref.load %arg4[%c0_109] : memref<8xf32, #tpu.memory_space<smem>>
    %449 = vector.broadcast %448 : f32 to vector<4x64xf32>
    %450 = arith.mulf %449, %0 : vector<4x64xf32>
    %451 = arith.addf %447, %450 : vector<4x64xf32>
    %452 = vector.broadcast %328 : f32 to vector<4x64xf32>
    %453 = arith.mulf %452, %451 : vector<4x64xf32>
    %454 = vector.broadcast %327 : f32 to vector<4x64xf32>
    %455 = arith.addf %454, %453 : vector<4x64xf32>
    %456 = arith.mulf %451, %455 : vector<4x64xf32>
    %457 = vector.broadcast %326 : f32 to vector<4x64xf32>
    %458 = arith.addf %457, %456 : vector<4x64xf32>
    %459 = arith.mulf %451, %458 : vector<4x64xf32>
    %cst_110 = arith.constant 0.000000e+00 : f32
    %460 = vector.broadcast %cst_110 : f32 to vector<4x1xf32>
    %461 = tpu.concatenate %460, %459, %460 in 1 : vector<4x1xf32>, vector<4x64xf32>, vector<4x1xf32> -> vector<4x66xf32>
    %462 = vector.extract_strided_slice %461 {offsets = [0, 0], sizes = [4, 64], strides = [1, 1]} : vector<4x66xf32> to vector<4x64xf32>
    %c0_111 = arith.constant 0 : index
    %463 = memref.load %arg3[%c0_111] : memref<24xf32, #tpu.memory_space<smem>>
    %464 = vector.broadcast %463 : f32 to vector<4x64xf32>
    %465 = arith.mulf %462, %464 : vector<4x64xf32>
    %466 = vector.extract_strided_slice %461 {offsets = [0, 1], sizes = [4, 64], strides = [1, 1]} : vector<4x66xf32> to vector<4x64xf32>
    %c1_112 = arith.constant 1 : index
    %467 = memref.load %arg3[%c1_112] : memref<24xf32, #tpu.memory_space<smem>>
    %468 = vector.broadcast %467 : f32 to vector<4x64xf32>
    %469 = arith.mulf %466, %468 : vector<4x64xf32>
    %470 = arith.addf %465, %469 : vector<4x64xf32>
    %471 = vector.extract_strided_slice %461 {offsets = [0, 2], sizes = [4, 64], strides = [1, 1]} : vector<4x66xf32> to vector<4x64xf32>
    %c2_113 = arith.constant 2 : index
    %472 = memref.load %arg3[%c2_113] : memref<24xf32, #tpu.memory_space<smem>>
    %473 = vector.broadcast %472 : f32 to vector<4x64xf32>
    %474 = arith.mulf %471, %473 : vector<4x64xf32>
    %475 = arith.addf %470, %474 : vector<4x64xf32>
    %c24 = arith.constant 24 : index
    %476 = memref.load %arg2[%c24] : memref<192xf32, #tpu.memory_space<smem>>
    %477 = vector.broadcast %476 : f32 to vector<4x64xf32>
    %478 = arith.mulf %288, %477 : vector<4x64xf32>
    %c25 = arith.constant 25 : index
    %479 = memref.load %arg2[%c25] : memref<192xf32, #tpu.memory_space<smem>>
    %480 = vector.broadcast %479 : f32 to vector<4x64xf32>
    %481 = arith.mulf %289, %480 : vector<4x64xf32>
    %482 = arith.addf %478, %481 : vector<4x64xf32>
    %c26 = arith.constant 26 : index
    %483 = memref.load %arg2[%c26] : memref<192xf32, #tpu.memory_space<smem>>
    %484 = vector.broadcast %483 : f32 to vector<4x64xf32>
    %485 = arith.mulf %290, %484 : vector<4x64xf32>
    %486 = arith.addf %482, %485 : vector<4x64xf32>
    %c27 = arith.constant 27 : index
    %487 = memref.load %arg2[%c27] : memref<192xf32, #tpu.memory_space<smem>>
    %488 = vector.broadcast %487 : f32 to vector<4x64xf32>
    %489 = arith.mulf %293, %488 : vector<4x64xf32>
    %490 = arith.addf %486, %489 : vector<4x64xf32>
    %c28 = arith.constant 28 : index
    %491 = memref.load %arg2[%c28] : memref<192xf32, #tpu.memory_space<smem>>
    %492 = vector.broadcast %491 : f32 to vector<4x64xf32>
    %493 = arith.mulf %294, %492 : vector<4x64xf32>
    %494 = arith.addf %490, %493 : vector<4x64xf32>
    %c29 = arith.constant 29 : index
    %495 = memref.load %arg2[%c29] : memref<192xf32, #tpu.memory_space<smem>>
    %496 = vector.broadcast %495 : f32 to vector<4x64xf32>
    %497 = arith.mulf %295, %496 : vector<4x64xf32>
    %498 = arith.addf %494, %497 : vector<4x64xf32>
    %c30 = arith.constant 30 : index
    %499 = memref.load %arg2[%c30] : memref<192xf32, #tpu.memory_space<smem>>
    %500 = vector.broadcast %499 : f32 to vector<4x64xf32>
    %501 = arith.mulf %298, %500 : vector<4x64xf32>
    %502 = arith.addf %498, %501 : vector<4x64xf32>
    %c31 = arith.constant 31 : index
    %503 = memref.load %arg2[%c31] : memref<192xf32, #tpu.memory_space<smem>>
    %504 = vector.broadcast %503 : f32 to vector<4x64xf32>
    %505 = arith.mulf %299, %504 : vector<4x64xf32>
    %506 = arith.addf %502, %505 : vector<4x64xf32>
    %c32 = arith.constant 32 : index
    %507 = memref.load %arg2[%c32] : memref<192xf32, #tpu.memory_space<smem>>
    %508 = vector.broadcast %507 : f32 to vector<4x64xf32>
    %509 = arith.mulf %300, %508 : vector<4x64xf32>
    %510 = arith.addf %506, %509 : vector<4x64xf32>
    %c33 = arith.constant 33 : index
    %511 = memref.load %arg2[%c33] : memref<192xf32, #tpu.memory_space<smem>>
    %512 = vector.broadcast %511 : f32 to vector<4x64xf32>
    %513 = arith.mulf %303, %512 : vector<4x64xf32>
    %514 = arith.addf %510, %513 : vector<4x64xf32>
    %c34 = arith.constant 34 : index
    %515 = memref.load %arg2[%c34] : memref<192xf32, #tpu.memory_space<smem>>
    %516 = vector.broadcast %515 : f32 to vector<4x64xf32>
    %517 = arith.mulf %304, %516 : vector<4x64xf32>
    %518 = arith.addf %514, %517 : vector<4x64xf32>
    %c35 = arith.constant 35 : index
    %519 = memref.load %arg2[%c35] : memref<192xf32, #tpu.memory_space<smem>>
    %520 = vector.broadcast %519 : f32 to vector<4x64xf32>
    %521 = arith.mulf %305, %520 : vector<4x64xf32>
    %522 = arith.addf %518, %521 : vector<4x64xf32>
    %c36 = arith.constant 36 : index
    %523 = memref.load %arg2[%c36] : memref<192xf32, #tpu.memory_space<smem>>
    %524 = vector.broadcast %523 : f32 to vector<4x64xf32>
    %525 = arith.mulf %308, %524 : vector<4x64xf32>
    %526 = arith.addf %522, %525 : vector<4x64xf32>
    %c37 = arith.constant 37 : index
    %527 = memref.load %arg2[%c37] : memref<192xf32, #tpu.memory_space<smem>>
    %528 = vector.broadcast %527 : f32 to vector<4x64xf32>
    %529 = arith.mulf %309, %528 : vector<4x64xf32>
    %530 = arith.addf %526, %529 : vector<4x64xf32>
    %c38 = arith.constant 38 : index
    %531 = memref.load %arg2[%c38] : memref<192xf32, #tpu.memory_space<smem>>
    %532 = vector.broadcast %531 : f32 to vector<4x64xf32>
    %533 = arith.mulf %310, %532 : vector<4x64xf32>
    %534 = arith.addf %530, %533 : vector<4x64xf32>
    %c39 = arith.constant 39 : index
    %535 = memref.load %arg2[%c39] : memref<192xf32, #tpu.memory_space<smem>>
    %536 = vector.broadcast %535 : f32 to vector<4x64xf32>
    %537 = arith.mulf %313, %536 : vector<4x64xf32>
    %538 = arith.addf %534, %537 : vector<4x64xf32>
    %c40 = arith.constant 40 : index
    %539 = memref.load %arg2[%c40] : memref<192xf32, #tpu.memory_space<smem>>
    %540 = vector.broadcast %539 : f32 to vector<4x64xf32>
    %541 = arith.mulf %314, %540 : vector<4x64xf32>
    %542 = arith.addf %538, %541 : vector<4x64xf32>
    %c41 = arith.constant 41 : index
    %543 = memref.load %arg2[%c41] : memref<192xf32, #tpu.memory_space<smem>>
    %544 = vector.broadcast %543 : f32 to vector<4x64xf32>
    %545 = arith.mulf %315, %544 : vector<4x64xf32>
    %546 = arith.addf %542, %545 : vector<4x64xf32>
    %c42 = arith.constant 42 : index
    %547 = memref.load %arg2[%c42] : memref<192xf32, #tpu.memory_space<smem>>
    %548 = vector.broadcast %547 : f32 to vector<4x64xf32>
    %549 = arith.mulf %318, %548 : vector<4x64xf32>
    %550 = arith.addf %546, %549 : vector<4x64xf32>
    %c43 = arith.constant 43 : index
    %551 = memref.load %arg2[%c43] : memref<192xf32, #tpu.memory_space<smem>>
    %552 = vector.broadcast %551 : f32 to vector<4x64xf32>
    %553 = arith.mulf %319, %552 : vector<4x64xf32>
    %554 = arith.addf %550, %553 : vector<4x64xf32>
    %c44 = arith.constant 44 : index
    %555 = memref.load %arg2[%c44] : memref<192xf32, #tpu.memory_space<smem>>
    %556 = vector.broadcast %555 : f32 to vector<4x64xf32>
    %557 = arith.mulf %320, %556 : vector<4x64xf32>
    %558 = arith.addf %554, %557 : vector<4x64xf32>
    %c45 = arith.constant 45 : index
    %559 = memref.load %arg2[%c45] : memref<192xf32, #tpu.memory_space<smem>>
    %560 = vector.broadcast %559 : f32 to vector<4x64xf32>
    %561 = arith.mulf %323, %560 : vector<4x64xf32>
    %562 = arith.addf %558, %561 : vector<4x64xf32>
    %c46 = arith.constant 46 : index
    %563 = memref.load %arg2[%c46] : memref<192xf32, #tpu.memory_space<smem>>
    %564 = vector.broadcast %563 : f32 to vector<4x64xf32>
    %565 = arith.mulf %324, %564 : vector<4x64xf32>
    %566 = arith.addf %562, %565 : vector<4x64xf32>
    %c47 = arith.constant 47 : index
    %567 = memref.load %arg2[%c47] : memref<192xf32, #tpu.memory_space<smem>>
    %568 = vector.broadcast %567 : f32 to vector<4x64xf32>
    %569 = arith.mulf %325, %568 : vector<4x64xf32>
    %570 = arith.addf %566, %569 : vector<4x64xf32>
    %c1_114 = arith.constant 1 : index
    %571 = memref.load %arg7[%c1_114] : memref<8xf32, #tpu.memory_space<smem>>
    %c1_115 = arith.constant 1 : index
    %572 = memref.load %arg8[%c1_115] : memref<8xf32, #tpu.memory_space<smem>>
    %573 = vector.shape_cast %570 : vector<4x64xf32> to vector<1x4x64xf32>
    %cst_116 = arith.constant dense<0.000000e+00> : vector<1xf32>
    %574 = vector.multi_reduction <add>, %573, %cst_116 [1, 2] : vector<1x4x64xf32> to vector<1xf32>
    %575 = vector.shape_cast %574 : vector<1xf32> to vector<1x1x1xf32>
    %576 = vector.extract %575[0, 0, 0] : f32 from vector<1x1x1xf32>
    %cst_117 = arith.constant 3.906250e-03 : f32
    %577 = arith.mulf %576, %cst_117 : f32
    %578 = vector.broadcast %577 : f32 to vector<4x64xf32>
    %579 = arith.subf %570, %578 : vector<4x64xf32>
    %580 = arith.mulf %579, %579 : vector<4x64xf32>
    %581 = vector.shape_cast %580 : vector<4x64xf32> to vector<1x4x64xf32>
    %cst_118 = arith.constant dense<0.000000e+00> : vector<1xf32>
    %582 = vector.multi_reduction <add>, %581, %cst_118 [1, 2] : vector<1x4x64xf32> to vector<1xf32>
    %583 = vector.shape_cast %582 : vector<1xf32> to vector<1x1x1xf32>
    %584 = vector.extract %583[0, 0, 0] : f32 from vector<1x1x1xf32>
    %cst_119 = arith.constant 3.906250e-03 : f32
    %585 = arith.mulf %584, %cst_119 : f32
    %cst_120 = arith.constant 9.99999974E-6 : f32
    %586 = arith.addf %585, %cst_120 : f32
    %587 = math.rsqrt %586 : f32
    %588 = arith.mulf %571, %587 : f32
    %589 = vector.broadcast %588 : f32 to vector<4x64xf32>
    %590 = arith.mulf %579, %589 : vector<4x64xf32>
    %591 = vector.broadcast %572 : f32 to vector<4x64xf32>
    %592 = arith.addf %590, %591 : vector<4x64xf32>
    %cst_121 = arith.constant 0.000000e+00 : f32
    %593 = vector.broadcast %cst_121 : f32 to vector<4x64xf32>
    %594 = arith.maximumf %592, %593 : vector<4x64xf32>
    %c1_122 = arith.constant 1 : index
    %595 = memref.load %arg4[%c1_122] : memref<8xf32, #tpu.memory_space<smem>>
    %596 = vector.broadcast %595 : f32 to vector<4x64xf32>
    %597 = arith.mulf %596, %0 : vector<4x64xf32>
    %598 = arith.addf %594, %597 : vector<4x64xf32>
    %599 = vector.broadcast %328 : f32 to vector<4x64xf32>
    %600 = arith.mulf %599, %598 : vector<4x64xf32>
    %601 = vector.broadcast %327 : f32 to vector<4x64xf32>
    %602 = arith.addf %601, %600 : vector<4x64xf32>
    %603 = arith.mulf %598, %602 : vector<4x64xf32>
    %604 = vector.broadcast %326 : f32 to vector<4x64xf32>
    %605 = arith.addf %604, %603 : vector<4x64xf32>
    %606 = arith.mulf %598, %605 : vector<4x64xf32>
    %cst_123 = arith.constant 0.000000e+00 : f32
    %607 = vector.broadcast %cst_123 : f32 to vector<4x1xf32>
    %608 = tpu.concatenate %607, %606, %607 in 1 : vector<4x1xf32>, vector<4x64xf32>, vector<4x1xf32> -> vector<4x66xf32>
    %609 = vector.extract_strided_slice %608 {offsets = [0, 0], sizes = [4, 64], strides = [1, 1]} : vector<4x66xf32> to vector<4x64xf32>
    %c3_124 = arith.constant 3 : index
    %610 = memref.load %arg3[%c3_124] : memref<24xf32, #tpu.memory_space<smem>>
    %611 = vector.broadcast %610 : f32 to vector<4x64xf32>
    %612 = arith.mulf %609, %611 : vector<4x64xf32>
    %613 = arith.addf %475, %612 : vector<4x64xf32>
    %614 = vector.extract_strided_slice %608 {offsets = [0, 1], sizes = [4, 64], strides = [1, 1]} : vector<4x66xf32> to vector<4x64xf32>
    %c4_125 = arith.constant 4 : index
    %615 = memref.load %arg3[%c4_125] : memref<24xf32, #tpu.memory_space<smem>>
    %616 = vector.broadcast %615 : f32 to vector<4x64xf32>
    %617 = arith.mulf %614, %616 : vector<4x64xf32>
    %618 = arith.addf %613, %617 : vector<4x64xf32>
    %619 = vector.extract_strided_slice %608 {offsets = [0, 2], sizes = [4, 64], strides = [1, 1]} : vector<4x66xf32> to vector<4x64xf32>
    %c5_126 = arith.constant 5 : index
    %620 = memref.load %arg3[%c5_126] : memref<24xf32, #tpu.memory_space<smem>>
    %621 = vector.broadcast %620 : f32 to vector<4x64xf32>
    %622 = arith.mulf %619, %621 : vector<4x64xf32>
    %623 = arith.addf %618, %622 : vector<4x64xf32>
    %c48 = arith.constant 48 : index
    %624 = memref.load %arg2[%c48] : memref<192xf32, #tpu.memory_space<smem>>
    %625 = vector.broadcast %624 : f32 to vector<4x64xf32>
    %626 = arith.mulf %288, %625 : vector<4x64xf32>
    %c49 = arith.constant 49 : index
    %627 = memref.load %arg2[%c49] : memref<192xf32, #tpu.memory_space<smem>>
    %628 = vector.broadcast %627 : f32 to vector<4x64xf32>
    %629 = arith.mulf %289, %628 : vector<4x64xf32>
    %630 = arith.addf %626, %629 : vector<4x64xf32>
    %c50 = arith.constant 50 : index
    %631 = memref.load %arg2[%c50] : memref<192xf32, #tpu.memory_space<smem>>
    %632 = vector.broadcast %631 : f32 to vector<4x64xf32>
    %633 = arith.mulf %290, %632 : vector<4x64xf32>
    %634 = arith.addf %630, %633 : vector<4x64xf32>
    %c51 = arith.constant 51 : index
    %635 = memref.load %arg2[%c51] : memref<192xf32, #tpu.memory_space<smem>>
    %636 = vector.broadcast %635 : f32 to vector<4x64xf32>
    %637 = arith.mulf %293, %636 : vector<4x64xf32>
    %638 = arith.addf %634, %637 : vector<4x64xf32>
    %c52 = arith.constant 52 : index
    %639 = memref.load %arg2[%c52] : memref<192xf32, #tpu.memory_space<smem>>
    %640 = vector.broadcast %639 : f32 to vector<4x64xf32>
    %641 = arith.mulf %294, %640 : vector<4x64xf32>
    %642 = arith.addf %638, %641 : vector<4x64xf32>
    %c53 = arith.constant 53 : index
    %643 = memref.load %arg2[%c53] : memref<192xf32, #tpu.memory_space<smem>>
    %644 = vector.broadcast %643 : f32 to vector<4x64xf32>
    %645 = arith.mulf %295, %644 : vector<4x64xf32>
    %646 = arith.addf %642, %645 : vector<4x64xf32>
    %c54 = arith.constant 54 : index
    %647 = memref.load %arg2[%c54] : memref<192xf32, #tpu.memory_space<smem>>
    %648 = vector.broadcast %647 : f32 to vector<4x64xf32>
    %649 = arith.mulf %298, %648 : vector<4x64xf32>
    %650 = arith.addf %646, %649 : vector<4x64xf32>
    %c55 = arith.constant 55 : index
    %651 = memref.load %arg2[%c55] : memref<192xf32, #tpu.memory_space<smem>>
    %652 = vector.broadcast %651 : f32 to vector<4x64xf32>
    %653 = arith.mulf %299, %652 : vector<4x64xf32>
    %654 = arith.addf %650, %653 : vector<4x64xf32>
    %c56 = arith.constant 56 : index
    %655 = memref.load %arg2[%c56] : memref<192xf32, #tpu.memory_space<smem>>
    %656 = vector.broadcast %655 : f32 to vector<4x64xf32>
    %657 = arith.mulf %300, %656 : vector<4x64xf32>
    %658 = arith.addf %654, %657 : vector<4x64xf32>
    %c57 = arith.constant 57 : index
    %659 = memref.load %arg2[%c57] : memref<192xf32, #tpu.memory_space<smem>>
    %660 = vector.broadcast %659 : f32 to vector<4x64xf32>
    %661 = arith.mulf %303, %660 : vector<4x64xf32>
    %662 = arith.addf %658, %661 : vector<4x64xf32>
    %c58 = arith.constant 58 : index
    %663 = memref.load %arg2[%c58] : memref<192xf32, #tpu.memory_space<smem>>
    %664 = vector.broadcast %663 : f32 to vector<4x64xf32>
    %665 = arith.mulf %304, %664 : vector<4x64xf32>
    %666 = arith.addf %662, %665 : vector<4x64xf32>
    %c59 = arith.constant 59 : index
    %667 = memref.load %arg2[%c59] : memref<192xf32, #tpu.memory_space<smem>>
    %668 = vector.broadcast %667 : f32 to vector<4x64xf32>
    %669 = arith.mulf %305, %668 : vector<4x64xf32>
    %670 = arith.addf %666, %669 : vector<4x64xf32>
    %c60 = arith.constant 60 : index
    %671 = memref.load %arg2[%c60] : memref<192xf32, #tpu.memory_space<smem>>
    %672 = vector.broadcast %671 : f32 to vector<4x64xf32>
    %673 = arith.mulf %308, %672 : vector<4x64xf32>
    %674 = arith.addf %670, %673 : vector<4x64xf32>
    %c61 = arith.constant 61 : index
    %675 = memref.load %arg2[%c61] : memref<192xf32, #tpu.memory_space<smem>>
    %676 = vector.broadcast %675 : f32 to vector<4x64xf32>
    %677 = arith.mulf %309, %676 : vector<4x64xf32>
    %678 = arith.addf %674, %677 : vector<4x64xf32>
    %c62 = arith.constant 62 : index
    %679 = memref.load %arg2[%c62] : memref<192xf32, #tpu.memory_space<smem>>
    %680 = vector.broadcast %679 : f32 to vector<4x64xf32>
    %681 = arith.mulf %310, %680 : vector<4x64xf32>
    %682 = arith.addf %678, %681 : vector<4x64xf32>
    %c63 = arith.constant 63 : index
    %683 = memref.load %arg2[%c63] : memref<192xf32, #tpu.memory_space<smem>>
    %684 = vector.broadcast %683 : f32 to vector<4x64xf32>
    %685 = arith.mulf %313, %684 : vector<4x64xf32>
    %686 = arith.addf %682, %685 : vector<4x64xf32>
    %c64 = arith.constant 64 : index
    %687 = memref.load %arg2[%c64] : memref<192xf32, #tpu.memory_space<smem>>
    %688 = vector.broadcast %687 : f32 to vector<4x64xf32>
    %689 = arith.mulf %314, %688 : vector<4x64xf32>
    %690 = arith.addf %686, %689 : vector<4x64xf32>
    %c65 = arith.constant 65 : index
    %691 = memref.load %arg2[%c65] : memref<192xf32, #tpu.memory_space<smem>>
    %692 = vector.broadcast %691 : f32 to vector<4x64xf32>
    %693 = arith.mulf %315, %692 : vector<4x64xf32>
    %694 = arith.addf %690, %693 : vector<4x64xf32>
    %c66 = arith.constant 66 : index
    %695 = memref.load %arg2[%c66] : memref<192xf32, #tpu.memory_space<smem>>
    %696 = vector.broadcast %695 : f32 to vector<4x64xf32>
    %697 = arith.mulf %318, %696 : vector<4x64xf32>
    %698 = arith.addf %694, %697 : vector<4x64xf32>
    %c67 = arith.constant 67 : index
    %699 = memref.load %arg2[%c67] : memref<192xf32, #tpu.memory_space<smem>>
    %700 = vector.broadcast %699 : f32 to vector<4x64xf32>
    %701 = arith.mulf %319, %700 : vector<4x64xf32>
    %702 = arith.addf %698, %701 : vector<4x64xf32>
    %c68 = arith.constant 68 : index
    %703 = memref.load %arg2[%c68] : memref<192xf32, #tpu.memory_space<smem>>
    %704 = vector.broadcast %703 : f32 to vector<4x64xf32>
    %705 = arith.mulf %320, %704 : vector<4x64xf32>
    %706 = arith.addf %702, %705 : vector<4x64xf32>
    %c69 = arith.constant 69 : index
    %707 = memref.load %arg2[%c69] : memref<192xf32, #tpu.memory_space<smem>>
    %708 = vector.broadcast %707 : f32 to vector<4x64xf32>
    %709 = arith.mulf %323, %708 : vector<4x64xf32>
    %710 = arith.addf %706, %709 : vector<4x64xf32>
    %c70 = arith.constant 70 : index
    %711 = memref.load %arg2[%c70] : memref<192xf32, #tpu.memory_space<smem>>
    %712 = vector.broadcast %711 : f32 to vector<4x64xf32>
    %713 = arith.mulf %324, %712 : vector<4x64xf32>
    %714 = arith.addf %710, %713 : vector<4x64xf32>
    %c71 = arith.constant 71 : index
    %715 = memref.load %arg2[%c71] : memref<192xf32, #tpu.memory_space<smem>>
    %716 = vector.broadcast %715 : f32 to vector<4x64xf32>
    %717 = arith.mulf %325, %716 : vector<4x64xf32>
    %718 = arith.addf %714, %717 : vector<4x64xf32>
    %c2_127 = arith.constant 2 : index
    %719 = memref.load %arg7[%c2_127] : memref<8xf32, #tpu.memory_space<smem>>
    %c2_128 = arith.constant 2 : index
    %720 = memref.load %arg8[%c2_128] : memref<8xf32, #tpu.memory_space<smem>>
    %721 = vector.shape_cast %718 : vector<4x64xf32> to vector<1x4x64xf32>
    %cst_129 = arith.constant dense<0.000000e+00> : vector<1xf32>
    %722 = vector.multi_reduction <add>, %721, %cst_129 [1, 2] : vector<1x4x64xf32> to vector<1xf32>
    %723 = vector.shape_cast %722 : vector<1xf32> to vector<1x1x1xf32>
    %724 = vector.extract %723[0, 0, 0] : f32 from vector<1x1x1xf32>
    %cst_130 = arith.constant 3.906250e-03 : f32
    %725 = arith.mulf %724, %cst_130 : f32
    %726 = vector.broadcast %725 : f32 to vector<4x64xf32>
    %727 = arith.subf %718, %726 : vector<4x64xf32>
    %728 = arith.mulf %727, %727 : vector<4x64xf32>
    %729 = vector.shape_cast %728 : vector<4x64xf32> to vector<1x4x64xf32>
    %cst_131 = arith.constant dense<0.000000e+00> : vector<1xf32>
    %730 = vector.multi_reduction <add>, %729, %cst_131 [1, 2] : vector<1x4x64xf32> to vector<1xf32>
    %731 = vector.shape_cast %730 : vector<1xf32> to vector<1x1x1xf32>
    %732 = vector.extract %731[0, 0, 0] : f32 from vector<1x1x1xf32>
    %cst_132 = arith.constant 3.906250e-03 : f32
    %733 = arith.mulf %732, %cst_132 : f32
    %cst_133 = arith.constant 9.99999974E-6 : f32
    %734 = arith.addf %733, %cst_133 : f32
    %735 = math.rsqrt %734 : f32
    %736 = arith.mulf %719, %735 : f32
    %737 = vector.broadcast %736 : f32 to vector<4x64xf32>
    %738 = arith.mulf %727, %737 : vector<4x64xf32>
    %739 = vector.broadcast %720 : f32 to vector<4x64xf32>
    %740 = arith.addf %738, %739 : vector<4x64xf32>
    %cst_134 = arith.constant 0.000000e+00 : f32
    %741 = vector.broadcast %cst_134 : f32 to vector<4x64xf32>
    %742 = arith.maximumf %740, %741 : vector<4x64xf32>
    %c2_135 = arith.constant 2 : index
    %743 = memref.load %arg4[%c2_135] : memref<8xf32, #tpu.memory_space<smem>>
    %744 = vector.broadcast %743 : f32 to vector<4x64xf32>
    %745 = arith.mulf %744, %0 : vector<4x64xf32>
    %746 = arith.addf %742, %745 : vector<4x64xf32>
    %747 = vector.broadcast %328 : f32 to vector<4x64xf32>
    %748 = arith.mulf %747, %746 : vector<4x64xf32>
    %749 = vector.broadcast %327 : f32 to vector<4x64xf32>
    %750 = arith.addf %749, %748 : vector<4x64xf32>
    %751 = arith.mulf %746, %750 : vector<4x64xf32>
    %752 = vector.broadcast %326 : f32 to vector<4x64xf32>
    %753 = arith.addf %752, %751 : vector<4x64xf32>
    %754 = arith.mulf %746, %753 : vector<4x64xf32>
    %cst_136 = arith.constant 0.000000e+00 : f32
    %755 = vector.broadcast %cst_136 : f32 to vector<4x1xf32>
    %756 = tpu.concatenate %755, %754, %755 in 1 : vector<4x1xf32>, vector<4x64xf32>, vector<4x1xf32> -> vector<4x66xf32>
    %757 = vector.extract_strided_slice %756 {offsets = [0, 0], sizes = [4, 64], strides = [1, 1]} : vector<4x66xf32> to vector<4x64xf32>
    %c6_137 = arith.constant 6 : index
    %758 = memref.load %arg3[%c6_137] : memref<24xf32, #tpu.memory_space<smem>>
    %759 = vector.broadcast %758 : f32 to vector<4x64xf32>
    %760 = arith.mulf %757, %759 : vector<4x64xf32>
    %761 = arith.addf %623, %760 : vector<4x64xf32>
    %762 = vector.extract_strided_slice %756 {offsets = [0, 1], sizes = [4, 64], strides = [1, 1]} : vector<4x66xf32> to vector<4x64xf32>
    %c7_138 = arith.constant 7 : index
    %763 = memref.load %arg3[%c7_138] : memref<24xf32, #tpu.memory_space<smem>>
    %764 = vector.broadcast %763 : f32 to vector<4x64xf32>
    %765 = arith.mulf %762, %764 : vector<4x64xf32>
    %766 = arith.addf %761, %765 : vector<4x64xf32>
    %767 = vector.extract_strided_slice %756 {offsets = [0, 2], sizes = [4, 64], strides = [1, 1]} : vector<4x66xf32> to vector<4x64xf32>
    %c8_139 = arith.constant 8 : index
    %768 = memref.load %arg3[%c8_139] : memref<24xf32, #tpu.memory_space<smem>>
    %769 = vector.broadcast %768 : f32 to vector<4x64xf32>
    %770 = arith.mulf %767, %769 : vector<4x64xf32>
    %771 = arith.addf %766, %770 : vector<4x64xf32>
    %c72 = arith.constant 72 : index
    %772 = memref.load %arg2[%c72] : memref<192xf32, #tpu.memory_space<smem>>
    %773 = vector.broadcast %772 : f32 to vector<4x64xf32>
    %774 = arith.mulf %288, %773 : vector<4x64xf32>
    %c73 = arith.constant 73 : index
    %775 = memref.load %arg2[%c73] : memref<192xf32, #tpu.memory_space<smem>>
    %776 = vector.broadcast %775 : f32 to vector<4x64xf32>
    %777 = arith.mulf %289, %776 : vector<4x64xf32>
    %778 = arith.addf %774, %777 : vector<4x64xf32>
    %c74 = arith.constant 74 : index
    %779 = memref.load %arg2[%c74] : memref<192xf32, #tpu.memory_space<smem>>
    %780 = vector.broadcast %779 : f32 to vector<4x64xf32>
    %781 = arith.mulf %290, %780 : vector<4x64xf32>
    %782 = arith.addf %778, %781 : vector<4x64xf32>
    %c75 = arith.constant 75 : index
    %783 = memref.load %arg2[%c75] : memref<192xf32, #tpu.memory_space<smem>>
    %784 = vector.broadcast %783 : f32 to vector<4x64xf32>
    %785 = arith.mulf %293, %784 : vector<4x64xf32>
    %786 = arith.addf %782, %785 : vector<4x64xf32>
    %c76 = arith.constant 76 : index
    %787 = memref.load %arg2[%c76] : memref<192xf32, #tpu.memory_space<smem>>
    %788 = vector.broadcast %787 : f32 to vector<4x64xf32>
    %789 = arith.mulf %294, %788 : vector<4x64xf32>
    %790 = arith.addf %786, %789 : vector<4x64xf32>
    %c77 = arith.constant 77 : index
    %791 = memref.load %arg2[%c77] : memref<192xf32, #tpu.memory_space<smem>>
    %792 = vector.broadcast %791 : f32 to vector<4x64xf32>
    %793 = arith.mulf %295, %792 : vector<4x64xf32>
    %794 = arith.addf %790, %793 : vector<4x64xf32>
    %c78 = arith.constant 78 : index
    %795 = memref.load %arg2[%c78] : memref<192xf32, #tpu.memory_space<smem>>
    %796 = vector.broadcast %795 : f32 to vector<4x64xf32>
    %797 = arith.mulf %298, %796 : vector<4x64xf32>
    %798 = arith.addf %794, %797 : vector<4x64xf32>
    %c79 = arith.constant 79 : index
    %799 = memref.load %arg2[%c79] : memref<192xf32, #tpu.memory_space<smem>>
    %800 = vector.broadcast %799 : f32 to vector<4x64xf32>
    %801 = arith.mulf %299, %800 : vector<4x64xf32>
    %802 = arith.addf %798, %801 : vector<4x64xf32>
    %c80 = arith.constant 80 : index
    %803 = memref.load %arg2[%c80] : memref<192xf32, #tpu.memory_space<smem>>
    %804 = vector.broadcast %803 : f32 to vector<4x64xf32>
    %805 = arith.mulf %300, %804 : vector<4x64xf32>
    %806 = arith.addf %802, %805 : vector<4x64xf32>
    %c81 = arith.constant 81 : index
    %807 = memref.load %arg2[%c81] : memref<192xf32, #tpu.memory_space<smem>>
    %808 = vector.broadcast %807 : f32 to vector<4x64xf32>
    %809 = arith.mulf %303, %808 : vector<4x64xf32>
    %810 = arith.addf %806, %809 : vector<4x64xf32>
    %c82 = arith.constant 82 : index
    %811 = memref.load %arg2[%c82] : memref<192xf32, #tpu.memory_space<smem>>
    %812 = vector.broadcast %811 : f32 to vector<4x64xf32>
    %813 = arith.mulf %304, %812 : vector<4x64xf32>
    %814 = arith.addf %810, %813 : vector<4x64xf32>
    %c83 = arith.constant 83 : index
    %815 = memref.load %arg2[%c83] : memref<192xf32, #tpu.memory_space<smem>>
    %816 = vector.broadcast %815 : f32 to vector<4x64xf32>
    %817 = arith.mulf %305, %816 : vector<4x64xf32>
    %818 = arith.addf %814, %817 : vector<4x64xf32>
    %c84 = arith.constant 84 : index
    %819 = memref.load %arg2[%c84] : memref<192xf32, #tpu.memory_space<smem>>
    %820 = vector.broadcast %819 : f32 to vector<4x64xf32>
    %821 = arith.mulf %308, %820 : vector<4x64xf32>
    %822 = arith.addf %818, %821 : vector<4x64xf32>
    %c85 = arith.constant 85 : index
    %823 = memref.load %arg2[%c85] : memref<192xf32, #tpu.memory_space<smem>>
    %824 = vector.broadcast %823 : f32 to vector<4x64xf32>
    %825 = arith.mulf %309, %824 : vector<4x64xf32>
    %826 = arith.addf %822, %825 : vector<4x64xf32>
    %c86 = arith.constant 86 : index
    %827 = memref.load %arg2[%c86] : memref<192xf32, #tpu.memory_space<smem>>
    %828 = vector.broadcast %827 : f32 to vector<4x64xf32>
    %829 = arith.mulf %310, %828 : vector<4x64xf32>
    %830 = arith.addf %826, %829 : vector<4x64xf32>
    %c87 = arith.constant 87 : index
    %831 = memref.load %arg2[%c87] : memref<192xf32, #tpu.memory_space<smem>>
    %832 = vector.broadcast %831 : f32 to vector<4x64xf32>
    %833 = arith.mulf %313, %832 : vector<4x64xf32>
    %834 = arith.addf %830, %833 : vector<4x64xf32>
    %c88 = arith.constant 88 : index
    %835 = memref.load %arg2[%c88] : memref<192xf32, #tpu.memory_space<smem>>
    %836 = vector.broadcast %835 : f32 to vector<4x64xf32>
    %837 = arith.mulf %314, %836 : vector<4x64xf32>
    %838 = arith.addf %834, %837 : vector<4x64xf32>
    %c89 = arith.constant 89 : index
    %839 = memref.load %arg2[%c89] : memref<192xf32, #tpu.memory_space<smem>>
    %840 = vector.broadcast %839 : f32 to vector<4x64xf32>
    %841 = arith.mulf %315, %840 : vector<4x64xf32>
    %842 = arith.addf %838, %841 : vector<4x64xf32>
    %c90 = arith.constant 90 : index
    %843 = memref.load %arg2[%c90] : memref<192xf32, #tpu.memory_space<smem>>
    %844 = vector.broadcast %843 : f32 to vector<4x64xf32>
    %845 = arith.mulf %318, %844 : vector<4x64xf32>
    %846 = arith.addf %842, %845 : vector<4x64xf32>
    %c91 = arith.constant 91 : index
    %847 = memref.load %arg2[%c91] : memref<192xf32, #tpu.memory_space<smem>>
    %848 = vector.broadcast %847 : f32 to vector<4x64xf32>
    %849 = arith.mulf %319, %848 : vector<4x64xf32>
    %850 = arith.addf %846, %849 : vector<4x64xf32>
    %c92 = arith.constant 92 : index
    %851 = memref.load %arg2[%c92] : memref<192xf32, #tpu.memory_space<smem>>
    %852 = vector.broadcast %851 : f32 to vector<4x64xf32>
    %853 = arith.mulf %320, %852 : vector<4x64xf32>
    %854 = arith.addf %850, %853 : vector<4x64xf32>
    %c93 = arith.constant 93 : index
    %855 = memref.load %arg2[%c93] : memref<192xf32, #tpu.memory_space<smem>>
    %856 = vector.broadcast %855 : f32 to vector<4x64xf32>
    %857 = arith.mulf %323, %856 : vector<4x64xf32>
    %858 = arith.addf %854, %857 : vector<4x64xf32>
    %c94 = arith.constant 94 : index
    %859 = memref.load %arg2[%c94] : memref<192xf32, #tpu.memory_space<smem>>
    %860 = vector.broadcast %859 : f32 to vector<4x64xf32>
    %861 = arith.mulf %324, %860 : vector<4x64xf32>
    %862 = arith.addf %858, %861 : vector<4x64xf32>
    %c95 = arith.constant 95 : index
    %863 = memref.load %arg2[%c95] : memref<192xf32, #tpu.memory_space<smem>>
    %864 = vector.broadcast %863 : f32 to vector<4x64xf32>
    %865 = arith.mulf %325, %864 : vector<4x64xf32>
    %866 = arith.addf %862, %865 : vector<4x64xf32>
    %c3_140 = arith.constant 3 : index
    %867 = memref.load %arg7[%c3_140] : memref<8xf32, #tpu.memory_space<smem>>
    %c3_141 = arith.constant 3 : index
    %868 = memref.load %arg8[%c3_141] : memref<8xf32, #tpu.memory_space<smem>>
    %869 = vector.shape_cast %866 : vector<4x64xf32> to vector<1x4x64xf32>
    %cst_142 = arith.constant dense<0.000000e+00> : vector<1xf32>
    %870 = vector.multi_reduction <add>, %869, %cst_142 [1, 2] : vector<1x4x64xf32> to vector<1xf32>
    %871 = vector.shape_cast %870 : vector<1xf32> to vector<1x1x1xf32>
    %872 = vector.extract %871[0, 0, 0] : f32 from vector<1x1x1xf32>
    %cst_143 = arith.constant 3.906250e-03 : f32
    %873 = arith.mulf %872, %cst_143 : f32
    %874 = vector.broadcast %873 : f32 to vector<4x64xf32>
    %875 = arith.subf %866, %874 : vector<4x64xf32>
    %876 = arith.mulf %875, %875 : vector<4x64xf32>
    %877 = vector.shape_cast %876 : vector<4x64xf32> to vector<1x4x64xf32>
    %cst_144 = arith.constant dense<0.000000e+00> : vector<1xf32>
    %878 = vector.multi_reduction <add>, %877, %cst_144 [1, 2] : vector<1x4x64xf32> to vector<1xf32>
    %879 = vector.shape_cast %878 : vector<1xf32> to vector<1x1x1xf32>
    %880 = vector.extract %879[0, 0, 0] : f32 from vector<1x1x1xf32>
    %cst_145 = arith.constant 3.906250e-03 : f32
    %881 = arith.mulf %880, %cst_145 : f32
    %cst_146 = arith.constant 9.99999974E-6 : f32
    %882 = arith.addf %881, %cst_146 : f32
    %883 = math.rsqrt %882 : f32
    %884 = arith.mulf %867, %883 : f32
    %885 = vector.broadcast %884 : f32 to vector<4x64xf32>
    %886 = arith.mulf %875, %885 : vector<4x64xf32>
    %887 = vector.broadcast %868 : f32 to vector<4x64xf32>
    %888 = arith.addf %886, %887 : vector<4x64xf32>
    %cst_147 = arith.constant 0.000000e+00 : f32
    %889 = vector.broadcast %cst_147 : f32 to vector<4x64xf32>
    %890 = arith.maximumf %888, %889 : vector<4x64xf32>
    %c3_148 = arith.constant 3 : index
    %891 = memref.load %arg4[%c3_148] : memref<8xf32, #tpu.memory_space<smem>>
    %892 = vector.broadcast %891 : f32 to vector<4x64xf32>
    %893 = arith.mulf %892, %0 : vector<4x64xf32>
    %894 = arith.addf %890, %893 : vector<4x64xf32>
    %895 = vector.broadcast %328 : f32 to vector<4x64xf32>
    %896 = arith.mulf %895, %894 : vector<4x64xf32>
    %897 = vector.broadcast %327 : f32 to vector<4x64xf32>
    %898 = arith.addf %897, %896 : vector<4x64xf32>
    %899 = arith.mulf %894, %898 : vector<4x64xf32>
    %900 = vector.broadcast %326 : f32 to vector<4x64xf32>
    %901 = arith.addf %900, %899 : vector<4x64xf32>
    %902 = arith.mulf %894, %901 : vector<4x64xf32>
    %cst_149 = arith.constant 0.000000e+00 : f32
    %903 = vector.broadcast %cst_149 : f32 to vector<4x1xf32>
    %904 = tpu.concatenate %903, %902, %903 in 1 : vector<4x1xf32>, vector<4x64xf32>, vector<4x1xf32> -> vector<4x66xf32>
    %905 = vector.extract_strided_slice %904 {offsets = [0, 0], sizes = [4, 64], strides = [1, 1]} : vector<4x66xf32> to vector<4x64xf32>
    %c9_150 = arith.constant 9 : index
    %906 = memref.load %arg3[%c9_150] : memref<24xf32, #tpu.memory_space<smem>>
    %907 = vector.broadcast %906 : f32 to vector<4x64xf32>
    %908 = arith.mulf %905, %907 : vector<4x64xf32>
    %909 = arith.addf %771, %908 : vector<4x64xf32>
    %910 = vector.extract_strided_slice %904 {offsets = [0, 1], sizes = [4, 64], strides = [1, 1]} : vector<4x66xf32> to vector<4x64xf32>
    %c10_151 = arith.constant 10 : index
    %911 = memref.load %arg3[%c10_151] : memref<24xf32, #tpu.memory_space<smem>>
    %912 = vector.broadcast %911 : f32 to vector<4x64xf32>
    %913 = arith.mulf %910, %912 : vector<4x64xf32>
    %914 = arith.addf %909, %913 : vector<4x64xf32>
    %915 = vector.extract_strided_slice %904 {offsets = [0, 2], sizes = [4, 64], strides = [1, 1]} : vector<4x66xf32> to vector<4x64xf32>
    %c11_152 = arith.constant 11 : index
    %916 = memref.load %arg3[%c11_152] : memref<24xf32, #tpu.memory_space<smem>>
    %917 = vector.broadcast %916 : f32 to vector<4x64xf32>
    %918 = arith.mulf %915, %917 : vector<4x64xf32>
    %919 = arith.addf %914, %918 : vector<4x64xf32>
    %c96 = arith.constant 96 : index
    %920 = memref.load %arg2[%c96] : memref<192xf32, #tpu.memory_space<smem>>
    %921 = vector.broadcast %920 : f32 to vector<4x64xf32>
    %922 = arith.mulf %288, %921 : vector<4x64xf32>
    %c97 = arith.constant 97 : index
    %923 = memref.load %arg2[%c97] : memref<192xf32, #tpu.memory_space<smem>>
    %924 = vector.broadcast %923 : f32 to vector<4x64xf32>
    %925 = arith.mulf %289, %924 : vector<4x64xf32>
    %926 = arith.addf %922, %925 : vector<4x64xf32>
    %c98 = arith.constant 98 : index
    %927 = memref.load %arg2[%c98] : memref<192xf32, #tpu.memory_space<smem>>
    %928 = vector.broadcast %927 : f32 to vector<4x64xf32>
    %929 = arith.mulf %290, %928 : vector<4x64xf32>
    %930 = arith.addf %926, %929 : vector<4x64xf32>
    %c99 = arith.constant 99 : index
    %931 = memref.load %arg2[%c99] : memref<192xf32, #tpu.memory_space<smem>>
    %932 = vector.broadcast %931 : f32 to vector<4x64xf32>
    %933 = arith.mulf %293, %932 : vector<4x64xf32>
    %934 = arith.addf %930, %933 : vector<4x64xf32>
    %c100 = arith.constant 100 : index
    %935 = memref.load %arg2[%c100] : memref<192xf32, #tpu.memory_space<smem>>
    %936 = vector.broadcast %935 : f32 to vector<4x64xf32>
    %937 = arith.mulf %294, %936 : vector<4x64xf32>
    %938 = arith.addf %934, %937 : vector<4x64xf32>
    %c101 = arith.constant 101 : index
    %939 = memref.load %arg2[%c101] : memref<192xf32, #tpu.memory_space<smem>>
    %940 = vector.broadcast %939 : f32 to vector<4x64xf32>
    %941 = arith.mulf %295, %940 : vector<4x64xf32>
    %942 = arith.addf %938, %941 : vector<4x64xf32>
    %c102 = arith.constant 102 : index
    %943 = memref.load %arg2[%c102] : memref<192xf32, #tpu.memory_space<smem>>
    %944 = vector.broadcast %943 : f32 to vector<4x64xf32>
    %945 = arith.mulf %298, %944 : vector<4x64xf32>
    %946 = arith.addf %942, %945 : vector<4x64xf32>
    %c103 = arith.constant 103 : index
    %947 = memref.load %arg2[%c103] : memref<192xf32, #tpu.memory_space<smem>>
    %948 = vector.broadcast %947 : f32 to vector<4x64xf32>
    %949 = arith.mulf %299, %948 : vector<4x64xf32>
    %950 = arith.addf %946, %949 : vector<4x64xf32>
    %c104 = arith.constant 104 : index
    %951 = memref.load %arg2[%c104] : memref<192xf32, #tpu.memory_space<smem>>
    %952 = vector.broadcast %951 : f32 to vector<4x64xf32>
    %953 = arith.mulf %300, %952 : vector<4x64xf32>
    %954 = arith.addf %950, %953 : vector<4x64xf32>
    %c105 = arith.constant 105 : index
    %955 = memref.load %arg2[%c105] : memref<192xf32, #tpu.memory_space<smem>>
    %956 = vector.broadcast %955 : f32 to vector<4x64xf32>
    %957 = arith.mulf %303, %956 : vector<4x64xf32>
    %958 = arith.addf %954, %957 : vector<4x64xf32>
    %c106 = arith.constant 106 : index
    %959 = memref.load %arg2[%c106] : memref<192xf32, #tpu.memory_space<smem>>
    %960 = vector.broadcast %959 : f32 to vector<4x64xf32>
    %961 = arith.mulf %304, %960 : vector<4x64xf32>
    %962 = arith.addf %958, %961 : vector<4x64xf32>
    %c107 = arith.constant 107 : index
    %963 = memref.load %arg2[%c107] : memref<192xf32, #tpu.memory_space<smem>>
    %964 = vector.broadcast %963 : f32 to vector<4x64xf32>
    %965 = arith.mulf %305, %964 : vector<4x64xf32>
    %966 = arith.addf %962, %965 : vector<4x64xf32>
    %c108 = arith.constant 108 : index
    %967 = memref.load %arg2[%c108] : memref<192xf32, #tpu.memory_space<smem>>
    %968 = vector.broadcast %967 : f32 to vector<4x64xf32>
    %969 = arith.mulf %308, %968 : vector<4x64xf32>
    %970 = arith.addf %966, %969 : vector<4x64xf32>
    %c109 = arith.constant 109 : index
    %971 = memref.load %arg2[%c109] : memref<192xf32, #tpu.memory_space<smem>>
    %972 = vector.broadcast %971 : f32 to vector<4x64xf32>
    %973 = arith.mulf %309, %972 : vector<4x64xf32>
    %974 = arith.addf %970, %973 : vector<4x64xf32>
    %c110 = arith.constant 110 : index
    %975 = memref.load %arg2[%c110] : memref<192xf32, #tpu.memory_space<smem>>
    %976 = vector.broadcast %975 : f32 to vector<4x64xf32>
    %977 = arith.mulf %310, %976 : vector<4x64xf32>
    %978 = arith.addf %974, %977 : vector<4x64xf32>
    %c111 = arith.constant 111 : index
    %979 = memref.load %arg2[%c111] : memref<192xf32, #tpu.memory_space<smem>>
    %980 = vector.broadcast %979 : f32 to vector<4x64xf32>
    %981 = arith.mulf %313, %980 : vector<4x64xf32>
    %982 = arith.addf %978, %981 : vector<4x64xf32>
    %c112 = arith.constant 112 : index
    %983 = memref.load %arg2[%c112] : memref<192xf32, #tpu.memory_space<smem>>
    %984 = vector.broadcast %983 : f32 to vector<4x64xf32>
    %985 = arith.mulf %314, %984 : vector<4x64xf32>
    %986 = arith.addf %982, %985 : vector<4x64xf32>
    %c113 = arith.constant 113 : index
    %987 = memref.load %arg2[%c113] : memref<192xf32, #tpu.memory_space<smem>>
    %988 = vector.broadcast %987 : f32 to vector<4x64xf32>
    %989 = arith.mulf %315, %988 : vector<4x64xf32>
    %990 = arith.addf %986, %989 : vector<4x64xf32>
    %c114 = arith.constant 114 : index
    %991 = memref.load %arg2[%c114] : memref<192xf32, #tpu.memory_space<smem>>
    %992 = vector.broadcast %991 : f32 to vector<4x64xf32>
    %993 = arith.mulf %318, %992 : vector<4x64xf32>
    %994 = arith.addf %990, %993 : vector<4x64xf32>
    %c115 = arith.constant 115 : index
    %995 = memref.load %arg2[%c115] : memref<192xf32, #tpu.memory_space<smem>>
    %996 = vector.broadcast %995 : f32 to vector<4x64xf32>
    %997 = arith.mulf %319, %996 : vector<4x64xf32>
    %998 = arith.addf %994, %997 : vector<4x64xf32>
    %c116 = arith.constant 116 : index
    %999 = memref.load %arg2[%c116] : memref<192xf32, #tpu.memory_space<smem>>
    %1000 = vector.broadcast %999 : f32 to vector<4x64xf32>
    %1001 = arith.mulf %320, %1000 : vector<4x64xf32>
    %1002 = arith.addf %998, %1001 : vector<4x64xf32>
    %c117 = arith.constant 117 : index
    %1003 = memref.load %arg2[%c117] : memref<192xf32, #tpu.memory_space<smem>>
    %1004 = vector.broadcast %1003 : f32 to vector<4x64xf32>
    %1005 = arith.mulf %323, %1004 : vector<4x64xf32>
    %1006 = arith.addf %1002, %1005 : vector<4x64xf32>
    %c118 = arith.constant 118 : index
    %1007 = memref.load %arg2[%c118] : memref<192xf32, #tpu.memory_space<smem>>
    %1008 = vector.broadcast %1007 : f32 to vector<4x64xf32>
    %1009 = arith.mulf %324, %1008 : vector<4x64xf32>
    %1010 = arith.addf %1006, %1009 : vector<4x64xf32>
    %c119 = arith.constant 119 : index
    %1011 = memref.load %arg2[%c119] : memref<192xf32, #tpu.memory_space<smem>>
    %1012 = vector.broadcast %1011 : f32 to vector<4x64xf32>
    %1013 = arith.mulf %325, %1012 : vector<4x64xf32>
    %1014 = arith.addf %1010, %1013 : vector<4x64xf32>
    %c4_153 = arith.constant 4 : index
    %1015 = memref.load %arg7[%c4_153] : memref<8xf32, #tpu.memory_space<smem>>
    %c4_154 = arith.constant 4 : index
    %1016 = memref.load %arg8[%c4_154] : memref<8xf32, #tpu.memory_space<smem>>
    %1017 = vector.shape_cast %1014 : vector<4x64xf32> to vector<1x4x64xf32>
    %cst_155 = arith.constant dense<0.000000e+00> : vector<1xf32>
    %1018 = vector.multi_reduction <add>, %1017, %cst_155 [1, 2] : vector<1x4x64xf32> to vector<1xf32>
    %1019 = vector.shape_cast %1018 : vector<1xf32> to vector<1x1x1xf32>
    %1020 = vector.extract %1019[0, 0, 0] : f32 from vector<1x1x1xf32>
    %cst_156 = arith.constant 3.906250e-03 : f32
    %1021 = arith.mulf %1020, %cst_156 : f32
    %1022 = vector.broadcast %1021 : f32 to vector<4x64xf32>
    %1023 = arith.subf %1014, %1022 : vector<4x64xf32>
    %1024 = arith.mulf %1023, %1023 : vector<4x64xf32>
    %1025 = vector.shape_cast %1024 : vector<4x64xf32> to vector<1x4x64xf32>
    %cst_157 = arith.constant dense<0.000000e+00> : vector<1xf32>
    %1026 = vector.multi_reduction <add>, %1025, %cst_157 [1, 2] : vector<1x4x64xf32> to vector<1xf32>
    %1027 = vector.shape_cast %1026 : vector<1xf32> to vector<1x1x1xf32>
    %1028 = vector.extract %1027[0, 0, 0] : f32 from vector<1x1x1xf32>
    %cst_158 = arith.constant 3.906250e-03 : f32
    %1029 = arith.mulf %1028, %cst_158 : f32
    %cst_159 = arith.constant 9.99999974E-6 : f32
    %1030 = arith.addf %1029, %cst_159 : f32
    %1031 = math.rsqrt %1030 : f32
    %1032 = arith.mulf %1015, %1031 : f32
    %1033 = vector.broadcast %1032 : f32 to vector<4x64xf32>
    %1034 = arith.mulf %1023, %1033 : vector<4x64xf32>
    %1035 = vector.broadcast %1016 : f32 to vector<4x64xf32>
    %1036 = arith.addf %1034, %1035 : vector<4x64xf32>
    %cst_160 = arith.constant 0.000000e+00 : f32
    %1037 = vector.broadcast %cst_160 : f32 to vector<4x64xf32>
    %1038 = arith.maximumf %1036, %1037 : vector<4x64xf32>
    %c4_161 = arith.constant 4 : index
    %1039 = memref.load %arg4[%c4_161] : memref<8xf32, #tpu.memory_space<smem>>
    %1040 = vector.broadcast %1039 : f32 to vector<4x64xf32>
    %1041 = arith.mulf %1040, %0 : vector<4x64xf32>
    %1042 = arith.addf %1038, %1041 : vector<4x64xf32>
    %1043 = vector.broadcast %328 : f32 to vector<4x64xf32>
    %1044 = arith.mulf %1043, %1042 : vector<4x64xf32>
    %1045 = vector.broadcast %327 : f32 to vector<4x64xf32>
    %1046 = arith.addf %1045, %1044 : vector<4x64xf32>
    %1047 = arith.mulf %1042, %1046 : vector<4x64xf32>
    %1048 = vector.broadcast %326 : f32 to vector<4x64xf32>
    %1049 = arith.addf %1048, %1047 : vector<4x64xf32>
    %1050 = arith.mulf %1042, %1049 : vector<4x64xf32>
    %cst_162 = arith.constant 0.000000e+00 : f32
    %1051 = vector.broadcast %cst_162 : f32 to vector<4x1xf32>
    %1052 = tpu.concatenate %1051, %1050, %1051 in 1 : vector<4x1xf32>, vector<4x64xf32>, vector<4x1xf32> -> vector<4x66xf32>
    %1053 = vector.extract_strided_slice %1052 {offsets = [0, 0], sizes = [4, 64], strides = [1, 1]} : vector<4x66xf32> to vector<4x64xf32>
    %c12_163 = arith.constant 12 : index
    %1054 = memref.load %arg3[%c12_163] : memref<24xf32, #tpu.memory_space<smem>>
    %1055 = vector.broadcast %1054 : f32 to vector<4x64xf32>
    %1056 = arith.mulf %1053, %1055 : vector<4x64xf32>
    %1057 = arith.addf %919, %1056 : vector<4x64xf32>
    %1058 = vector.extract_strided_slice %1052 {offsets = [0, 1], sizes = [4, 64], strides = [1, 1]} : vector<4x66xf32> to vector<4x64xf32>
    %c13_164 = arith.constant 13 : index
    %1059 = memref.load %arg3[%c13_164] : memref<24xf32, #tpu.memory_space<smem>>
    %1060 = vector.broadcast %1059 : f32 to vector<4x64xf32>
    %1061 = arith.mulf %1058, %1060 : vector<4x64xf32>
    %1062 = arith.addf %1057, %1061 : vector<4x64xf32>
    %1063 = vector.extract_strided_slice %1052 {offsets = [0, 2], sizes = [4, 64], strides = [1, 1]} : vector<4x66xf32> to vector<4x64xf32>
    %c14_165 = arith.constant 14 : index
    %1064 = memref.load %arg3[%c14_165] : memref<24xf32, #tpu.memory_space<smem>>
    %1065 = vector.broadcast %1064 : f32 to vector<4x64xf32>
    %1066 = arith.mulf %1063, %1065 : vector<4x64xf32>
    %1067 = arith.addf %1062, %1066 : vector<4x64xf32>
    %c120 = arith.constant 120 : index
    %1068 = memref.load %arg2[%c120] : memref<192xf32, #tpu.memory_space<smem>>
    %1069 = vector.broadcast %1068 : f32 to vector<4x64xf32>
    %1070 = arith.mulf %288, %1069 : vector<4x64xf32>
    %c121 = arith.constant 121 : index
    %1071 = memref.load %arg2[%c121] : memref<192xf32, #tpu.memory_space<smem>>
    %1072 = vector.broadcast %1071 : f32 to vector<4x64xf32>
    %1073 = arith.mulf %289, %1072 : vector<4x64xf32>
    %1074 = arith.addf %1070, %1073 : vector<4x64xf32>
    %c122 = arith.constant 122 : index
    %1075 = memref.load %arg2[%c122] : memref<192xf32, #tpu.memory_space<smem>>
    %1076 = vector.broadcast %1075 : f32 to vector<4x64xf32>
    %1077 = arith.mulf %290, %1076 : vector<4x64xf32>
    %1078 = arith.addf %1074, %1077 : vector<4x64xf32>
    %c123 = arith.constant 123 : index
    %1079 = memref.load %arg2[%c123] : memref<192xf32, #tpu.memory_space<smem>>
    %1080 = vector.broadcast %1079 : f32 to vector<4x64xf32>
    %1081 = arith.mulf %293, %1080 : vector<4x64xf32>
    %1082 = arith.addf %1078, %1081 : vector<4x64xf32>
    %c124 = arith.constant 124 : index
    %1083 = memref.load %arg2[%c124] : memref<192xf32, #tpu.memory_space<smem>>
    %1084 = vector.broadcast %1083 : f32 to vector<4x64xf32>
    %1085 = arith.mulf %294, %1084 : vector<4x64xf32>
    %1086 = arith.addf %1082, %1085 : vector<4x64xf32>
    %c125 = arith.constant 125 : index
    %1087 = memref.load %arg2[%c125] : memref<192xf32, #tpu.memory_space<smem>>
    %1088 = vector.broadcast %1087 : f32 to vector<4x64xf32>
    %1089 = arith.mulf %295, %1088 : vector<4x64xf32>
    %1090 = arith.addf %1086, %1089 : vector<4x64xf32>
    %c126 = arith.constant 126 : index
    %1091 = memref.load %arg2[%c126] : memref<192xf32, #tpu.memory_space<smem>>
    %1092 = vector.broadcast %1091 : f32 to vector<4x64xf32>
    %1093 = arith.mulf %298, %1092 : vector<4x64xf32>
    %1094 = arith.addf %1090, %1093 : vector<4x64xf32>
    %c127 = arith.constant 127 : index
    %1095 = memref.load %arg2[%c127] : memref<192xf32, #tpu.memory_space<smem>>
    %1096 = vector.broadcast %1095 : f32 to vector<4x64xf32>
    %1097 = arith.mulf %299, %1096 : vector<4x64xf32>
    %1098 = arith.addf %1094, %1097 : vector<4x64xf32>
    %c128 = arith.constant 128 : index
    %1099 = memref.load %arg2[%c128] : memref<192xf32, #tpu.memory_space<smem>>
    %1100 = vector.broadcast %1099 : f32 to vector<4x64xf32>
    %1101 = arith.mulf %300, %1100 : vector<4x64xf32>
    %1102 = arith.addf %1098, %1101 : vector<4x64xf32>
    %c129 = arith.constant 129 : index
    %1103 = memref.load %arg2[%c129] : memref<192xf32, #tpu.memory_space<smem>>
    %1104 = vector.broadcast %1103 : f32 to vector<4x64xf32>
    %1105 = arith.mulf %303, %1104 : vector<4x64xf32>
    %1106 = arith.addf %1102, %1105 : vector<4x64xf32>
    %c130 = arith.constant 130 : index
    %1107 = memref.load %arg2[%c130] : memref<192xf32, #tpu.memory_space<smem>>
    %1108 = vector.broadcast %1107 : f32 to vector<4x64xf32>
    %1109 = arith.mulf %304, %1108 : vector<4x64xf32>
    %1110 = arith.addf %1106, %1109 : vector<4x64xf32>
    %c131 = arith.constant 131 : index
    %1111 = memref.load %arg2[%c131] : memref<192xf32, #tpu.memory_space<smem>>
    %1112 = vector.broadcast %1111 : f32 to vector<4x64xf32>
    %1113 = arith.mulf %305, %1112 : vector<4x64xf32>
    %1114 = arith.addf %1110, %1113 : vector<4x64xf32>
    %c132 = arith.constant 132 : index
    %1115 = memref.load %arg2[%c132] : memref<192xf32, #tpu.memory_space<smem>>
    %1116 = vector.broadcast %1115 : f32 to vector<4x64xf32>
    %1117 = arith.mulf %308, %1116 : vector<4x64xf32>
    %1118 = arith.addf %1114, %1117 : vector<4x64xf32>
    %c133 = arith.constant 133 : index
    %1119 = memref.load %arg2[%c133] : memref<192xf32, #tpu.memory_space<smem>>
    %1120 = vector.broadcast %1119 : f32 to vector<4x64xf32>
    %1121 = arith.mulf %309, %1120 : vector<4x64xf32>
    %1122 = arith.addf %1118, %1121 : vector<4x64xf32>
    %c134 = arith.constant 134 : index
    %1123 = memref.load %arg2[%c134] : memref<192xf32, #tpu.memory_space<smem>>
    %1124 = vector.broadcast %1123 : f32 to vector<4x64xf32>
    %1125 = arith.mulf %310, %1124 : vector<4x64xf32>
    %1126 = arith.addf %1122, %1125 : vector<4x64xf32>
    %c135 = arith.constant 135 : index
    %1127 = memref.load %arg2[%c135] : memref<192xf32, #tpu.memory_space<smem>>
    %1128 = vector.broadcast %1127 : f32 to vector<4x64xf32>
    %1129 = arith.mulf %313, %1128 : vector<4x64xf32>
    %1130 = arith.addf %1126, %1129 : vector<4x64xf32>
    %c136 = arith.constant 136 : index
    %1131 = memref.load %arg2[%c136] : memref<192xf32, #tpu.memory_space<smem>>
    %1132 = vector.broadcast %1131 : f32 to vector<4x64xf32>
    %1133 = arith.mulf %314, %1132 : vector<4x64xf32>
    %1134 = arith.addf %1130, %1133 : vector<4x64xf32>
    %c137 = arith.constant 137 : index
    %1135 = memref.load %arg2[%c137] : memref<192xf32, #tpu.memory_space<smem>>
    %1136 = vector.broadcast %1135 : f32 to vector<4x64xf32>
    %1137 = arith.mulf %315, %1136 : vector<4x64xf32>
    %1138 = arith.addf %1134, %1137 : vector<4x64xf32>
    %c138 = arith.constant 138 : index
    %1139 = memref.load %arg2[%c138] : memref<192xf32, #tpu.memory_space<smem>>
    %1140 = vector.broadcast %1139 : f32 to vector<4x64xf32>
    %1141 = arith.mulf %318, %1140 : vector<4x64xf32>
    %1142 = arith.addf %1138, %1141 : vector<4x64xf32>
    %c139 = arith.constant 139 : index
    %1143 = memref.load %arg2[%c139] : memref<192xf32, #tpu.memory_space<smem>>
    %1144 = vector.broadcast %1143 : f32 to vector<4x64xf32>
    %1145 = arith.mulf %319, %1144 : vector<4x64xf32>
    %1146 = arith.addf %1142, %1145 : vector<4x64xf32>
    %c140 = arith.constant 140 : index
    %1147 = memref.load %arg2[%c140] : memref<192xf32, #tpu.memory_space<smem>>
    %1148 = vector.broadcast %1147 : f32 to vector<4x64xf32>
    %1149 = arith.mulf %320, %1148 : vector<4x64xf32>
    %1150 = arith.addf %1146, %1149 : vector<4x64xf32>
    %c141 = arith.constant 141 : index
    %1151 = memref.load %arg2[%c141] : memref<192xf32, #tpu.memory_space<smem>>
    %1152 = vector.broadcast %1151 : f32 to vector<4x64xf32>
    %1153 = arith.mulf %323, %1152 : vector<4x64xf32>
    %1154 = arith.addf %1150, %1153 : vector<4x64xf32>
    %c142 = arith.constant 142 : index
    %1155 = memref.load %arg2[%c142] : memref<192xf32, #tpu.memory_space<smem>>
    %1156 = vector.broadcast %1155 : f32 to vector<4x64xf32>
    %1157 = arith.mulf %324, %1156 : vector<4x64xf32>
    %1158 = arith.addf %1154, %1157 : vector<4x64xf32>
    %c143 = arith.constant 143 : index
    %1159 = memref.load %arg2[%c143] : memref<192xf32, #tpu.memory_space<smem>>
    %1160 = vector.broadcast %1159 : f32 to vector<4x64xf32>
    %1161 = arith.mulf %325, %1160 : vector<4x64xf32>
    %1162 = arith.addf %1158, %1161 : vector<4x64xf32>
    %c5_166 = arith.constant 5 : index
    %1163 = memref.load %arg7[%c5_166] : memref<8xf32, #tpu.memory_space<smem>>
    %c5_167 = arith.constant 5 : index
    %1164 = memref.load %arg8[%c5_167] : memref<8xf32, #tpu.memory_space<smem>>
    %1165 = vector.shape_cast %1162 : vector<4x64xf32> to vector<1x4x64xf32>
    %cst_168 = arith.constant dense<0.000000e+00> : vector<1xf32>
    %1166 = vector.multi_reduction <add>, %1165, %cst_168 [1, 2] : vector<1x4x64xf32> to vector<1xf32>
    %1167 = vector.shape_cast %1166 : vector<1xf32> to vector<1x1x1xf32>
    %1168 = vector.extract %1167[0, 0, 0] : f32 from vector<1x1x1xf32>
    %cst_169 = arith.constant 3.906250e-03 : f32
    %1169 = arith.mulf %1168, %cst_169 : f32
    %1170 = vector.broadcast %1169 : f32 to vector<4x64xf32>
    %1171 = arith.subf %1162, %1170 : vector<4x64xf32>
    %1172 = arith.mulf %1171, %1171 : vector<4x64xf32>
    %1173 = vector.shape_cast %1172 : vector<4x64xf32> to vector<1x4x64xf32>
    %cst_170 = arith.constant dense<0.000000e+00> : vector<1xf32>
    %1174 = vector.multi_reduction <add>, %1173, %cst_170 [1, 2] : vector<1x4x64xf32> to vector<1xf32>
    %1175 = vector.shape_cast %1174 : vector<1xf32> to vector<1x1x1xf32>
    %1176 = vector.extract %1175[0, 0, 0] : f32 from vector<1x1x1xf32>
    %cst_171 = arith.constant 3.906250e-03 : f32
    %1177 = arith.mulf %1176, %cst_171 : f32
    %cst_172 = arith.constant 9.99999974E-6 : f32
    %1178 = arith.addf %1177, %cst_172 : f32
    %1179 = math.rsqrt %1178 : f32
    %1180 = arith.mulf %1163, %1179 : f32
    %1181 = vector.broadcast %1180 : f32 to vector<4x64xf32>
    %1182 = arith.mulf %1171, %1181 : vector<4x64xf32>
    %1183 = vector.broadcast %1164 : f32 to vector<4x64xf32>
    %1184 = arith.addf %1182, %1183 : vector<4x64xf32>
    %cst_173 = arith.constant 0.000000e+00 : f32
    %1185 = vector.broadcast %cst_173 : f32 to vector<4x64xf32>
    %1186 = arith.maximumf %1184, %1185 : vector<4x64xf32>
    %c5_174 = arith.constant 5 : index
    %1187 = memref.load %arg4[%c5_174] : memref<8xf32, #tpu.memory_space<smem>>
    %1188 = vector.broadcast %1187 : f32 to vector<4x64xf32>
    %1189 = arith.mulf %1188, %0 : vector<4x64xf32>
    %1190 = arith.addf %1186, %1189 : vector<4x64xf32>
    %1191 = vector.broadcast %328 : f32 to vector<4x64xf32>
    %1192 = arith.mulf %1191, %1190 : vector<4x64xf32>
    %1193 = vector.broadcast %327 : f32 to vector<4x64xf32>
    %1194 = arith.addf %1193, %1192 : vector<4x64xf32>
    %1195 = arith.mulf %1190, %1194 : vector<4x64xf32>
    %1196 = vector.broadcast %326 : f32 to vector<4x64xf32>
    %1197 = arith.addf %1196, %1195 : vector<4x64xf32>
    %1198 = arith.mulf %1190, %1197 : vector<4x64xf32>
    %cst_175 = arith.constant 0.000000e+00 : f32
    %1199 = vector.broadcast %cst_175 : f32 to vector<4x1xf32>
    %1200 = tpu.concatenate %1199, %1198, %1199 in 1 : vector<4x1xf32>, vector<4x64xf32>, vector<4x1xf32> -> vector<4x66xf32>
    %1201 = vector.extract_strided_slice %1200 {offsets = [0, 0], sizes = [4, 64], strides = [1, 1]} : vector<4x66xf32> to vector<4x64xf32>
    %c15_176 = arith.constant 15 : index
    %1202 = memref.load %arg3[%c15_176] : memref<24xf32, #tpu.memory_space<smem>>
    %1203 = vector.broadcast %1202 : f32 to vector<4x64xf32>
    %1204 = arith.mulf %1201, %1203 : vector<4x64xf32>
    %1205 = arith.addf %1067, %1204 : vector<4x64xf32>
    %1206 = vector.extract_strided_slice %1200 {offsets = [0, 1], sizes = [4, 64], strides = [1, 1]} : vector<4x66xf32> to vector<4x64xf32>
    %c16_177 = arith.constant 16 : index
    %1207 = memref.load %arg3[%c16_177] : memref<24xf32, #tpu.memory_space<smem>>
    %1208 = vector.broadcast %1207 : f32 to vector<4x64xf32>
    %1209 = arith.mulf %1206, %1208 : vector<4x64xf32>
    %1210 = arith.addf %1205, %1209 : vector<4x64xf32>
    %1211 = vector.extract_strided_slice %1200 {offsets = [0, 2], sizes = [4, 64], strides = [1, 1]} : vector<4x66xf32> to vector<4x64xf32>
    %c17_178 = arith.constant 17 : index
    %1212 = memref.load %arg3[%c17_178] : memref<24xf32, #tpu.memory_space<smem>>
    %1213 = vector.broadcast %1212 : f32 to vector<4x64xf32>
    %1214 = arith.mulf %1211, %1213 : vector<4x64xf32>
    %1215 = arith.addf %1210, %1214 : vector<4x64xf32>
    %c144 = arith.constant 144 : index
    %1216 = memref.load %arg2[%c144] : memref<192xf32, #tpu.memory_space<smem>>
    %1217 = vector.broadcast %1216 : f32 to vector<4x64xf32>
    %1218 = arith.mulf %288, %1217 : vector<4x64xf32>
    %c145 = arith.constant 145 : index
    %1219 = memref.load %arg2[%c145] : memref<192xf32, #tpu.memory_space<smem>>
    %1220 = vector.broadcast %1219 : f32 to vector<4x64xf32>
    %1221 = arith.mulf %289, %1220 : vector<4x64xf32>
    %1222 = arith.addf %1218, %1221 : vector<4x64xf32>
    %c146 = arith.constant 146 : index
    %1223 = memref.load %arg2[%c146] : memref<192xf32, #tpu.memory_space<smem>>
    %1224 = vector.broadcast %1223 : f32 to vector<4x64xf32>
    %1225 = arith.mulf %290, %1224 : vector<4x64xf32>
    %1226 = arith.addf %1222, %1225 : vector<4x64xf32>
    %c147 = arith.constant 147 : index
    %1227 = memref.load %arg2[%c147] : memref<192xf32, #tpu.memory_space<smem>>
    %1228 = vector.broadcast %1227 : f32 to vector<4x64xf32>
    %1229 = arith.mulf %293, %1228 : vector<4x64xf32>
    %1230 = arith.addf %1226, %1229 : vector<4x64xf32>
    %c148 = arith.constant 148 : index
    %1231 = memref.load %arg2[%c148] : memref<192xf32, #tpu.memory_space<smem>>
    %1232 = vector.broadcast %1231 : f32 to vector<4x64xf32>
    %1233 = arith.mulf %294, %1232 : vector<4x64xf32>
    %1234 = arith.addf %1230, %1233 : vector<4x64xf32>
    %c149 = arith.constant 149 : index
    %1235 = memref.load %arg2[%c149] : memref<192xf32, #tpu.memory_space<smem>>
    %1236 = vector.broadcast %1235 : f32 to vector<4x64xf32>
    %1237 = arith.mulf %295, %1236 : vector<4x64xf32>
    %1238 = arith.addf %1234, %1237 : vector<4x64xf32>
    %c150 = arith.constant 150 : index
    %1239 = memref.load %arg2[%c150] : memref<192xf32, #tpu.memory_space<smem>>
    %1240 = vector.broadcast %1239 : f32 to vector<4x64xf32>
    %1241 = arith.mulf %298, %1240 : vector<4x64xf32>
    %1242 = arith.addf %1238, %1241 : vector<4x64xf32>
    %c151 = arith.constant 151 : index
    %1243 = memref.load %arg2[%c151] : memref<192xf32, #tpu.memory_space<smem>>
    %1244 = vector.broadcast %1243 : f32 to vector<4x64xf32>
    %1245 = arith.mulf %299, %1244 : vector<4x64xf32>
    %1246 = arith.addf %1242, %1245 : vector<4x64xf32>
    %c152 = arith.constant 152 : index
    %1247 = memref.load %arg2[%c152] : memref<192xf32, #tpu.memory_space<smem>>
    %1248 = vector.broadcast %1247 : f32 to vector<4x64xf32>
    %1249 = arith.mulf %300, %1248 : vector<4x64xf32>
    %1250 = arith.addf %1246, %1249 : vector<4x64xf32>
    %c153 = arith.constant 153 : index
    %1251 = memref.load %arg2[%c153] : memref<192xf32, #tpu.memory_space<smem>>
    %1252 = vector.broadcast %1251 : f32 to vector<4x64xf32>
    %1253 = arith.mulf %303, %1252 : vector<4x64xf32>
    %1254 = arith.addf %1250, %1253 : vector<4x64xf32>
    %c154 = arith.constant 154 : index
    %1255 = memref.load %arg2[%c154] : memref<192xf32, #tpu.memory_space<smem>>
    %1256 = vector.broadcast %1255 : f32 to vector<4x64xf32>
    %1257 = arith.mulf %304, %1256 : vector<4x64xf32>
    %1258 = arith.addf %1254, %1257 : vector<4x64xf32>
    %c155 = arith.constant 155 : index
    %1259 = memref.load %arg2[%c155] : memref<192xf32, #tpu.memory_space<smem>>
    %1260 = vector.broadcast %1259 : f32 to vector<4x64xf32>
    %1261 = arith.mulf %305, %1260 : vector<4x64xf32>
    %1262 = arith.addf %1258, %1261 : vector<4x64xf32>
    %c156 = arith.constant 156 : index
    %1263 = memref.load %arg2[%c156] : memref<192xf32, #tpu.memory_space<smem>>
    %1264 = vector.broadcast %1263 : f32 to vector<4x64xf32>
    %1265 = arith.mulf %308, %1264 : vector<4x64xf32>
    %1266 = arith.addf %1262, %1265 : vector<4x64xf32>
    %c157 = arith.constant 157 : index
    %1267 = memref.load %arg2[%c157] : memref<192xf32, #tpu.memory_space<smem>>
    %1268 = vector.broadcast %1267 : f32 to vector<4x64xf32>
    %1269 = arith.mulf %309, %1268 : vector<4x64xf32>
    %1270 = arith.addf %1266, %1269 : vector<4x64xf32>
    %c158 = arith.constant 158 : index
    %1271 = memref.load %arg2[%c158] : memref<192xf32, #tpu.memory_space<smem>>
    %1272 = vector.broadcast %1271 : f32 to vector<4x64xf32>
    %1273 = arith.mulf %310, %1272 : vector<4x64xf32>
    %1274 = arith.addf %1270, %1273 : vector<4x64xf32>
    %c159 = arith.constant 159 : index
    %1275 = memref.load %arg2[%c159] : memref<192xf32, #tpu.memory_space<smem>>
    %1276 = vector.broadcast %1275 : f32 to vector<4x64xf32>
    %1277 = arith.mulf %313, %1276 : vector<4x64xf32>
    %1278 = arith.addf %1274, %1277 : vector<4x64xf32>
    %c160 = arith.constant 160 : index
    %1279 = memref.load %arg2[%c160] : memref<192xf32, #tpu.memory_space<smem>>
    %1280 = vector.broadcast %1279 : f32 to vector<4x64xf32>
    %1281 = arith.mulf %314, %1280 : vector<4x64xf32>
    %1282 = arith.addf %1278, %1281 : vector<4x64xf32>
    %c161 = arith.constant 161 : index
    %1283 = memref.load %arg2[%c161] : memref<192xf32, #tpu.memory_space<smem>>
    %1284 = vector.broadcast %1283 : f32 to vector<4x64xf32>
    %1285 = arith.mulf %315, %1284 : vector<4x64xf32>
    %1286 = arith.addf %1282, %1285 : vector<4x64xf32>
    %c162 = arith.constant 162 : index
    %1287 = memref.load %arg2[%c162] : memref<192xf32, #tpu.memory_space<smem>>
    %1288 = vector.broadcast %1287 : f32 to vector<4x64xf32>
    %1289 = arith.mulf %318, %1288 : vector<4x64xf32>
    %1290 = arith.addf %1286, %1289 : vector<4x64xf32>
    %c163 = arith.constant 163 : index
    %1291 = memref.load %arg2[%c163] : memref<192xf32, #tpu.memory_space<smem>>
    %1292 = vector.broadcast %1291 : f32 to vector<4x64xf32>
    %1293 = arith.mulf %319, %1292 : vector<4x64xf32>
    %1294 = arith.addf %1290, %1293 : vector<4x64xf32>
    %c164 = arith.constant 164 : index
    %1295 = memref.load %arg2[%c164] : memref<192xf32, #tpu.memory_space<smem>>
    %1296 = vector.broadcast %1295 : f32 to vector<4x64xf32>
    %1297 = arith.mulf %320, %1296 : vector<4x64xf32>
    %1298 = arith.addf %1294, %1297 : vector<4x64xf32>
    %c165 = arith.constant 165 : index
    %1299 = memref.load %arg2[%c165] : memref<192xf32, #tpu.memory_space<smem>>
    %1300 = vector.broadcast %1299 : f32 to vector<4x64xf32>
    %1301 = arith.mulf %323, %1300 : vector<4x64xf32>
    %1302 = arith.addf %1298, %1301 : vector<4x64xf32>
    %c166 = arith.constant 166 : index
    %1303 = memref.load %arg2[%c166] : memref<192xf32, #tpu.memory_space<smem>>
    %1304 = vector.broadcast %1303 : f32 to vector<4x64xf32>
    %1305 = arith.mulf %324, %1304 : vector<4x64xf32>
    %1306 = arith.addf %1302, %1305 : vector<4x64xf32>
    %c167 = arith.constant 167 : index
    %1307 = memref.load %arg2[%c167] : memref<192xf32, #tpu.memory_space<smem>>
    %1308 = vector.broadcast %1307 : f32 to vector<4x64xf32>
    %1309 = arith.mulf %325, %1308 : vector<4x64xf32>
    %1310 = arith.addf %1306, %1309 : vector<4x64xf32>
    %c6_179 = arith.constant 6 : index
    %1311 = memref.load %arg7[%c6_179] : memref<8xf32, #tpu.memory_space<smem>>
    %c6_180 = arith.constant 6 : index
    %1312 = memref.load %arg8[%c6_180] : memref<8xf32, #tpu.memory_space<smem>>
    %1313 = vector.shape_cast %1310 : vector<4x64xf32> to vector<1x4x64xf32>
    %cst_181 = arith.constant dense<0.000000e+00> : vector<1xf32>
    %1314 = vector.multi_reduction <add>, %1313, %cst_181 [1, 2] : vector<1x4x64xf32> to vector<1xf32>
    %1315 = vector.shape_cast %1314 : vector<1xf32> to vector<1x1x1xf32>
    %1316 = vector.extract %1315[0, 0, 0] : f32 from vector<1x1x1xf32>
    %cst_182 = arith.constant 3.906250e-03 : f32
    %1317 = arith.mulf %1316, %cst_182 : f32
    %1318 = vector.broadcast %1317 : f32 to vector<4x64xf32>
    %1319 = arith.subf %1310, %1318 : vector<4x64xf32>
    %1320 = arith.mulf %1319, %1319 : vector<4x64xf32>
    %1321 = vector.shape_cast %1320 : vector<4x64xf32> to vector<1x4x64xf32>
    %cst_183 = arith.constant dense<0.000000e+00> : vector<1xf32>
    %1322 = vector.multi_reduction <add>, %1321, %cst_183 [1, 2] : vector<1x4x64xf32> to vector<1xf32>
    %1323 = vector.shape_cast %1322 : vector<1xf32> to vector<1x1x1xf32>
    %1324 = vector.extract %1323[0, 0, 0] : f32 from vector<1x1x1xf32>
    %cst_184 = arith.constant 3.906250e-03 : f32
    %1325 = arith.mulf %1324, %cst_184 : f32
    %cst_185 = arith.constant 9.99999974E-6 : f32
    %1326 = arith.addf %1325, %cst_185 : f32
    %1327 = math.rsqrt %1326 : f32
    %1328 = arith.mulf %1311, %1327 : f32
    %1329 = vector.broadcast %1328 : f32 to vector<4x64xf32>
    %1330 = arith.mulf %1319, %1329 : vector<4x64xf32>
    %1331 = vector.broadcast %1312 : f32 to vector<4x64xf32>
    %1332 = arith.addf %1330, %1331 : vector<4x64xf32>
    %cst_186 = arith.constant 0.000000e+00 : f32
    %1333 = vector.broadcast %cst_186 : f32 to vector<4x64xf32>
    %1334 = arith.maximumf %1332, %1333 : vector<4x64xf32>
    %c6_187 = arith.constant 6 : index
    %1335 = memref.load %arg4[%c6_187] : memref<8xf32, #tpu.memory_space<smem>>
    %1336 = vector.broadcast %1335 : f32 to vector<4x64xf32>
    %1337 = arith.mulf %1336, %0 : vector<4x64xf32>
    %1338 = arith.addf %1334, %1337 : vector<4x64xf32>
    %1339 = vector.broadcast %328 : f32 to vector<4x64xf32>
    %1340 = arith.mulf %1339, %1338 : vector<4x64xf32>
    %1341 = vector.broadcast %327 : f32 to vector<4x64xf32>
    %1342 = arith.addf %1341, %1340 : vector<4x64xf32>
    %1343 = arith.mulf %1338, %1342 : vector<4x64xf32>
    %1344 = vector.broadcast %326 : f32 to vector<4x64xf32>
    %1345 = arith.addf %1344, %1343 : vector<4x64xf32>
    %1346 = arith.mulf %1338, %1345 : vector<4x64xf32>
    %cst_188 = arith.constant 0.000000e+00 : f32
    %1347 = vector.broadcast %cst_188 : f32 to vector<4x1xf32>
    %1348 = tpu.concatenate %1347, %1346, %1347 in 1 : vector<4x1xf32>, vector<4x64xf32>, vector<4x1xf32> -> vector<4x66xf32>
    %1349 = vector.extract_strided_slice %1348 {offsets = [0, 0], sizes = [4, 64], strides = [1, 1]} : vector<4x66xf32> to vector<4x64xf32>
    %c18_189 = arith.constant 18 : index
    %1350 = memref.load %arg3[%c18_189] : memref<24xf32, #tpu.memory_space<smem>>
    %1351 = vector.broadcast %1350 : f32 to vector<4x64xf32>
    %1352 = arith.mulf %1349, %1351 : vector<4x64xf32>
    %1353 = arith.addf %1215, %1352 : vector<4x64xf32>
    %1354 = vector.extract_strided_slice %1348 {offsets = [0, 1], sizes = [4, 64], strides = [1, 1]} : vector<4x66xf32> to vector<4x64xf32>
    %c19_190 = arith.constant 19 : index
    %1355 = memref.load %arg3[%c19_190] : memref<24xf32, #tpu.memory_space<smem>>
    %1356 = vector.broadcast %1355 : f32 to vector<4x64xf32>
    %1357 = arith.mulf %1354, %1356 : vector<4x64xf32>
    %1358 = arith.addf %1353, %1357 : vector<4x64xf32>
    %1359 = vector.extract_strided_slice %1348 {offsets = [0, 2], sizes = [4, 64], strides = [1, 1]} : vector<4x66xf32> to vector<4x64xf32>
    %c20_191 = arith.constant 20 : index
    %1360 = memref.load %arg3[%c20_191] : memref<24xf32, #tpu.memory_space<smem>>
    %1361 = vector.broadcast %1360 : f32 to vector<4x64xf32>
    %1362 = arith.mulf %1359, %1361 : vector<4x64xf32>
    %1363 = arith.addf %1358, %1362 : vector<4x64xf32>
    %c168 = arith.constant 168 : index
    %1364 = memref.load %arg2[%c168] : memref<192xf32, #tpu.memory_space<smem>>
    %1365 = vector.broadcast %1364 : f32 to vector<4x64xf32>
    %1366 = arith.mulf %288, %1365 : vector<4x64xf32>
    %c169 = arith.constant 169 : index
    %1367 = memref.load %arg2[%c169] : memref<192xf32, #tpu.memory_space<smem>>
    %1368 = vector.broadcast %1367 : f32 to vector<4x64xf32>
    %1369 = arith.mulf %289, %1368 : vector<4x64xf32>
    %1370 = arith.addf %1366, %1369 : vector<4x64xf32>
    %c170 = arith.constant 170 : index
    %1371 = memref.load %arg2[%c170] : memref<192xf32, #tpu.memory_space<smem>>
    %1372 = vector.broadcast %1371 : f32 to vector<4x64xf32>
    %1373 = arith.mulf %290, %1372 : vector<4x64xf32>
    %1374 = arith.addf %1370, %1373 : vector<4x64xf32>
    %c171 = arith.constant 171 : index
    %1375 = memref.load %arg2[%c171] : memref<192xf32, #tpu.memory_space<smem>>
    %1376 = vector.broadcast %1375 : f32 to vector<4x64xf32>
    %1377 = arith.mulf %293, %1376 : vector<4x64xf32>
    %1378 = arith.addf %1374, %1377 : vector<4x64xf32>
    %c172 = arith.constant 172 : index
    %1379 = memref.load %arg2[%c172] : memref<192xf32, #tpu.memory_space<smem>>
    %1380 = vector.broadcast %1379 : f32 to vector<4x64xf32>
    %1381 = arith.mulf %294, %1380 : vector<4x64xf32>
    %1382 = arith.addf %1378, %1381 : vector<4x64xf32>
    %c173 = arith.constant 173 : index
    %1383 = memref.load %arg2[%c173] : memref<192xf32, #tpu.memory_space<smem>>
    %1384 = vector.broadcast %1383 : f32 to vector<4x64xf32>
    %1385 = arith.mulf %295, %1384 : vector<4x64xf32>
    %1386 = arith.addf %1382, %1385 : vector<4x64xf32>
    %c174 = arith.constant 174 : index
    %1387 = memref.load %arg2[%c174] : memref<192xf32, #tpu.memory_space<smem>>
    %1388 = vector.broadcast %1387 : f32 to vector<4x64xf32>
    %1389 = arith.mulf %298, %1388 : vector<4x64xf32>
    %1390 = arith.addf %1386, %1389 : vector<4x64xf32>
    %c175 = arith.constant 175 : index
    %1391 = memref.load %arg2[%c175] : memref<192xf32, #tpu.memory_space<smem>>
    %1392 = vector.broadcast %1391 : f32 to vector<4x64xf32>
    %1393 = arith.mulf %299, %1392 : vector<4x64xf32>
    %1394 = arith.addf %1390, %1393 : vector<4x64xf32>
    %c176 = arith.constant 176 : index
    %1395 = memref.load %arg2[%c176] : memref<192xf32, #tpu.memory_space<smem>>
    %1396 = vector.broadcast %1395 : f32 to vector<4x64xf32>
    %1397 = arith.mulf %300, %1396 : vector<4x64xf32>
    %1398 = arith.addf %1394, %1397 : vector<4x64xf32>
    %c177 = arith.constant 177 : index
    %1399 = memref.load %arg2[%c177] : memref<192xf32, #tpu.memory_space<smem>>
    %1400 = vector.broadcast %1399 : f32 to vector<4x64xf32>
    %1401 = arith.mulf %303, %1400 : vector<4x64xf32>
    %1402 = arith.addf %1398, %1401 : vector<4x64xf32>
    %c178 = arith.constant 178 : index
    %1403 = memref.load %arg2[%c178] : memref<192xf32, #tpu.memory_space<smem>>
    %1404 = vector.broadcast %1403 : f32 to vector<4x64xf32>
    %1405 = arith.mulf %304, %1404 : vector<4x64xf32>
    %1406 = arith.addf %1402, %1405 : vector<4x64xf32>
    %c179 = arith.constant 179 : index
    %1407 = memref.load %arg2[%c179] : memref<192xf32, #tpu.memory_space<smem>>
    %1408 = vector.broadcast %1407 : f32 to vector<4x64xf32>
    %1409 = arith.mulf %305, %1408 : vector<4x64xf32>
    %1410 = arith.addf %1406, %1409 : vector<4x64xf32>
    %c180 = arith.constant 180 : index
    %1411 = memref.load %arg2[%c180] : memref<192xf32, #tpu.memory_space<smem>>
    %1412 = vector.broadcast %1411 : f32 to vector<4x64xf32>
    %1413 = arith.mulf %308, %1412 : vector<4x64xf32>
    %1414 = arith.addf %1410, %1413 : vector<4x64xf32>
    %c181 = arith.constant 181 : index
    %1415 = memref.load %arg2[%c181] : memref<192xf32, #tpu.memory_space<smem>>
    %1416 = vector.broadcast %1415 : f32 to vector<4x64xf32>
    %1417 = arith.mulf %309, %1416 : vector<4x64xf32>
    %1418 = arith.addf %1414, %1417 : vector<4x64xf32>
    %c182 = arith.constant 182 : index
    %1419 = memref.load %arg2[%c182] : memref<192xf32, #tpu.memory_space<smem>>
    %1420 = vector.broadcast %1419 : f32 to vector<4x64xf32>
    %1421 = arith.mulf %310, %1420 : vector<4x64xf32>
    %1422 = arith.addf %1418, %1421 : vector<4x64xf32>
    %c183 = arith.constant 183 : index
    %1423 = memref.load %arg2[%c183] : memref<192xf32, #tpu.memory_space<smem>>
    %1424 = vector.broadcast %1423 : f32 to vector<4x64xf32>
    %1425 = arith.mulf %313, %1424 : vector<4x64xf32>
    %1426 = arith.addf %1422, %1425 : vector<4x64xf32>
    %c184 = arith.constant 184 : index
    %1427 = memref.load %arg2[%c184] : memref<192xf32, #tpu.memory_space<smem>>
    %1428 = vector.broadcast %1427 : f32 to vector<4x64xf32>
    %1429 = arith.mulf %314, %1428 : vector<4x64xf32>
    %1430 = arith.addf %1426, %1429 : vector<4x64xf32>
    %c185 = arith.constant 185 : index
    %1431 = memref.load %arg2[%c185] : memref<192xf32, #tpu.memory_space<smem>>
    %1432 = vector.broadcast %1431 : f32 to vector<4x64xf32>
    %1433 = arith.mulf %315, %1432 : vector<4x64xf32>
    %1434 = arith.addf %1430, %1433 : vector<4x64xf32>
    %c186 = arith.constant 186 : index
    %1435 = memref.load %arg2[%c186] : memref<192xf32, #tpu.memory_space<smem>>
    %1436 = vector.broadcast %1435 : f32 to vector<4x64xf32>
    %1437 = arith.mulf %318, %1436 : vector<4x64xf32>
    %1438 = arith.addf %1434, %1437 : vector<4x64xf32>
    %c187 = arith.constant 187 : index
    %1439 = memref.load %arg2[%c187] : memref<192xf32, #tpu.memory_space<smem>>
    %1440 = vector.broadcast %1439 : f32 to vector<4x64xf32>
    %1441 = arith.mulf %319, %1440 : vector<4x64xf32>
    %1442 = arith.addf %1438, %1441 : vector<4x64xf32>
    %c188 = arith.constant 188 : index
    %1443 = memref.load %arg2[%c188] : memref<192xf32, #tpu.memory_space<smem>>
    %1444 = vector.broadcast %1443 : f32 to vector<4x64xf32>
    %1445 = arith.mulf %320, %1444 : vector<4x64xf32>
    %1446 = arith.addf %1442, %1445 : vector<4x64xf32>
    %c189 = arith.constant 189 : index
    %1447 = memref.load %arg2[%c189] : memref<192xf32, #tpu.memory_space<smem>>
    %1448 = vector.broadcast %1447 : f32 to vector<4x64xf32>
    %1449 = arith.mulf %323, %1448 : vector<4x64xf32>
    %1450 = arith.addf %1446, %1449 : vector<4x64xf32>
    %c190 = arith.constant 190 : index
    %1451 = memref.load %arg2[%c190] : memref<192xf32, #tpu.memory_space<smem>>
    %1452 = vector.broadcast %1451 : f32 to vector<4x64xf32>
    %1453 = arith.mulf %324, %1452 : vector<4x64xf32>
    %1454 = arith.addf %1450, %1453 : vector<4x64xf32>
    %c191 = arith.constant 191 : index
    %1455 = memref.load %arg2[%c191] : memref<192xf32, #tpu.memory_space<smem>>
    %1456 = vector.broadcast %1455 : f32 to vector<4x64xf32>
    %1457 = arith.mulf %325, %1456 : vector<4x64xf32>
    %1458 = arith.addf %1454, %1457 : vector<4x64xf32>
    %c7_192 = arith.constant 7 : index
    %1459 = memref.load %arg7[%c7_192] : memref<8xf32, #tpu.memory_space<smem>>
    %c7_193 = arith.constant 7 : index
    %1460 = memref.load %arg8[%c7_193] : memref<8xf32, #tpu.memory_space<smem>>
    %1461 = vector.shape_cast %1458 : vector<4x64xf32> to vector<1x4x64xf32>
    %cst_194 = arith.constant dense<0.000000e+00> : vector<1xf32>
    %1462 = vector.multi_reduction <add>, %1461, %cst_194 [1, 2] : vector<1x4x64xf32> to vector<1xf32>
    %1463 = vector.shape_cast %1462 : vector<1xf32> to vector<1x1x1xf32>
    %1464 = vector.extract %1463[0, 0, 0] : f32 from vector<1x1x1xf32>
    %cst_195 = arith.constant 3.906250e-03 : f32
    %1465 = arith.mulf %1464, %cst_195 : f32
    %1466 = vector.broadcast %1465 : f32 to vector<4x64xf32>
    %1467 = arith.subf %1458, %1466 : vector<4x64xf32>
    %1468 = arith.mulf %1467, %1467 : vector<4x64xf32>
    %1469 = vector.shape_cast %1468 : vector<4x64xf32> to vector<1x4x64xf32>
    %cst_196 = arith.constant dense<0.000000e+00> : vector<1xf32>
    %1470 = vector.multi_reduction <add>, %1469, %cst_196 [1, 2] : vector<1x4x64xf32> to vector<1xf32>
    %1471 = vector.shape_cast %1470 : vector<1xf32> to vector<1x1x1xf32>
    %1472 = vector.extract %1471[0, 0, 0] : f32 from vector<1x1x1xf32>
    %cst_197 = arith.constant 3.906250e-03 : f32
    %1473 = arith.mulf %1472, %cst_197 : f32
    %cst_198 = arith.constant 9.99999974E-6 : f32
    %1474 = arith.addf %1473, %cst_198 : f32
    %1475 = math.rsqrt %1474 : f32
    %1476 = arith.mulf %1459, %1475 : f32
    %1477 = vector.broadcast %1476 : f32 to vector<4x64xf32>
    %1478 = arith.mulf %1467, %1477 : vector<4x64xf32>
    %1479 = vector.broadcast %1460 : f32 to vector<4x64xf32>
    %1480 = arith.addf %1478, %1479 : vector<4x64xf32>
    %cst_199 = arith.constant 0.000000e+00 : f32
    %1481 = vector.broadcast %cst_199 : f32 to vector<4x64xf32>
    %1482 = arith.maximumf %1480, %1481 : vector<4x64xf32>
    %c7_200 = arith.constant 7 : index
    %1483 = memref.load %arg4[%c7_200] : memref<8xf32, #tpu.memory_space<smem>>
    %1484 = vector.broadcast %1483 : f32 to vector<4x64xf32>
    %1485 = arith.mulf %1484, %0 : vector<4x64xf32>
    %1486 = arith.addf %1482, %1485 : vector<4x64xf32>
    %1487 = vector.broadcast %328 : f32 to vector<4x64xf32>
    %1488 = arith.mulf %1487, %1486 : vector<4x64xf32>
    %1489 = vector.broadcast %327 : f32 to vector<4x64xf32>
    %1490 = arith.addf %1489, %1488 : vector<4x64xf32>
    %1491 = arith.mulf %1486, %1490 : vector<4x64xf32>
    %1492 = vector.broadcast %326 : f32 to vector<4x64xf32>
    %1493 = arith.addf %1492, %1491 : vector<4x64xf32>
    %1494 = arith.mulf %1486, %1493 : vector<4x64xf32>
    %cst_201 = arith.constant 0.000000e+00 : f32
    %1495 = vector.broadcast %cst_201 : f32 to vector<4x1xf32>
    %1496 = tpu.concatenate %1495, %1494, %1495 in 1 : vector<4x1xf32>, vector<4x64xf32>, vector<4x1xf32> -> vector<4x66xf32>
    %1497 = vector.extract_strided_slice %1496 {offsets = [0, 0], sizes = [4, 64], strides = [1, 1]} : vector<4x66xf32> to vector<4x64xf32>
    %c21_202 = arith.constant 21 : index
    %1498 = memref.load %arg3[%c21_202] : memref<24xf32, #tpu.memory_space<smem>>
    %1499 = vector.broadcast %1498 : f32 to vector<4x64xf32>
    %1500 = arith.mulf %1497, %1499 : vector<4x64xf32>
    %1501 = arith.addf %1363, %1500 : vector<4x64xf32>
    %1502 = vector.extract_strided_slice %1496 {offsets = [0, 1], sizes = [4, 64], strides = [1, 1]} : vector<4x66xf32> to vector<4x64xf32>
    %c22_203 = arith.constant 22 : index
    %1503 = memref.load %arg3[%c22_203] : memref<24xf32, #tpu.memory_space<smem>>
    %1504 = vector.broadcast %1503 : f32 to vector<4x64xf32>
    %1505 = arith.mulf %1502, %1504 : vector<4x64xf32>
    %1506 = arith.addf %1501, %1505 : vector<4x64xf32>
    %1507 = vector.extract_strided_slice %1496 {offsets = [0, 2], sizes = [4, 64], strides = [1, 1]} : vector<4x66xf32> to vector<4x64xf32>
    %c23_204 = arith.constant 23 : index
    %1508 = memref.load %arg3[%c23_204] : memref<24xf32, #tpu.memory_space<smem>>
    %1509 = vector.broadcast %1508 : f32 to vector<4x64xf32>
    %1510 = arith.mulf %1507, %1509 : vector<4x64xf32>
    %1511 = arith.addf %1506, %1510 : vector<4x64xf32>
    %c0_205 = arith.constant 0 : index
    %c0_206 = arith.constant 0 : index
    %1512 = vector.load %arg10[%c0_205, %c0_206] : memref<4x64xf32, #tpu.memory_space<vmem>>, vector<4x64xf32>
    tpu.vector_store %arg10[%c0_205, %c0_206], %1511 {strides = array<i32>} : memref<4x64xf32, #tpu.memory_space<vmem>>, vector<4x64xf32>,
    return
  }
}

</mosaic_0001>

<llo_original>
// kernel: tpu_custom_call.1
$region0: #{tpu_custom_call.1}
  #allocation0 [shape = 'u32[]', space=smem, size = 0x4, offset = 0x4, fixed_abs, tag = 'smem constant byte address 0x4 - core index']
  #allocation1 [shape = 'u32[144,128]{1,0:T(1,128)}', space=vmem, size = 0x12000, scoped, tag = 'internal scratch']
  %s0 = inlined_call_operand.hbm [shape: f32[4,64], index: 0, kind: input, shape index: {}]
  %s1 = inlined_call_operand.vmem [shape: f32[24], index: 1, kind: input, shape index: {}]
  %s2 = inlined_call_operand.vmem [shape: f32[192], index: 2, kind: input, shape index: {}]
  %s3 = inlined_call_operand.vmem [shape: f32[24], index: 3, kind: input, shape index: {}]
  %s4 = inlined_call_operand.vmem [shape: f32[8], index: 4, kind: input, shape index: {}]
  %s5 = inlined_call_operand.vmem [shape: f32[8], index: 5, kind: input, shape index: {}]
  %s6 = inlined_call_operand.vmem [shape: f32[8], index: 6, kind: input, shape index: {}]
  %s7 = inlined_call_operand.vmem [shape: f32[8], index: 7, kind: input, shape index: {}]
  %s8 = inlined_call_operand.vmem [shape: f32[8], index: 8, kind: input, shape index: {}]
  %s9 = inlined_call_operand.vmem [shape: f32[3], index: 9, kind: input, shape index: {}]
  %s10 = inlined_call_operand.hbm [shape: f32[4,64], index: 10, kind: output, shape index: {}]
  %s11 = sld [smem:[#allocation0]]
  $region90: #{tpu_custom_call.1} parent=0
    _
  %s13 = ssub.s32 1, %s11
  %s14 = scalar_select 0, %s13, %s11
  $region1: #{tpu_custom_call.1} parent=0
    #allocation2 [shape = 'u8[2048]{0}', space=vmem, size = 0x800, scoped, tag = 'input window, operand 0, single buffered']
    #allocation3 [shape = 's32[1]{0}', space=sflag, size = 0x4, scoped, tag = 'scoped memory for tpu_custom_call.1']
    #allocation4 [shape = 's32[1]{0}', space=sflag, size = 0x4, scoped, tag = 'scoped memory for tpu_custom_call.1']
    #allocation5 [shape = 's32[1]{0}', space=sflag, size = 0x4, scoped, tag = 'scoped memory for tpu_custom_call.1']
    #allocation6 [shape = 'u8[512]{0}', space=smem, size = 0x200, scoped, tag = 'input window, operand 1, single buffered']
    #allocation7 [shape = 'u8[1024]{0}', space=smem, size = 0x400, scoped, tag = 'input window, operand 2, single buffered']
    #allocation8 [shape = 's32[1]{0}', space=sflag, size = 0x4, scoped, tag = 'scoped memory for tpu_custom_call.1']
    #allocation9 [shape = 'u8[512]{0}', space=smem, size = 0x200, scoped, tag = 'input window, operand 3, single buffered']
    #allocation10 [shape = 'u8[512]{0}', space=smem, size = 0x200, scoped, tag = 'input window, operand 4, single buffered']
    #allocation11 [shape = 's32[1]{0}', space=sflag, size = 0x4, scoped, tag = 'scoped memory for tpu_custom_call.1']
    #allocation12 [shape = 'u8[512]{0}', space=smem, size = 0x200, scoped, tag = 'input window, operand 5, single buffered']
    #allocation13 [shape = 'u8[512]{0}', space=smem, size = 0x200, scoped, tag = 'input window, operand 6, single buffered']
    #allocation14 [shape = 's32[1]{0}', space=sflag, size = 0x4, scoped, tag = 'scoped memory for tpu_custom_call.1']
    #allocation15 [shape = 'u8[512]{0}', space=smem, size = 0x200, scoped, tag = 'input window, operand 7, single buffered']
    #allocation16 [shape = 'u8[512]{0}', space=smem, size = 0x200, scoped, tag = 'input window, operand 8, single buffered']
    #allocation17 [shape = 's32[1]{0}', space=sflag, size = 0x4, scoped, tag = 'scoped memory for tpu_custom_call.1']
    #allocation18 [shape = 'u8[512]{0}', space=smem, size = 0x200, scoped, tag = 'input window, operand 9, single buffered']
    #allocation19 [shape = 'u8[2048]{0}', space=vmem, size = 0x800, scoped, tag = 'output window, operand 0, single buffered']
    %15 = vsyncpa [#allocation3], 0
    %16 = vsyncpa [#allocation5], 0
    %17 = vsyncpa [#allocation8], 0
    %18 = vsyncpa [#allocation11], 0
    %19 = vsyncpa [#allocation14], 0
    %20 = vsyncpa [#allocation17], 0
    %21 = vsyncpa [#allocation4], 0
    // Predicated region
    $region2: #{tpu_custom_call.1} parent=1 // pred_check
      _
    $region3: #{tpu_custom_call.1} parent=1 // pred_check_branch
      %23 = sbr.rel (0) target = $region5
    $region4: #{tpu_custom_call.1} parent=1 // pred_region
      %s25 = ssub.s32 64, 64
      %26 = vsyncadd [#allocation3], %s25
      %s28 = sshll.u32 [#allocation2], 4
      %s29 = int_to_ptr.vmem [resolvable:$true] %s28
      %31 = dma.hbm_to_vmem [thread:$0]  %s0, 64, %s29, [#allocation3]
    $region5: #{tpu_custom_call.1} parent=1 // pred_fallthru
      _
    // Predicated region
    $region6: #{tpu_custom_call.1} parent=1 // pred_check
      _
    $region7: #{tpu_custom_call.1} parent=1 // pred_check_branch
      %33 = sbr.rel (0) target = $region9
    $region8: #{tpu_custom_call.1} parent=1 // pred_region
      %s35 = ssub.s32 16, 16
      %36 = vsyncadd [#allocation5], %s35
      %s38 = sshll.u32 %s1, 4
      %s39 = int_to_ptr.vmem [resolvable:$true] %s38
      %41 = dma.vmem_to_smem %s39, 16, [#allocation6], [#allocation5]
    $region9: #{tpu_custom_call.1} parent=1 // pred_fallthru
      _
    // Predicated region
    $region10: #{tpu_custom_call.1} parent=1 // pred_check
      _
    $region11: #{tpu_custom_call.1} parent=1 // pred_check_branch
      %43 = sbr.rel (0) target = $region13
    $region12: #{tpu_custom_call.1} parent=1 // pred_region
      %s45 = ssub.s32 32, 32
      %46 = vsyncadd [#allocation8], %s45
      %s48 = sshll.u32 %s2, 4
      %s49 = int_to_ptr.vmem [resolvable:$true] %s48
      %51 = dma.vmem_to_smem %s49, 32, [#allocation7], [#allocation8]
    $region13: #{tpu_custom_call.1} parent=1 // pred_fallthru
      _
    // Predicated region
    $region14: #{tpu_custom_call.1} parent=1 // pred_check
      _
    $region15: #{tpu_custom_call.1} parent=1 // pred_check_branch
      %53 = sbr.rel (0) target = $region17
    $region16: #{tpu_custom_call.1} parent=1 // pred_region
      %s55 = ssub.s32 16, 16
      %56 = vsyncadd [#allocation8], %s55
      %s58 = sshll.u32 %s3, 4
      %s59 = int_to_ptr.vmem [resolvable:$true] %s58
      %61 = dma.vmem_to_smem %s59, 16, [#allocation9], [#allocation8]
    $region17: #{tpu_custom_call.1} parent=1 // pred_fallthru
      _
    // Predicated region
    $region18: #{tpu_custom_call.1} parent=1 // pred_check
      _
    $region19: #{tpu_custom_call.1} parent=1 // pred_check_branch
      %63 = sbr.rel (0) target = $region21
    $region20: #{tpu_custom_call.1} parent=1 // pred_region
      %s65 = ssub.s32 16, 16
      %66 = vsyncadd [#allocation11], %s65
      %s68 = sshll.u32 %s4, 4
      %s69 = int_to_ptr.vmem [resolvable:$true] %s68
      %71 = dma.vmem_to_smem %s69, 16, [#allocation10], [#allocation11]
    $region21: #{tpu_custom_call.1} parent=1 // pred_fallthru
      _
    // Predicated region
    $region22: #{tpu_custom_call.1} parent=1 // pred_check
      _
    $region23: #{tpu_custom_call.1} parent=1 // pred_check_branch
      %73 = sbr.rel (0) target = $region25
    $region24: #{tpu_custom_call.1} parent=1 // pred_region
      %s75 = ssub.s32 16, 16
      %76 = vsyncadd [#allocation11], %s75
      %s78 = sshll.u32 %s5, 4
      %s79 = int_to_ptr.vmem [resolvable:$true] %s78
      %81 = dma.vmem_to_smem %s79, 16, [#allocation12], [#allocation11]
    $region25: #{tpu_custom_call.1} parent=1 // pred_fallthru
      _
    // Predicated region
    $region26: #{tpu_custom_call.1} parent=1 // pred_check
      _
    $region27: #{tpu_custom_call.1} parent=1 // pred_check_branch
      %83 = sbr.rel (0) target = $region29
    $region28: #{tpu_custom_call.1} parent=1 // pred_region
      %s85 = ssub.s32 16, 16
      %86 = vsyncadd [#allocation14], %s85
      %s88 = sshll.u32 %s6, 4
      %s89 = int_to_ptr.vmem [resolvable:$true] %s88
      %91 = dma.vmem_to_smem %s89, 16, [#allocation13], [#allocation14]
    $region29: #{tpu_custom_call.1} parent=1 // pred_fallthru
      _
    // Predicated region
    $region30: #{tpu_custom_call.1} parent=1 // pred_check
      _
    $region31: #{tpu_custom_call.1} parent=1 // pred_check_branch
      %93 = sbr.rel (0) target = $region33
    $region32: #{tpu_custom_call.1} parent=1 // pred_region
      %s95 = ssub.s32 16, 16
      %96 = vsyncadd [#allocation14], %s95
      %s98 = sshll.u32 %s7, 4
      %s99 = int_to_ptr.vmem [resolvable:$true] %s98
      %101 = dma.vmem_to_smem %s99, 16, [#allocation15], [#allocation14]
    $region33: #{tpu_custom_call.1} parent=1 // pred_fallthru
      _
    // Predicated region
    $region34: #{tpu_custom_call.1} parent=1 // pred_check
      _
    $region35: #{tpu_custom_call.1} parent=1 // pred_check_branch
      %103 = sbr.rel (0) target = $region37
    $region36: #{tpu_custom_call.1} parent=1 // pred_region
      %s105 = ssub.s32 16, 16
      %106 = vsyncadd [#allocation17], %s105
      %s108 = sshll.u32 %s8, 4
      %s109 = int_to_ptr.vmem [resolvable:$true] %s108
      %111 = dma.vmem_to_smem %s109, 16, [#allocation16], [#allocation17]
    $region37: #{tpu_custom_call.1} parent=1 // pred_fallthru
      _
    // Predicated region
    $region38: #{tpu_custom_call.1} parent=1 // pred_check
      _
    $region39: #{tpu_custom_call.1} parent=1 // pred_check_branch
      %113 = sbr.rel (0) target = $region41
    $region40: #{tpu_custom_call.1} parent=1 // pred_region
      %s115 = ssub.s32 16, 16
      %116 = vsyncadd [#allocation17], %s115
      %s118 = sshll.u32 %s9, 4
      %s119 = int_to_ptr.vmem [resolvable:$true] %s118
      %121 = dma.vmem_to_smem %s119, 16, [#allocation18], [#allocation17]
    $region41: #{tpu_custom_call.1} parent=1 // pred_fallthru
      _
    // Predicated region
    $region42: #{tpu_custom_call.1} parent=1 // pred_check
      _
    $region43: #{tpu_custom_call.1} parent=1 // pred_check_branch
      %123 = sbr.rel (0) target = $region45
    $region44: #{tpu_custom_call.1} parent=1 // pred_region
      %124 = dma.done [#allocation3], 64
    $region45: #{tpu_custom_call.1} parent=1 // pred_fallthru
      _
    // Predicated region
    $region46: #{tpu_custom_call.1} parent=1 // pred_check
      _
    $region47: #{tpu_custom_call.1} parent=1 // pred_check_branch
      %126 = sbr.rel (0) target = $region49
    $region48: #{tpu_custom_call.1} parent=1 // pred_region
      %127 = dma.done [#allocation5], 16
    $region49: #{tpu_custom_call.1} parent=1 // pred_fallthru
      _
    // Predicated region
    $region50: #{tpu_custom_call.1} parent=1 // pred_check
      _
    $region51: #{tpu_custom_call.1} parent=1 // pred_check_branch
      %129 = sbr.rel (0) target = $region53
    $region52: #{tpu_custom_call.1} parent=1 // pred_region
      %130 = dma.done [#allocation8], 32
    $region53: #{tpu_custom_call.1} parent=1 // pred_fallthru
      _
    // Predicated region
    $region54: #{tpu_custom_call.1} parent=1 // pred_check
      _
    $region55: #{tpu_custom_call.1} parent=1 // pred_check_branch
      %132 = sbr.rel (0) target = $region57
    $region56: #{tpu_custom_call.1} parent=1 // pred_region
      %133 = dma.done [#allocation8], 16
    $region57: #{tpu_custom_call.1} parent=1 // pred_fallthru
      _
    // Predicated region
    $region58: #{tpu_custom_call.1} parent=1 // pred_check
      _
    $region59: #{tpu_custom_call.1} parent=1 // pred_check_branch
      %135 = sbr.rel (0) target = $region61
    $region60: #{tpu_custom_call.1} parent=1 // pred_region
      %136 = dma.done [#allocation11], 16
    $region61: #{tpu_custom_call.1} parent=1 // pred_fallthru
      _
    // Predicated region
    $region62: #{tpu_custom_call.1} parent=1 // pred_check
      _
    $region63: #{tpu_custom_call.1} parent=1 // pred_check_branch
      %138 = sbr.rel (0) target = $region65
    $region64: #{tpu_custom_call.1} parent=1 // pred_region
      %139 = dma.done [#allocation11], 16
    $region65: #{tpu_custom_call.1} parent=1 // pred_fallthru
      _
    // Predicated region
    $region66: #{tpu_custom_call.1} parent=1 // pred_check
      _
    $region67: #{tpu_custom_call.1} parent=1 // pred_check_branch
      %141 = sbr.rel (0) target = $region69
    $region68: #{tpu_custom_call.1} parent=1 // pred_region
      %142 = dma.done [#allocation14], 16
    $region69: #{tpu_custom_call.1} parent=1 // pred_fallthru
      _
    // Predicated region
    $region70: #{tpu_custom_call.1} parent=1 // pred_check
      _
    $region71: #{tpu_custom_call.1} parent=1 // pred_check_branch
      %144 = sbr.rel (0) target = $region73
    $region72: #{tpu_custom_call.1} parent=1 // pred_region
      %145 = dma.done [#allocation14], 16
    $region73: #{tpu_custom_call.1} parent=1 // pred_fallthru
      _
    // Predicated region
    $region74: #{tpu_custom_call.1} parent=1 // pred_check
      _
    $region75: #{tpu_custom_call.1} parent=1 // pred_check_branch
      %147 = sbr.rel (0) target = $region77
    $region76: #{tpu_custom_call.1} parent=1 // pred_region
      %148 = dma.done [#allocation17], 16
    $region77: #{tpu_custom_call.1} parent=1 // pred_fallthru
      _
    // Predicated region
    $region78: #{tpu_custom_call.1} parent=1 // pred_check
      _
    $region79: #{tpu_custom_call.1} parent=1 // pred_check_branch
      %150 = sbr.rel (0) target = $region81
    $region80: #{tpu_custom_call.1} parent=1 // pred_region
      %151 = dma.done [#allocation17], 16
    $region81: #{tpu_custom_call.1} parent=1 // pred_fallthru
      _
    %152 = sfence
    %v153 = vld [vmem:[#allocation2] sm:$0xf]
    %155 = vrot.lane.b32.xlu0 %v153, 1
    %v156 = vpop.permute.xlu0 %155
    %vm158 = vcmask 7168
    %v159 = vsel %vm158, 0.0, %v156
    %vm160 = vcmask 531456
    %v161 = vsel %vm160, %v159, 0.0
    %s162 = sld [smem:[#allocation6]]
    %v163 = vstv %s162
    %v164 = vmul.f32 %v161, %v163
    %s165 = sld [smem:[#allocation6 + $0x1]]
    %v166 = vstv %s165
    %v167 = vmul.f32 %v161, %v166
    %169 = vrot.lane.b32.xlu0 %v167, 127
    %v170 = vpop.permute.xlu0 %169
    %v172 = vadd.f32 %v164, %v170
    %s173 = sld [smem:[#allocation6 + $0x2]]
    %v174 = vstv %s173
    %v175 = vmul.f32 %v161, %v174
    %177 = vrot.lane.b32.xlu0 %v175, 126
    %v178 = vpop.permute.xlu0 %177
    %v180 = vadd.f32 %v172, %v178
    %s181 = sld [smem:[#allocation12]]
    %s182 = sld [smem:[#allocation13]]
    %vm183 = vcmask 519168
    %v184 = vsel %vm183, %v180, 0.0
    %185 = vadd.xlane.f32.xlu0 %v184
    %v186 = vpop.xlane.xlu0 %185
    %v187 = vrot.slane %v186, 4
    %v188 = vadd.f32 %v186, %v187
    %v189 = vrot.slane %v188, 2
    %v190 = vadd.f32 %v188, %v189
    %v191 = vrot.slane %v190, 1
    %v192 = vadd.f32 %v190, %v191
    %s193 = vtos %v192
    %s194 = smul.f32 %s193, 0.00390625
    %v195 = vstv %s194
    %v196 = vsub.f32 %v180, %v195
    %v197 = vmul.f32 %v196, %v196
    %v198 = vsel %vm183, %v197, 0.0
    %199 = vadd.xlane.f32.xlu0 %v198
    %v200 = vpop.xlane.xlu0 %199
    %v201 = vrot.slane %v200, 4
    %v202 = vadd.f32 %v200, %v201
    %v203 = vrot.slane %v202, 2
    %v204 = vadd.f32 %v202, %v203
    %v205 = vrot.slane %v204, 1
    %v206 = vadd.f32 %v204, %v205
    %s207 = vtos %v206
    %s208 = smul.f32 %s207, 0.00390625
    %s209 = sadd.f32 %s208, 1e-05
    %v210 = vstv %s209
    %v211 = vrsqrt.pop %v210
    %s212 = vtos %v211
    %s213 = smul.f32 %s181, %s212
    %v214 = vstv %s213
    %v215 = vmul.f32 %v196, %v214
    %v216 = vstv %s182
    %v217 = vadd.f32 %v215, %v216
    %v218 = vmax.f32 %v217, 0.0
    %s219 = sld [smem:[#allocation6 + $0x3]]
    %v220 = vstv %s219
    %v221 = vmul.f32 %v161, %v220
    %s222 = sld [smem:[#allocation6 + $0x4]]
    %v223 = vstv %s222
    %v224 = vmul.f32 %v161, %v223
    %226 = vrot.lane.b32.xlu0 %v224, 127
    %v227 = vpop.permute.xlu0 %226
    %v229 = vadd.f32 %v221, %v227
    %s230 = sld [smem:[#allocation6 + $0x5]]
    %v231 = vstv %s230
    %v232 = vmul.f32 %v161, %v231
    %234 = vrot.lane.b32.xlu0 %v232, 126
    %v235 = vpop.permute.xlu0 %234
    %v237 = vadd.f32 %v229, %v235
    %s238 = sld [smem:[#allocation12 + $0x1]]
    %s239 = sld [smem:[#allocation13 + $0x1]]
    %v240 = vsel %vm183, %v237, 0.0
    %241 = vadd.xlane.f32.xlu0 %v240
    %v242 = vpop.xlane.xlu0 %241
    %v243 = vrot.slane %v242, 4
    %v244 = vadd.f32 %v242, %v243
    %v245 = vrot.slane %v244, 2
    %v246 = vadd.f32 %v244, %v245
    %v247 = vrot.slane %v246, 1
    %v248 = vadd.f32 %v246, %v247
    %s249 = vtos %v248
    %s250 = smul.f32 %s249, 0.00390625
    %v251 = vstv %s250
    %v252 = vsub.f32 %v237, %v251
    %v253 = vmul.f32 %v252, %v252
    %v254 = vsel %vm183, %v253, 0.0
    %255 = vadd.xlane.f32.xlu0 %v254
    %v256 = vpop.xlane.xlu0 %255
    %v257 = vrot.slane %v256, 4
    %v258 = vadd.f32 %v256, %v257
    %v259 = vrot.slane %v258, 2
    %v260 = vadd.f32 %v258, %v259
    %v261 = vrot.slane %v260, 1
    %v262 = vadd.f32 %v260, %v261
    %s263 = vtos %v262
    %s264 = smul.f32 %s263, 0.00390625
    %s265 = sadd.f32 %s264, 1e-05
    %v266 = vstv %s265
    %v267 = vrsqrt.pop %v266
    %s268 = vtos %v267
    %s269 = smul.f32 %s238, %s268
    %v270 = vstv %s269
    %v271 = vmul.f32 %v252, %v270
    %v272 = vstv %s239
    %v273 = vadd.f32 %v271, %v272
    %v274 = vmax.f32 %v273, 0.0
    %s275 = sld [smem:[#allocation6 + $0x6]]
    %v276 = vstv %s275
    %v277 = vmul.f32 %v161, %v276
    %s278 = sld [smem:[#allocation6 + $0x7]]
    %v279 = vstv %s278
    %v280 = vmul.f32 %v161, %v279
    %282 = vrot.lane.b32.xlu0 %v280, 127
    %v283 = vpop.permute.xlu0 %282
    %v285 = vadd.f32 %v277, %v283
    %s286 = sld [smem:[#allocation6 + $0x8]]
    %v287 = vstv %s286
    %v288 = vmul.f32 %v161, %v287
    %290 = vrot.lane.b32.xlu0 %v288, 126
    %v291 = vpop.permute.xlu0 %290
    %v293 = vadd.f32 %v285, %v291
    %s294 = sld [smem:[#allocation12 + $0x2]]
    %s295 = sld [smem:[#allocation13 + $0x2]]
    %v296 = vsel %vm183, %v293, 0.0
    %297 = vadd.xlane.f32.xlu0 %v296
    %v298 = vpop.xlane.xlu0 %297
    %v299 = vrot.slane %v298, 4
    %v300 = vadd.f32 %v298, %v299
    %v301 = vrot.slane %v300, 2
    %v302 = vadd.f32 %v300, %v301
    %v303 = vrot.slane %v302, 1
    %v304 = vadd.f32 %v302, %v303
    %s305 = vtos %v304
    %s306 = smul.f32 %s305, 0.00390625
    %v307 = vstv %s306
    %v308 = vsub.f32 %v293, %v307
    %v309 = vmul.f32 %v308, %v308
    %v310 = vsel %vm183, %v309, 0.0
    %311 = vadd.xlane.f32.xlu0 %v310
    %v312 = vpop.xlane.xlu0 %311
    %v313 = vrot.slane %v312, 4
    %v314 = vadd.f32 %v312, %v313
    %v315 = vrot.slane %v314, 2
    %v316 = vadd.f32 %v314, %v315
    %v317 = vrot.slane %v316, 1
    %v318 = vadd.f32 %v316, %v317
    %s319 = vtos %v318
    %s320 = smul.f32 %s319, 0.00390625
    %s321 = sadd.f32 %s320, 1e-05
    %v322 = vstv %s321
    %v323 = vrsqrt.pop %v322
    %s324 = vtos %v323
    %s325 = smul.f32 %s294, %s324
    %v326 = vstv %s325
    %v327 = vmul.f32 %v308, %v326
    %v328 = vstv %s295
    %v329 = vadd.f32 %v327, %v328
    %v330 = vmax.f32 %v329, 0.0
    %s331 = sld [smem:[#allocation6 + $0x9]]
    %v332 = vstv %s331
    %v333 = vmul.f32 %v161, %v332
    %s334 = sld [smem:[#allocation6 + $0xa]]
    %v335 = vstv %s334
    %v336 = vmul.f32 %v161, %v335
    %338 = vrot.lane.b32.xlu0 %v336, 127
    %v339 = vpop.permute.xlu0 %338
    %v341 = vadd.f32 %v333, %v339
    %s342 = sld [smem:[#allocation6 + $0xb]]
    %v343 = vstv %s342
    %v344 = vmul.f32 %v161, %v343
    %346 = vrot.lane.b32.xlu0 %v344, 126
    %v347 = vpop.permute.xlu0 %346
    %v349 = vadd.f32 %v341, %v347
    %s350 = sld [smem:[#allocation12 + $0x3]]
    %s351 = sld [smem:[#allocation13 + $0x3]]
    %v352 = vsel %vm183, %v349, 0.0
    %353 = vadd.xlane.f32.xlu0 %v352
    %v354 = vpop.xlane.xlu0 %353
    %v355 = vrot.slane %v354, 4
    %v356 = vadd.f32 %v354, %v355
    %v357 = vrot.slane %v356, 2
    %v358 = vadd.f32 %v356, %v357
    %v359 = vrot.slane %v358, 1
    %v360 = vadd.f32 %v358, %v359
    %s361 = vtos %v360
    %s362 = smul.f32 %s361, 0.00390625
    %v363 = vstv %s362
    %v364 = vsub.f32 %v349, %v363
    %v365 = vmul.f32 %v364, %v364
    %v366 = vsel %vm183, %v365, 0.0
    %367 = vadd.xlane.f32.xlu0 %v366
    %v368 = vpop.xlane.xlu0 %367
    %v369 = vrot.slane %v368, 4
    %v370 = vadd.f32 %v368, %v369
    %v371 = vrot.slane %v370, 2
    %v372 = vadd.f32 %v370, %v371
    %v373 = vrot.slane %v372, 1
    %v374 = vadd.f32 %v372, %v373
    %s375 = vtos %v374
    %s376 = smul.f32 %s375, 0.00390625
    %s377 = sadd.f32 %s376, 1e-05
    %v378 = vstv %s377
    %v379 = vrsqrt.pop %v378
    %s380 = vtos %v379
    %s381 = smul.f32 %s350, %s380
    %v382 = vstv %s381
    %v383 = vmul.f32 %v364, %v382
    %v384 = vstv %s351
    %v385 = vadd.f32 %v383, %v384
    %v386 = vmax.f32 %v385, 0.0
    %s387 = sld [smem:[#allocation6 + $0xc]]
    %v388 = vstv %s387
    %v389 = vmul.f32 %v161, %v388
    %s390 = sld [smem:[#allocation6 + $0xd]]
    %v391 = vstv %s390
    %v392 = vmul.f32 %v161, %v391
    %394 = vrot.lane.b32.xlu0 %v392, 127
    %v395 = vpop.permute.xlu0 %394
    %v397 = vadd.f32 %v389, %v395
    %s398 = sld [smem:[#allocation6 + $0xe]]
    %v399 = vstv %s398
    %v400 = vmul.f32 %v161, %v399
    %402 = vrot.lane.b32.xlu0 %v400, 126
    %v403 = vpop.permute.xlu0 %402
    %v405 = vadd.f32 %v397, %v403
    %s406 = sld [smem:[#allocation12 + $0x4]]
    %s407 = sld [smem:[#allocation13 + $0x4]]
    %v408 = vsel %vm183, %v405, 0.0
    %409 = vadd.xlane.f32.xlu0 %v408
    %v410 = vpop.xlane.xlu0 %409
    %v411 = vrot.slane %v410, 4
    %v412 = vadd.f32 %v410, %v411
    %v413 = vrot.slane %v412, 2
    %v414 = vadd.f32 %v412, %v413
    %v415 = vrot.slane %v414, 1
    %v416 = vadd.f32 %v414, %v415
    %s417 = vtos %v416
    %s418 = smul.f32 %s417, 0.00390625
    %v419 = vstv %s418
    %v420 = vsub.f32 %v405, %v419
    %v421 = vmul.f32 %v420, %v420
    %v422 = vsel %vm183, %v421, 0.0
    %423 = vadd.xlane.f32.xlu0 %v422
    %v424 = vpop.xlane.xlu0 %423
    %v425 = vrot.slane %v424, 4
    %v426 = vadd.f32 %v424, %v425
    %v427 = vrot.slane %v426, 2
    %v428 = vadd.f32 %v426, %v427
    %v429 = vrot.slane %v428, 1
    %v430 = vadd.f32 %v428, %v429
    %s431 = vtos %v430
    %s432 = smul.f32 %s431, 0.00390625
    %s433 = sadd.f32 %s432, 1e-05
    %v434 = vstv %s433
    %v435 = vrsqrt.pop %v434
    %s436 = vtos %v435
    %s437 = smul.f32 %s406, %s436
    %v438 = vstv %s437
    %v439 = vmul.f32 %v420, %v438
    %v440 = vstv %s407
    %v441 = vadd.f32 %v439, %v440
    %v442 = vmax.f32 %v441, 0.0
    %s443 = sld [smem:[#allocation6 + $0xf]]
    %v444 = vstv %s443
    %v445 = vmul.f32 %v161, %v444
    %s446 = sld [smem:[#allocation6 + $0x10]]
    %v447 = vstv %s446
    %v448 = vmul.f32 %v161, %v447
    %450 = vrot.lane.b32.xlu0 %v448, 127
    %v451 = vpop.permute.xlu0 %450
    %v453 = vadd.f32 %v445, %v451
    %s454 = sld [smem:[#allocation6 + $0x11]]
    %v455 = vstv %s454
    %v456 = vmul.f32 %v161, %v455
    %458 = vrot.lane.b32.xlu0 %v456, 126
    %v459 = vpop.permute.xlu0 %458
    %v461 = vadd.f32 %v453, %v459
    %s462 = sld [smem:[#allocation12 + $0x5]]
    %s463 = sld [smem:[#allocation13 + $0x5]]
    %v464 = vsel %vm183, %v461, 0.0
    %465 = vadd.xlane.f32.xlu0 %v464
    %v466 = vpop.xlane.xlu0 %465
    %v467 = vrot.slane %v466, 4
    %v468 = vadd.f32 %v466, %v467
    %v469 = vrot.slane %v468, 2
    %v470 = vadd.f32 %v468, %v469
    %v471 = vrot.slane %v470, 1
    %v472 = vadd.f32 %v470, %v471
    %s473 = vtos %v472
    %s474 = smul.f32 %s473, 0.00390625
    %v475 = vstv %s474
    %v476 = vsub.f32 %v461, %v475
    %v477 = vmul.f32 %v476, %v476
    %v478 = vsel %vm183, %v477, 0.0
    %479 = vadd.xlane.f32.xlu0 %v478
    %v480 = vpop.xlane.xlu0 %479
    %v481 = vrot.slane %v480, 4
    %v482 = vadd.f32 %v480, %v481
    %v483 = vrot.slane %v482, 2
    %v484 = vadd.f32 %v482, %v483
    %v485 = vrot.slane %v484, 1
    %v486 = vadd.f32 %v484, %v485
    %s487 = vtos %v486
    %s488 = smul.f32 %s487, 0.00390625
    %s489 = sadd.f32 %s488, 1e-05
    %v490 = vstv %s489
    %v491 = vrsqrt.pop %v490
    %s492 = vtos %v491
    %s493 = smul.f32 %s462, %s492
    %v494 = vstv %s493
    %v495 = vmul.f32 %v476, %v494
    %v496 = vstv %s463
    %v497 = vadd.f32 %v495, %v496
    %v498 = vmax.f32 %v497, 0.0
    %s499 = sld [smem:[#allocation6 + $0x12]]
    %v500 = vstv %s499
    %v501 = vmul.f32 %v161, %v500
    %s502 = sld [smem:[#allocation6 + $0x13]]
    %v503 = vstv %s502
    %v504 = vmul.f32 %v161, %v503
    %506 = vrot.lane.b32.xlu0 %v504, 127
    %v507 = vpop.permute.xlu0 %506
    %v509 = vadd.f32 %v501, %v507
    %s510 = sld [smem:[#allocation6 + $0x14]]
    %v511 = vstv %s510
    %v512 = vmul.f32 %v161, %v511
    %514 = vrot.lane.b32.xlu0 %v512, 126
    %v515 = vpop.permute.xlu0 %514
    %v517 = vadd.f32 %v509, %v515
    %s518 = sld [smem:[#allocation12 + $0x6]]
    %s519 = sld [smem:[#allocation13 + $0x6]]
    %v520 = vsel %vm183, %v517, 0.0
    %521 = vadd.xlane.f32.xlu0 %v520
    %v522 = vpop.xlane.xlu0 %521
    %v523 = vrot.slane %v522, 4
    %v524 = vadd.f32 %v522, %v523
    %v525 = vrot.slane %v524, 2
    %v526 = vadd.f32 %v524, %v525
    %v527 = vrot.slane %v526, 1
    %v528 = vadd.f32 %v526, %v527
    %s529 = vtos %v528
    %s530 = smul.f32 %s529, 0.00390625
    %v531 = vstv %s530
    %v532 = vsub.f32 %v517, %v531
    %v533 = vmul.f32 %v532, %v532
    %v534 = vsel %vm183, %v533, 0.0
    %535 = vadd.xlane.f32.xlu0 %v534
    %v536 = vpop.xlane.xlu0 %535
    %v537 = vrot.slane %v536, 4
    %v538 = vadd.f32 %v536, %v537
    %v539 = vrot.slane %v538, 2
    %v540 = vadd.f32 %v538, %v539
    %v541 = vrot.slane %v540, 1
    %v542 = vadd.f32 %v540, %v541
    %s543 = vtos %v542
    %s544 = smul.f32 %s543, 0.00390625
    %s545 = sadd.f32 %s544, 1e-05
    %v546 = vstv %s545
    %v547 = vrsqrt.pop %v546
    %s548 = vtos %v547
    %s549 = smul.f32 %s518, %s548
    %v550 = vstv %s549
    %v551 = vmul.f32 %v532, %v550
    %v552 = vstv %s519
    %v553 = vadd.f32 %v551, %v552
    %v554 = vmax.f32 %v553, 0.0
    %s555 = sld [smem:[#allocation6 + $0x15]]
    %v556 = vstv %s555
    %v557 = vmul.f32 %v161, %v556
    %s558 = sld [smem:[#allocation6 + $0x16]]
    %v559 = vstv %s558
    %v560 = vmul.f32 %v161, %v559
    %562 = vrot.lane.b32.xlu0 %v560, 127
    %v563 = vpop.permute.xlu0 %562
    %v565 = vadd.f32 %v557, %v563
    %s566 = sld [smem:[#allocation6 + $0x17]]
    %v567 = vstv %s566
    %v568 = vmul.f32 %v161, %v567
    %570 = vrot.lane.b32.xlu0 %v568, 126
    %v571 = vpop.permute.xlu0 %570
    %v573 = vadd.f32 %v565, %v571
    %s574 = sld [smem:[#allocation12 + $0x7]]
    %s575 = sld [smem:[#allocation13 + $0x7]]
    %v576 = vsel %vm183, %v573, 0.0
    %577 = vadd.xlane.f32.xlu0 %v576
    %v578 = vpop.xlane.xlu0 %577
    %v579 = vrot.slane %v578, 4
    %v580 = vadd.f32 %v578, %v579
    %v581 = vrot.slane %v580, 2
    %v582 = vadd.f32 %v580, %v581
    %v583 = vrot.slane %v582, 1
    %v584 = vadd.f32 %v582, %v583
    %s585 = vtos %v584
    %s586 = smul.f32 %s585, 0.00390625
    %v587 = vstv %s586
    %v588 = vsub.f32 %v573, %v587
    %v589 = vmul.f32 %v588, %v588
    %v590 = vsel %vm183, %v589, 0.0
    %591 = vadd.xlane.f32.xlu0 %v590
    %v592 = vpop.xlane.xlu0 %591
    %v593 = vrot.slane %v592, 4
    %v594 = vadd.f32 %v592, %v593
    %v595 = vrot.slane %v594, 2
    %v596 = vadd.f32 %v594, %v595
    %v597 = vrot.slane %v596, 1
    %v598 = vadd.f32 %v596, %v597
    %s599 = vtos %v598
    %s600 = smul.f32 %s599, 0.00390625
    %s601 = sadd.f32 %s600, 1e-05
    %v602 = vstv %s601
    %v603 = vrsqrt.pop %v602
    %s604 = vtos %v603
    %s605 = smul.f32 %s574, %s604
    %v606 = vstv %s605
    %v607 = vmul.f32 %v588, %v606
    %v608 = vstv %s575
    %v609 = vadd.f32 %v607, %v608
    %v610 = vmax.f32 %v609, 0.0
    %612 = vrot.lane.b32.xlu0 %v218, 1
    %v613 = vpop.permute.xlu0 %612
    %v615 = vsel %vm158, 0.0, %v613
    %v616 = vsel %vm160, %v615, 0.0
    %618 = vrot.lane.b32.xlu0 %v274, 1
    %v619 = vpop.permute.xlu0 %618
    %v621 = vsel %vm158, 0.0, %v619
    %v622 = vsel %vm160, %v621, 0.0
    %624 = vrot.lane.b32.xlu0 %v330, 1
    %v625 = vpop.permute.xlu0 %624
    %v627 = vsel %vm158, 0.0, %v625
    %v628 = vsel %vm160, %v627, 0.0
    %630 = vrot.lane.b32.xlu0 %v386, 1
    %v631 = vpop.permute.xlu0 %630
    %v633 = vsel %vm158, 0.0, %v631
    %v634 = vsel %vm160, %v633, 0.0
    %636 = vrot.lane.b32.xlu0 %v442, 1
    %v637 = vpop.permute.xlu0 %636
    %v639 = vsel %vm158, 0.0, %v637
    %v640 = vsel %vm160, %v639, 0.0
    %642 = vrot.lane.b32.xlu0 %v498, 1
    %v643 = vpop.permute.xlu0 %642
    %v645 = vsel %vm158, 0.0, %v643
    %v646 = vsel %vm160, %v645, 0.0
    %648 = vrot.lane.b32.xlu0 %v554, 1
    %v649 = vpop.permute.xlu0 %648
    %v651 = vsel %vm158, 0.0, %v649
    %v652 = vsel %vm160, %v651, 0.0
    %654 = vrot.lane.b32.xlu0 %v610, 1
    %v655 = vpop.permute.xlu0 %654
    %v657 = vsel %vm158, 0.0, %v655
    %v658 = vsel %vm160, %v657, 0.0
    %s659 = sld [smem:[#allocation18]]
    %s660 = sld [smem:[#allocation18 + $0x1]]
    %s661 = sld [smem:[#allocation18 + $0x2]]
    %s662 = sld [smem:[#allocation7]]
    %v663 = vstv %s662
    %v664 = vmul.f32 %v616, %v663
    %s665 = sld [smem:[#allocation7 + $0x1]]
    %v666 = vstv %s665
    %v667 = vmul.f32 %v616, %v666
    %669 = vrot.lane.b32.xlu0 %v667, 127
    %v670 = vpop.permute.xlu0 %669
    %v672 = vadd.f32 %v664, %v670
    %s673 = sld [smem:[#allocation7 + $0x2]]
    %v674 = vstv %s673
    %v675 = vmul.f32 %v616, %v674
    %677 = vrot.lane.b32.xlu0 %v675, 126
    %v678 = vpop.permute.xlu0 %677
    %v680 = vadd.f32 %v672, %v678
    %s681 = sld [smem:[#allocation7 + $0x3]]
    %v682 = vstv %s681
    %v683 = vmul.f32 %v622, %v682
    %v684 = vadd.f32 %v680, %v683
    %s685 = sld [smem:[#allocation7 + $0x4]]
    %v686 = vstv %s685
    %v687 = vmul.f32 %v622, %v686
    %689 = vrot.lane.b32.xlu0 %v687, 127
    %v690 = vpop.permute.xlu0 %689
    %v692 = vadd.f32 %v684, %v690
    %s693 = sld [smem:[#allocation7 + $0x5]]
    %v694 = vstv %s693
    %v695 = vmul.f32 %v622, %v694
    %697 = vrot.lane.b32.xlu0 %v695, 126
    %v698 = vpop.permute.xlu0 %697
    %v700 = vadd.f32 %v692, %v698
    %s701 = sld [smem:[#allocation7 + $0x6]]
    %v702 = vstv %s701
    %v703 = vmul.f32 %v628, %v702
    %v704 = vadd.f32 %v700, %v703
    %s705 = sld [smem:[#allocation7 + $0x7]]
    %v706 = vstv %s705
    %v707 = vmul.f32 %v628, %v706
    %709 = vrot.lane.b32.xlu0 %v707, 127
    %v710 = vpop.permute.xlu0 %709
    %v712 = vadd.f32 %v704, %v710
    %s713 = sld [smem:[#allocation7 + $0x8]]
    %v714 = vstv %s713
    %v715 = vmul.f32 %v628, %v714
    %717 = vrot.lane.b32.xlu0 %v715, 126
    %v718 = vpop.permute.xlu0 %717
    %v720 = vadd.f32 %v712, %v718
    %s721 = sld [smem:[#allocation7 + $0x9]]
    %v722 = vstv %s721
    %v723 = vmul.f32 %v634, %v722
    %v724 = vadd.f32 %v720, %v723
    %s725 = sld [smem:[#allocation7 + $0xa]]
    %v726 = vstv %s725
    %v727 = vmul.f32 %v634, %v726
    %729 = vrot.lane.b32.xlu0 %v727, 127
    %v730 = vpop.permute.xlu0 %729
    %v732 = vadd.f32 %v724, %v730
    %s733 = sld [smem:[#allocation7 + $0xb]]
    %v734 = vstv %s733
    %v735 = vmul.f32 %v634, %v734
    %737 = vrot.lane.b32.xlu0 %v735, 126
    %v738 = vpop.permute.xlu0 %737
    %v740 = vadd.f32 %v732, %v738
    %s741 = sld [smem:[#allocation7 + $0xc]]
    %v742 = vstv %s741
    %v743 = vmul.f32 %v640, %v742
    %v744 = vadd.f32 %v740, %v743
    %s745 = sld [smem:[#allocation7 + $0xd]]
    %v746 = vstv %s745
    %v747 = vmul.f32 %v640, %v746
    %749 = vrot.lane.b32.xlu0 %v747, 127
    %v750 = vpop.permute.xlu0 %749
    %v752 = vadd.f32 %v744, %v750
    %s753 = sld [smem:[#allocation7 + $0xe]]
    %v754 = vstv %s753
    %v755 = vmul.f32 %v640, %v754
    %757 = vrot.lane.b32.xlu0 %v755, 126
    %v758 = vpop.permute.xlu0 %757
    %v760 = vadd.f32 %v752, %v758
    %s761 = sld [smem:[#allocation7 + $0xf]]
    %v762 = vstv %s761
    %v763 = vmul.f32 %v646, %v762
    %v764 = vadd.f32 %v760, %v763
    %s765 = sld [smem:[#allocation7 + $0x10]]
    %v766 = vstv %s765
    %v767 = vmul.f32 %v646, %v766
    %769 = vrot.lane.b32.xlu0 %v767, 127
    %v770 = vpop.permute.xlu0 %769
    %v772 = vadd.f32 %v764, %v770
    %s773 = sld [smem:[#allocation7 + $0x11]]
    %v774 = vstv %s773
    %v775 = vmul.f32 %v646, %v774
    %777 = vrot.lane.b32.xlu0 %v775, 126
    %v778 = vpop.permute.xlu0 %777
    %v780 = vadd.f32 %v772, %v778
    %s781 = sld [smem:[#allocation7 + $0x12]]
    %v782 = vstv %s781
    %v783 = vmul.f32 %v652, %v782
    %v784 = vadd.f32 %v780, %v783
    %s785 = sld [smem:[#allocation7 + $0x13]]
    %v786 = vstv %s785
    %v787 = vmul.f32 %v652, %v786
    %789 = vrot.lane.b32.xlu0 %v787, 127
    %v790 = vpop.permute.xlu0 %789
    %v792 = vadd.f32 %v784, %v790
    %s793 = sld [smem:[#allocation7 + $0x14]]
    %v794 = vstv %s793
    %v795 = vmul.f32 %v652, %v794
    %797 = vrot.lane.b32.xlu0 %v795, 126
    %v798 = vpop.permute.xlu0 %797
    %v800 = vadd.f32 %v792, %v798
    %s801 = sld [smem:[#allocation7 + $0x15]]
    %v802 = vstv %s801
    %v803 = vmul.f32 %v658, %v802
    %v804 = vadd.f32 %v800, %v803
    %s805 = sld [smem:[#allocation7 + $0x16]]
    %v806 = vstv %s805
    %v807 = vmul.f32 %v658, %v806
    %809 = vrot.lane.b32.xlu0 %v807, 127
    %v810 = vpop.permute.xlu0 %809
    %v812 = vadd.f32 %v804, %v810
    %s813 = sld [smem:[#allocation7 + $0x17]]
    %v814 = vstv %s813
    %v815 = vmul.f32 %v658, %v814
    %817 = vrot.lane.b32.xlu0 %v815, 126
    %v818 = vpop.permute.xlu0 %817
    %v820 = vadd.f32 %v812, %v818
    %s821 = sld [smem:[#allocation15]]
    %s822 = sld [smem:[#allocation16]]
    %v823 = vsel %vm183, %v820, 0.0
    %824 = vadd.xlane.f32.xlu0 %v823
    %v825 = vpop.xlane.xlu0 %824
    %v826 = vrot.slane %v825, 4
    %v827 = vadd.f32 %v825, %v826
    %v828 = vrot.slane %v827, 2
    %v829 = vadd.f32 %v827, %v828
    %v830 = vrot.slane %v829, 1
    %v831 = vadd.f32 %v829, %v830
    %s832 = vtos %v831
    %s833 = smul.f32 %s832, 0.00390625
    %v834 = vstv %s833
    %v835 = vsub.f32 %v820, %v834
    %v836 = vmul.f32 %v835, %v835
    %v837 = vsel %vm183, %v836, 0.0
    %838 = vadd.xlane.f32.xlu0 %v837
    %v839 = vpop.xlane.xlu0 %838
    %v840 = vrot.slane %v839, 4
    %v841 = vadd.f32 %v839, %v840
    %v842 = vrot.slane %v841, 2
    %v843 = vadd.f32 %v841, %v842
    %v844 = vrot.slane %v843, 1
    %v845 = vadd.f32 %v843, %v844
    %s846 = vtos %v845
    %s847 = smul.f32 %s846, 0.00390625
    %s848 = sadd.f32 %s847, 1e-05
    %v849 = vstv %s848
    %v850 = vrsqrt.pop %v849
    %s851 = vtos %v850
    %s852 = smul.f32 %s821, %s851
    %v853 = vstv %s852
    %v854 = vmul.f32 %v835, %v853
    %v855 = vstv %s822
    %v856 = vadd.f32 %v854, %v855
    %v857 = vmax.f32 %v856, 0.0
    %s858 = sld [smem:[#allocation10]]
    %v859 = vstv %s858
    %v860 = vmul.f32 %v859, %v153
    %v861 = vadd.f32 %v857, %v860
    %v862 = vstv %s661
    %v863 = vmul.f32 %v862, %v861
    %v864 = vstv %s660
    %v865 = vadd.f32 %v864, %v863
    %v866 = vmul.f32 %v861, %v865
    %v867 = vstv %s659
    %v868 = vadd.f32 %v867, %v866
    %v869 = vmul.f32 %v861, %v868
    %871 = vrot.lane.b32.xlu0 %v869, 1
    %v872 = vpop.permute.xlu0 %871
    %v874 = vsel %vm158, 0.0, %v872
    %v875 = vsel %vm160, %v874, 0.0
    %s876 = sld [smem:[#allocation9]]
    %v877 = vstv %s876
    %v878 = vmul.f32 %v875, %v877
    %s879 = sld [smem:[#allocation9 + $0x1]]
    %v880 = vstv %s879
    %v881 = vmul.f32 %v875, %v880
    %883 = vrot.lane.b32.xlu0 %v881, 127
    %v884 = vpop.permute.xlu0 %883
    %v886 = vadd.f32 %v878, %v884
    %s887 = sld [smem:[#allocation9 + $0x2]]
    %v888 = vstv %s887
    %v889 = vmul.f32 %v875, %v888
    %891 = vrot.lane.b32.xlu0 %v889, 126
    %v892 = vpop.permute.xlu0 %891
    %v894 = vadd.f32 %v886, %v892
    %s895 = sld [smem:[#allocation7 + $0x18]]
    %v896 = vstv %s895
    %v897 = vmul.f32 %v616, %v896
    %s898 = sld [smem:[#allocation7 + $0x19]]
    %v899 = vstv %s898
    %v900 = vmul.f32 %v616, %v899
    %902 = vrot.lane.b32.xlu0 %v900, 127
    %v903 = vpop.permute.xlu0 %902
    %v905 = vadd.f32 %v897, %v903
    %s906 = sld [smem:[#allocation7 + $0x1a]]
    %v907 = vstv %s906
    %v908 = vmul.f32 %v616, %v907
    %910 = vrot.lane.b32.xlu0 %v908, 126
    %v911 = vpop.permute.xlu0 %910
    %v913 = vadd.f32 %v905, %v911
    %s914 = sld [smem:[#allocation7 + $0x1b]]
    %v915 = vstv %s914
    %v916 = vmul.f32 %v622, %v915
    %v917 = vadd.f32 %v913, %v916
    %s918 = sld [smem:[#allocation7 + $0x1c]]
    %v919 = vstv %s918
    %v920 = vmul.f32 %v622, %v919
    %922 = vrot.lane.b32.xlu0 %v920, 127
    %v923 = vpop.permute.xlu0 %922
    %v925 = vadd.f32 %v917, %v923
    %s926 = sld [smem:[#allocation7 + $0x1d]]
    %v927 = vstv %s926
    %v928 = vmul.f32 %v622, %v927
    %930 = vrot.lane.b32.xlu0 %v928, 126
    %v931 = vpop.permute.xlu0 %930
    %v933 = vadd.f32 %v925, %v931
    %s934 = sld [smem:[#allocation7 + $0x1e]]
    %v935 = vstv %s934
    %v936 = vmul.f32 %v628, %v935
    %v937 = vadd.f32 %v933, %v936
    %s938 = sld [smem:[#allocation7 + $0x1f]]
    %v939 = vstv %s938
    %v940 = vmul.f32 %v628, %v939
    %942 = vrot.lane.b32.xlu0 %v940, 127
    %v943 = vpop.permute.xlu0 %942
    %v945 = vadd.f32 %v937, %v943
    %s946 = sld [smem:[#allocation7 + $0x20]]
    %v947 = vstv %s946
    %v948 = vmul.f32 %v628, %v947
    %950 = vrot.lane.b32.xlu0 %v948, 126
    %v951 = vpop.permute.xlu0 %950
    %v953 = vadd.f32 %v945, %v951
    %s954 = sld [smem:[#allocation7 + $0x21]]
    %v955 = vstv %s954
    %v956 = vmul.f32 %v634, %v955
    %v957 = vadd.f32 %v953, %v956
    %s958 = sld [smem:[#allocation7 + $0x22]]
    %v959 = vstv %s958
    %v960 = vmul.f32 %v634, %v959
    %962 = vrot.lane.b32.xlu0 %v960, 127
    %v963 = vpop.permute.xlu0 %962
    %v965 = vadd.f32 %v957, %v963
    %s966 = sld [smem:[#allocation7 + $0x23]]
    %v967 = vstv %s966
    %v968 = vmul.f32 %v634, %v967
    %970 = vrot.lane.b32.xlu0 %v968, 126
    %v971 = vpop.permute.xlu0 %970
    %v973 = vadd.f32 %v965, %v971
    %s974 = sld [smem:[#allocation7 + $0x24]]
    %v975 = vstv %s974
    %v976 = vmul.f32 %v640, %v975
    %v977 = vadd.f32 %v973, %v976
    %s978 = sld [smem:[#allocation7 + $0x25]]
    %v979 = vstv %s978
    %v980 = vmul.f32 %v640, %v979
    %982 = vrot.lane.b32.xlu0 %v980, 127
    %v983 = vpop.permute.xlu0 %982
    %v985 = vadd.f32 %v977, %v983
    %s986 = sld [smem:[#allocation7 + $0x26]]
    %v987 = vstv %s986
    %v988 = vmul.f32 %v640, %v987
    %990 = vrot.lane.b32.xlu0 %v988, 126
    %v991 = vpop.permute.xlu0 %990
    %v993 = vadd.f32 %v985, %v991
    %s994 = sld [smem:[#allocation7 + $0x27]]
    %v995 = vstv %s994
    %v996 = vmul.f32 %v646, %v995
    %v997 = vadd.f32 %v993, %v996
    %s998 = sld [smem:[#allocation7 + $0x28]]
    %v999 = vstv %s998
    %v1000 = vmul.f32 %v646, %v999
    %1002 = vrot.lane.b32.xlu0 %v1000, 127
    %v1003 = vpop.permute.xlu0 %1002
    %v1005 = vadd.f32 %v997, %v1003
    %s1006 = sld [smem:[#allocation7 + $0x29]]
    %v1007 = vstv %s1006
    %v1008 = vmul.f32 %v646, %v1007
    %1010 = vrot.lane.b32.xlu0 %v1008, 126
    %v1011 = vpop.permute.xlu0 %1010
    %v1013 = vadd.f32 %v1005, %v1011
    %s1014 = sld [smem:[#allocation7 + $0x2a]]
    %v1015 = vstv %s1014
    %v1016 = vmul.f32 %v652, %v1015
    %v1017 = vadd.f32 %v1013, %v1016
    %s1018 = sld [smem:[#allocation7 + $0x2b]]
    %v1019 = vstv %s1018
    %v1020 = vmul.f32 %v652, %v1019
    %1022 = vrot.lane.b32.xlu0 %v1020, 127
    %v1023 = vpop.permute.xlu0 %1022
    %v1025 = vadd.f32 %v1017, %v1023
    %s1026 = sld [smem:[#allocation7 + $0x2c]]
    %v1027 = vstv %s1026
    %v1028 = vmul.f32 %v652, %v1027
    %1030 = vrot.lane.b32.xlu0 %v1028, 126
    %v1031 = vpop.permute.xlu0 %1030
    %v1033 = vadd.f32 %v1025, %v1031
    %s1034 = sld [smem:[#allocation7 + $0x2d]]
    %v1035 = vstv %s1034
    %v1036 = vmul.f32 %v658, %v1035
    %v1037 = vadd.f32 %v1033, %v1036
    %s1038 = sld [smem:[#allocation7 + $0x2e]]
    %v1039 = vstv %s1038
    %v1040 = vmul.f32 %v658, %v1039
    %1042 = vrot.lane.b32.xlu0 %v1040, 127
    %v1043 = vpop.permute.xlu0 %1042
    %v1045 = vadd.f32 %v1037, %v1043
    %s1046 = sld [smem:[#allocation7 + $0x2f]]
    %v1047 = vstv %s1046
    %v1048 = vmul.f32 %v658, %v1047
    %1050 = vrot.lane.b32.xlu0 %v1048, 126
    %v1051 = vpop.permute.xlu0 %1050
    %v1053 = vadd.f32 %v1045, %v1051
    %s1054 = sld [smem:[#allocation15 + $0x1]]
    %s1055 = sld [smem:[#allocation16 + $0x1]]
    %v1056 = vsel %vm183, %v1053, 0.0
    %1057 = vadd.xlane.f32.xlu0 %v1056
    %v1058 = vpop.xlane.xlu0 %1057
    %v1059 = vrot.slane %v1058, 4
    %v1060 = vadd.f32 %v1058, %v1059
    %v1061 = vrot.slane %v1060, 2
    %v1062 = vadd.f32 %v1060, %v1061
    %v1063 = vrot.slane %v1062, 1
    %v1064 = vadd.f32 %v1062, %v1063
    %s1065 = vtos %v1064
    %s1066 = smul.f32 %s1065, 0.00390625
    %v1067 = vstv %s1066
    %v1068 = vsub.f32 %v1053, %v1067
    %v1069 = vmul.f32 %v1068, %v1068
    %v1070 = vsel %vm183, %v1069, 0.0
    %1071 = vadd.xlane.f32.xlu0 %v1070
    %v1072 = vpop.xlane.xlu0 %1071
    %v1073 = vrot.slane %v1072, 4
    %v1074 = vadd.f32 %v1072, %v1073
    %v1075 = vrot.slane %v1074, 2
    %v1076 = vadd.f32 %v1074, %v1075
    %v1077 = vrot.slane %v1076, 1
    %v1078 = vadd.f32 %v1076, %v1077
    %s1079 = vtos %v1078
    %s1080 = smul.f32 %s1079, 0.00390625
    %s1081 = sadd.f32 %s1080, 1e-05
    %v1082 = vstv %s1081
    %v1083 = vrsqrt.pop %v1082
    %s1084 = vtos %v1083
    %s1085 = smul.f32 %s1054, %s1084
    %v1086 = vstv %s1085
    %v1087 = vmul.f32 %v1068, %v1086
    %v1088 = vstv %s1055
    %v1089 = vadd.f32 %v1087, %v1088
    %v1090 = vmax.f32 %v1089, 0.0
    %s1091 = sld [smem:[#allocation10 + $0x1]]
    %v1092 = vstv %s1091
    %v1093 = vmul.f32 %v1092, %v153
    %v1094 = vadd.f32 %v1090, %v1093
    %v1095 = vmul.f32 %v862, %v1094
    %v1096 = vadd.f32 %v864, %v1095
    %v1097 = vmul.f32 %v1094, %v1096
    %v1098 = vadd.f32 %v867, %v1097
    %v1099 = vmul.f32 %v1094, %v1098
    %1101 = vrot.lane.b32.xlu0 %v1099, 1
    %v1102 = vpop.permute.xlu0 %1101
    %v1104 = vsel %vm158, 0.0, %v1102
    %v1105 = vsel %vm160, %v1104, 0.0
    %s1106 = sld [smem:[#allocation9 + $0x3]]
    %v1107 = vstv %s1106
    %v1108 = vmul.f32 %v1105, %v1107
    %v1109 = vadd.f32 %v894, %v1108
    %s1110 = sld [smem:[#allocation9 + $0x4]]
    %v1111 = vstv %s1110
    %v1112 = vmul.f32 %v1105, %v1111
    %1114 = vrot.lane.b32.xlu0 %v1112, 127
    %v1115 = vpop.permute.xlu0 %1114
    %v1117 = vadd.f32 %v1109, %v1115
    %s1118 = sld [smem:[#allocation9 + $0x5]]
    %v1119 = vstv %s1118
    %v1120 = vmul.f32 %v1105, %v1119
    %1122 = vrot.lane.b32.xlu0 %v1120, 126
    %v1123 = vpop.permute.xlu0 %1122
    %v1125 = vadd.f32 %v1117, %v1123
    %s1126 = sld [smem:[#allocation7 + $0x30]]
    %v1127 = vstv %s1126
    %v1128 = vmul.f32 %v616, %v1127
    %s1129 = sld [smem:[#allocation7 + $0x31]]
    %v1130 = vstv %s1129
    %v1131 = vmul.f32 %v616, %v1130
    %1133 = vrot.lane.b32.xlu0 %v1131, 127
    %v1134 = vpop.permute.xlu0 %1133
    %v1136 = vadd.f32 %v1128, %v1134
    %s1137 = sld [smem:[#allocation7 + $0x32]]
    %v1138 = vstv %s1137
    %v1139 = vmul.f32 %v616, %v1138
    %1141 = vrot.lane.b32.xlu0 %v1139, 126
    %v1142 = vpop.permute.xlu0 %1141
    %v1144 = vadd.f32 %v1136, %v1142
    %s1145 = sld [smem:[#allocation7 + $0x33]]
    %v1146 = vstv %s1145
    %v1147 = vmul.f32 %v622, %v1146
    %v1148 = vadd.f32 %v1144, %v1147
    %s1149 = sld [smem:[#allocation7 + $0x34]]
    %v1150 = vstv %s1149
    %v1151 = vmul.f32 %v622, %v1150
    %1153 = vrot.lane.b32.xlu0 %v1151, 127
    %v1154 = vpop.permute.xlu0 %1153
    %v1156 = vadd.f32 %v1148, %v1154
    %s1157 = sld [smem:[#allocation7 + $0x35]]
    %v1158 = vstv %s1157
    %v1159 = vmul.f32 %v622, %v1158
    %1161 = vrot.lane.b32.xlu0 %v1159, 126
    %v1162 = vpop.permute.xlu0 %1161
    %v1164 = vadd.f32 %v1156, %v1162
    %s1165 = sld [smem:[#allocation7 + $0x36]]
    %v1166 = vstv %s1165
    %v1167 = vmul.f32 %v628, %v1166
    %v1168 = vadd.f32 %v1164, %v1167
    %s1169 = sld [smem:[#allocation7 + $0x37]]
    %v1170 = vstv %s1169
    %v1171 = vmul.f32 %v628, %v1170
    %1173 = vrot.lane.b32.xlu0 %v1171, 127
    %v1174 = vpop.permute.xlu0 %1173
    %v1176 = vadd.f32 %v1168, %v1174
    %s1177 = sld [smem:[#allocation7 + $0x38]]
    %v1178 = vstv %s1177
    %v1179 = vmul.f32 %v628, %v1178
    %1181 = vrot.lane.b32.xlu0 %v1179, 126
    %v1182 = vpop.permute.xlu0 %1181
    %v1184 = vadd.f32 %v1176, %v1182
    %s1185 = sld [smem:[#allocation7 + $0x39]]
    %v1186 = vstv %s1185
    %v1187 = vmul.f32 %v634, %v1186
    %v1188 = vadd.f32 %v1184, %v1187
    %s1189 = sld [smem:[#allocation7 + $0x3a]]
    %v1190 = vstv %s1189
    %v1191 = vmul.f32 %v634, %v1190
    %1193 = vrot.lane.b32.xlu0 %v1191, 127
    %v1194 = vpop.permute.xlu0 %1193
    %v1196 = vadd.f32 %v1188, %v1194
    %s1197 = sld [smem:[#allocation7 + $0x3b]]
    %v1198 = vstv %s1197
    %v1199 = vmul.f32 %v634, %v1198
    %1201 = vrot.lane.b32.xlu0 %v1199, 126
    %v1202 = vpop.permute.xlu0 %1201
    %v1204 = vadd.f32 %v1196, %v1202
    %s1205 = sld [smem:[#allocation7 + $0x3c]]
    %v1206 = vstv %s1205
    %v1207 = vmul.f32 %v640, %v1206
    %v1208 = vadd.f32 %v1204, %v1207
    %s1209 = sld [smem:[#allocation7 + $0x3d]]
    %v1210 = vstv %s1209
    %v1211 = vmul.f32 %v640, %v1210
    %1213 = vrot.lane.b32.xlu0 %v1211, 127
    %v1214 = vpop.permute.xlu0 %1213
    %v1216 = vadd.f32 %v1208, %v1214
    %s1217 = sld [smem:[#allocation7 + $0x3e]]
    %v1218 = vstv %s1217
    %v1219 = vmul.f32 %v640, %v1218
    %1221 = vrot.lane.b32.xlu0 %v1219, 126
    %v1222 = vpop.permute.xlu0 %1221
    %v1224 = vadd.f32 %v1216, %v1222
    %s1225 = sld [smem:[#allocation7 + $0x3f]]
    %v1226 = vstv %s1225
    %v1227 = vmul.f32 %v646, %v1226
    %v1228 = vadd.f32 %v1224, %v1227
    %s1229 = sld [smem:[#allocation7 + $0x40]]
    %v1230 = vstv %s1229
    %v1231 = vmul.f32 %v646, %v1230
    %1233 = vrot.lane.b32.xlu0 %v1231, 127
    %v1234 = vpop.permute.xlu0 %1233
    %v1236 = vadd.f32 %v1228, %v1234
    %s1237 = sld [smem:[#allocation7 + $0x41]]
    %v1238 = vstv %s1237
    %v1239 = vmul.f32 %v646, %v1238
    %1241 = vrot.lane.b32.xlu0 %v1239, 126
    %v1242 = vpop.permute.xlu0 %1241
    %v1244 = vadd.f32 %v1236, %v1242
    %s1245 = sld [smem:[#allocation7 + $0x42]]
    %v1246 = vstv %s1245
    %v1247 = vmul.f32 %v652, %v1246
    %v1248 = vadd.f32 %v1244, %v1247
    %s1249 = sld [smem:[#allocation7 + $0x43]]
    %v1250 = vstv %s1249
    %v1251 = vmul.f32 %v652, %v1250
    %1253 = vrot.lane.b32.xlu0 %v1251, 127
    %v1254 = vpop.permute.xlu0 %1253
    %v1256 = vadd.f32 %v1248, %v1254
    %s1257 = sld [smem:[#allocation7 + $0x44]]
    %v1258 = vstv %s1257
    %v1259 = vmul.f32 %v652, %v1258
    %1261 = vrot.lane.b32.xlu0 %v1259, 126
    %v1262 = vpop.permute.xlu0 %1261
    %v1264 = vadd.f32 %v1256, %v1262
    %s1265 = sld [smem:[#allocation7 + $0x45]]
    %v1266 = vstv %s1265
    %v1267 = vmul.f32 %v658, %v1266
    %v1268 = vadd.f32 %v1264, %v1267
    %s1269 = sld [smem:[#allocation7 + $0x46]]
    %v1270 = vstv %s1269
    %v1271 = vmul.f32 %v658, %v1270
    %1273 = vrot.lane.b32.xlu0 %v1271, 127
    %v1274 = vpop.permute.xlu0 %1273
    %v1276 = vadd.f32 %v1268, %v1274
    %s1277 = sld [smem:[#allocation7 + $0x47]]
    %v1278 = vstv %s1277
    %v1279 = vmul.f32 %v658, %v1278
    %1281 = vrot.lane.b32.xlu0 %v1279, 126
    %v1282 = vpop.permute.xlu0 %1281
    %v1284 = vadd.f32 %v1276, %v1282
    %s1285 = sld [smem:[#allocation15 + $0x2]]
    %s1286 = sld [smem:[#allocation16 + $0x2]]
    %v1287 = vsel %vm183, %v1284, 0.0
    %1288 = vadd.xlane.f32.xlu0 %v1287
    %v1289 = vpop.xlane.xlu0 %1288
    %v1290 = vrot.slane %v1289, 4
    %v1291 = vadd.f32 %v1289, %v1290
    %v1292 = vrot.slane %v1291, 2
    %v1293 = vadd.f32 %v1291, %v1292
    %v1294 = vrot.slane %v1293, 1
    %v1295 = vadd.f32 %v1293, %v1294
    %s1296 = vtos %v1295
    %s1297 = smul.f32 %s1296, 0.00390625
    %v1298 = vstv %s1297
    %v1299 = vsub.f32 %v1284, %v1298
    %v1300 = vmul.f32 %v1299, %v1299
    %v1301 = vsel %vm183, %v1300, 0.0
    %1302 = vadd.xlane.f32.xlu0 %v1301
    %v1303 = vpop.xlane.xlu0 %1302
    %v1304 = vrot.slane %v1303, 4
    %v1305 = vadd.f32 %v1303, %v1304
    %v1306 = vrot.slane %v1305, 2
    %v1307 = vadd.f32 %v1305, %v1306
    %v1308 = vrot.slane %v1307, 1
    %v1309 = vadd.f32 %v1307, %v1308
    %s1310 = vtos %v1309
    %s1311 = smul.f32 %s1310, 0.00390625
    %s1312 = sadd.f32 %s1311, 1e-05
    %v1313 = vstv %s1312
    %v1314 = vrsqrt.pop %v1313
    %s1315 = vtos %v1314
    %s1316 = smul.f32 %s1285, %s1315
    %v1317 = vstv %s1316
    %v1318 = vmul.f32 %v1299, %v1317
    %v1319 = vstv %s1286
    %v1320 = vadd.f32 %v1318, %v1319
    %v1321 = vmax.f32 %v1320, 0.0
    %s1322 = sld [smem:[#allocation10 + $0x2]]
    %v1323 = vstv %s1322
    %v1324 = vmul.f32 %v1323, %v153
    %v1325 = vadd.f32 %v1321, %v1324
    %v1326 = vmul.f32 %v862, %v1325
    %v1327 = vadd.f32 %v864, %v1326
    %v1328 = vmul.f32 %v1325, %v1327
    %v1329 = vadd.f32 %v867, %v1328
    %v1330 = vmul.f32 %v1325, %v1329
    %1332 = vrot.lane.b32.xlu0 %v1330, 1
    %v1333 = vpop.permute.xlu0 %1332
    %v1335 = vsel %vm158, 0.0, %v1333
    %v1336 = vsel %vm160, %v1335, 0.0
    %s1337 = sld [smem:[#allocation9 + $0x6]]
    %v1338 = vstv %s1337
    %v1339 = vmul.f32 %v1336, %v1338
    %v1340 = vadd.f32 %v1125, %v1339
    %s1341 = sld [smem:[#allocation9 + $0x7]]
    %v1342 = vstv %s1341
    %v1343 = vmul.f32 %v1336, %v1342
    %1345 = vrot.lane.b32.xlu0 %v1343, 127
    %v1346 = vpop.permute.xlu0 %1345
    %v1348 = vadd.f32 %v1340, %v1346
    %s1349 = sld [smem:[#allocation9 + $0x8]]
    %v1350 = vstv %s1349
    %v1351 = vmul.f32 %v1336, %v1350
    %1353 = vrot.lane.b32.xlu0 %v1351, 126
    %v1354 = vpop.permute.xlu0 %1353
    %v1356 = vadd.f32 %v1348, %v1354
    %s1357 = sld [smem:[#allocation7 + $0x48]]
    %v1358 = vstv %s1357
    %v1359 = vmul.f32 %v616, %v1358
    %s1360 = sld [smem:[#allocation7 + $0x49]]
    %v1361 = vstv %s1360
    %v1362 = vmul.f32 %v616, %v1361
    %1364 = vrot.lane.b32.xlu0 %v1362, 127
    %v1365 = vpop.permute.xlu0 %1364
    %v1367 = vadd.f32 %v1359, %v1365
    %s1368 = sld [smem:[#allocation7 + $0x4a]]
    %v1369 = vstv %s1368
    %v1370 = vmul.f32 %v616, %v1369
    %1372 = vrot.lane.b32.xlu0 %v1370, 126
    %v1373 = vpop.permute.xlu0 %1372
    %v1375 = vadd.f32 %v1367, %v1373
    %s1376 = sld [smem:[#allocation7 + $0x4b]]
    %v1377 = vstv %s1376
    %v1378 = vmul.f32 %v622, %v1377
    %v1379 = vadd.f32 %v1375, %v1378
    %s1380 = sld [smem:[#allocation7 + $0x4c]]
    %v1381 = vstv %s1380
    %v1382 = vmul.f32 %v622, %v1381
    %1384 = vrot.lane.b32.xlu0 %v1382, 127
    %v1385 = vpop.permute.xlu0 %1384
    %v1387 = vadd.f32 %v1379, %v1385
    %s1388 = sld [smem:[#allocation7 + $0x4d]]
    %v1389 = vstv %s1388
    %v1390 = vmul.f32 %v622, %v1389
    %1392 = vrot.lane.b32.xlu0 %v1390, 126
    %v1393 = vpop.permute.xlu0 %1392
    %v1395 = vadd.f32 %v1387, %v1393
    %s1396 = sld [smem:[#allocation7 + $0x4e]]
    %v1397 = vstv %s1396
    %v1398 = vmul.f32 %v628, %v1397
    %v1399 = vadd.f32 %v1395, %v1398
    %s1400 = sld [smem:[#allocation7 + $0x4f]]
    %v1401 = vstv %s1400
    %v1402 = vmul.f32 %v628, %v1401
    %1404 = vrot.lane.b32.xlu0 %v1402, 127
    %v1405 = vpop.permute.xlu0 %1404
    %v1407 = vadd.f32 %v1399, %v1405
    %s1408 = sld [smem:[#allocation7 + $0x50]]
    %v1409 = vstv %s1408
    %v1410 = vmul.f32 %v628, %v1409
    %1412 = vrot.lane.b32.xlu0 %v1410, 126
    %v1413 = vpop.permute.xlu0 %1412
    %v1415 = vadd.f32 %v1407, %v1413
    %s1416 = sld [smem:[#allocation7 + $0x51]]
    %v1417 = vstv %s1416
    %v1418 = vmul.f32 %v634, %v1417
    %v1419 = vadd.f32 %v1415, %v1418
    %s1420 = sld [smem:[#allocation7 + $0x52]]
    %v1421 = vstv %s1420
    %v1422 = vmul.f32 %v634, %v1421
    %1424 = vrot.lane.b32.xlu0 %v1422, 127
    %v1425 = vpop.permute.xlu0 %1424
    %v1427 = vadd.f32 %v1419, %v1425
    %s1428 = sld [smem:[#allocation7 + $0x53]]
    %v1429 = vstv %s1428
    %v1430 = vmul.f32 %v634, %v1429
    %1432 = vrot.lane.b32.xlu0 %v1430, 126
    %v1433 = vpop.permute.xlu0 %1432
    %v1435 = vadd.f32 %v1427, %v1433
    %s1436 = sld [smem:[#allocation7 + $0x54]]
    %v1437 = vstv %s1436
    %v1438 = vmul.f32 %v640, %v1437
    %v1439 = vadd.f32 %v1435, %v1438
    %s1440 = sld [smem:[#allocation7 + $0x55]]
    %v1441 = vstv %s1440
    %v1442 = vmul.f32 %v640, %v1441
    %1444 = vrot.lane.b32.xlu0 %v1442, 127
    %v1445 = vpop.permute.xlu0 %1444
    %v1447 = vadd.f32 %v1439, %v1445
    %s1448 = sld [smem:[#allocation7 + $0x56]]
    %v1449 = vstv %s1448
    %v1450 = vmul.f32 %v640, %v1449
    %1452 = vrot.lane.b32.xlu0 %v1450, 126
    %v1453 = vpop.permute.xlu0 %1452
    %v1455 = vadd.f32 %v1447, %v1453
    %s1456 = sld [smem:[#allocation7 + $0x57]]
    %v1457 = vstv %s1456
    %v1458 = vmul.f32 %v646, %v1457
    %v1459 = vadd.f32 %v1455, %v1458
    %s1460 = sld [smem:[#allocation7 + $0x58]]
    %v1461 = vstv %s1460
    %v1462 = vmul.f32 %v646, %v1461
    %1464 = vrot.lane.b32.xlu0 %v1462, 127
    %v1465 = vpop.permute.xlu0 %1464
    %v1467 = vadd.f32 %v1459, %v1465
    %s1468 = sld [smem:[#allocation7 + $0x59]]
    %v1469 = vstv %s1468
    %v1470 = vmul.f32 %v646, %v1469
    %1472 = vrot.lane.b32.xlu0 %v1470, 126
    %v1473 = vpop.permute.xlu0 %1472
    %v1475 = vadd.f32 %v1467, %v1473
    %s1476 = sld [smem:[#allocation7 + $0x5a]]
    %v1477 = vstv %s1476
    %v1478 = vmul.f32 %v652, %v1477
    %v1479 = vadd.f32 %v1475, %v1478
    %s1480 = sld [smem:[#allocation7 + $0x5b]]
    %v1481 = vstv %s1480
    %v1482 = vmul.f32 %v652, %v1481
    %1484 = vrot.lane.b32.xlu0 %v1482, 127
    %v1485 = vpop.permute.xlu0 %1484
    %v1487 = vadd.f32 %v1479, %v1485
    %s1488 = sld [smem:[#allocation7 + $0x5c]]
    %v1489 = vstv %s1488
    %v1490 = vmul.f32 %v652, %v1489
    %1492 = vrot.lane.b32.xlu0 %v1490, 126
    %v1493 = vpop.permute.xlu0 %1492
    %v1495 = vadd.f32 %v1487, %v1493
    %s1496 = sld [smem:[#allocation7 + $0x5d]]
    %v1497 = vstv %s1496
    %v1498 = vmul.f32 %v658, %v1497
    %v1499 = vadd.f32 %v1495, %v1498
    %s1500 = sld [smem:[#allocation7 + $0x5e]]
    %v1501 = vstv %s1500
    %v1502 = vmul.f32 %v658, %v1501
    %1504 = vrot.lane.b32.xlu0 %v1502, 127
    %v1505 = vpop.permute.xlu0 %1504
    %v1507 = vadd.f32 %v1499, %v1505
    %s1508 = sld [smem:[#allocation7 + $0x5f]]
    %v1509 = vstv %s1508
    %v1510 = vmul.f32 %v658, %v1509
    %1512 = vrot.lane.b32.xlu0 %v1510, 126
    %v1513 = vpop.permute.xlu0 %1512
    %v1515 = vadd.f32 %v1507, %v1513
    %s1516 = sld [smem:[#allocation15 + $0x3]]
    %s1517 = sld [smem:[#allocation16 + $0x3]]
    %v1518 = vsel %vm183, %v1515, 0.0
    %1519 = vadd.xlane.f32.xlu0 %v1518
    %v1520 = vpop.xlane.xlu0 %1519
    %v1521 = vrot.slane %v1520, 4
    %v1522 = vadd.f32 %v1520, %v1521
    %v1523 = vrot.slane %v1522, 2
    %v1524 = vadd.f32 %v1522, %v1523
    %v1525 = vrot.slane %v1524, 1
    %v1526 = vadd.f32 %v1524, %v1525
    %s1527 = vtos %v1526
    %s1528 = smul.f32 %s1527, 0.00390625
    %v1529 = vstv %s1528
    %v1530 = vsub.f32 %v1515, %v1529
    %v1531 = vmul.f32 %v1530, %v1530
    %v1532 = vsel %vm183, %v1531, 0.0
    %1533 = vadd.xlane.f32.xlu0 %v1532
    %v1534 = vpop.xlane.xlu0 %1533
    %v1535 = vrot.slane %v1534, 4
    %v1536 = vadd.f32 %v1534, %v1535
    %v1537 = vrot.slane %v1536, 2
    %v1538 = vadd.f32 %v1536, %v1537
    %v1539 = vrot.slane %v1538, 1
    %v1540 = vadd.f32 %v1538, %v1539
    %s1541 = vtos %v1540
    %s1542 = smul.f32 %s1541, 0.00390625
    %s1543 = sadd.f32 %s1542, 1e-05
    %v1544 = vstv %s1543
    %v1545 = vrsqrt.pop %v1544
    %s1546 = vtos %v1545
    %s1547 = smul.f32 %s1516, %s1546
    %v1548 = vstv %s1547
    %v1549 = vmul.f32 %v1530, %v1548
    %v1550 = vstv %s1517
    %v1551 = vadd.f32 %v1549, %v1550
    %v1552 = vmax.f32 %v1551, 0.0
    %s1553 = sld [smem:[#allocation10 + $0x3]]
    %v1554 = vstv %s1553
    %v1555 = vmul.f32 %v1554, %v153
    %v1556 = vadd.f32 %v1552, %v1555
    %v1557 = vmul.f32 %v862, %v1556
    %v1558 = vadd.f32 %v864, %v1557
    %v1559 = vmul.f32 %v1556, %v1558
    %v1560 = vadd.f32 %v867, %v1559
    %v1561 = vmul.f32 %v1556, %v1560
    %1563 = vrot.lane.b32.xlu0 %v1561, 1
    %v1564 = vpop.permute.xlu0 %1563
    %v1566 = vsel %vm158, 0.0, %v1564
    %v1567 = vsel %vm160, %v1566, 0.0
    %s1568 = sld [smem:[#allocation9 + $0x9]]
    %v1569 = vstv %s1568
    %v1570 = vmul.f32 %v1567, %v1569
    %v1571 = vadd.f32 %v1356, %v1570
    %s1572 = sld [smem:[#allocation9 + $0xa]]
    %v1573 = vstv %s1572
    %v1574 = vmul.f32 %v1567, %v1573
    %1576 = vrot.lane.b32.xlu0 %v1574, 127
    %v1577 = vpop.permute.xlu0 %1576
    %v1579 = vadd.f32 %v1571, %v1577
    %s1580 = sld [smem:[#allocation9 + $0xb]]
    %v1581 = vstv %s1580
    %v1582 = vmul.f32 %v1567, %v1581
    %1584 = vrot.lane.b32.xlu0 %v1582, 126
    %v1585 = vpop.permute.xlu0 %1584
    %v1587 = vadd.f32 %v1579, %v1585
    %s1588 = sld [smem:[#allocation7 + $0x60]]
    %v1589 = vstv %s1588
    %v1590 = vmul.f32 %v616, %v1589
    %s1591 = sld [smem:[#allocation7 + $0x61]]
    %v1592 = vstv %s1591
    %v1593 = vmul.f32 %v616, %v1592
    %1595 = vrot.lane.b32.xlu0 %v1593, 127
    %v1596 = vpop.permute.xlu0 %1595
    %v1598 = vadd.f32 %v1590, %v1596
    %s1599 = sld [smem:[#allocation7 + $0x62]]
    %v1600 = vstv %s1599
    %v1601 = vmul.f32 %v616, %v1600
    %1603 = vrot.lane.b32.xlu0 %v1601, 126
    %v1604 = vpop.permute.xlu0 %1603
    %v1606 = vadd.f32 %v1598, %v1604
    %s1607 = sld [smem:[#allocation7 + $0x63]]
    %v1608 = vstv %s1607
    %v1609 = vmul.f32 %v622, %v1608
    %v1610 = vadd.f32 %v1606, %v1609
    %s1611 = sld [smem:[#allocation7 + $0x64]]
    %v1612 = vstv %s1611
    %v1613 = vmul.f32 %v622, %v1612
    %1615 = vrot.lane.b32.xlu0 %v1613, 127
    %v1616 = vpop.permute.xlu0 %1615
    %v1618 = vadd.f32 %v1610, %v1616
    %s1619 = sld [smem:[#allocation7 + $0x65]]
    %v1620 = vstv %s1619
    %v1621 = vmul.f32 %v622, %v1620
    %1623 = vrot.lane.b32.xlu0 %v1621, 126
    %v1624 = vpop.permute.xlu0 %1623
    %v1626 = vadd.f32 %v1618, %v1624
    %s1627 = sld [smem:[#allocation7 + $0x66]]
    %v1628 = vstv %s1627
    %v1629 = vmul.f32 %v628, %v1628
    %v1630 = vadd.f32 %v1626, %v1629
    %s1631 = sld [smem:[#allocation7 + $0x67]]
    %v1632 = vstv %s1631
    %v1633 = vmul.f32 %v628, %v1632
    %1635 = vrot.lane.b32.xlu0 %v1633, 127
    %v1636 = vpop.permute.xlu0 %1635
    %v1638 = vadd.f32 %v1630, %v1636
    %s1639 = sld [smem:[#allocation7 + $0x68]]
    %v1640 = vstv %s1639
    %v1641 = vmul.f32 %v628, %v1640
    %1643 = vrot.lane.b32.xlu0 %v1641, 126
    %v1644 = vpop.permute.xlu0 %1643
    %v1646 = vadd.f32 %v1638, %v1644
    %s1647 = sld [smem:[#allocation7 + $0x69]]
    %v1648 = vstv %s1647
    %v1649 = vmul.f32 %v634, %v1648
    %v1650 = vadd.f32 %v1646, %v1649
    %s1651 = sld [smem:[#allocation7 + $0x6a]]
    %v1652 = vstv %s1651
    %v1653 = vmul.f32 %v634, %v1652
    %1655 = vrot.lane.b32.xlu0 %v1653, 127
    %v1656 = vpop.permute.xlu0 %1655
    %v1658 = vadd.f32 %v1650, %v1656
    %s1659 = sld [smem:[#allocation7 + $0x6b]]
    %v1660 = vstv %s1659
    %v1661 = vmul.f32 %v634, %v1660
    %1663 = vrot.lane.b32.xlu0 %v1661, 126
    %v1664 = vpop.permute.xlu0 %1663
    %v1666 = vadd.f32 %v1658, %v1664
    %s1667 = sld [smem:[#allocation7 + $0x6c]]
    %v1668 = vstv %s1667
    %v1669 = vmul.f32 %v640, %v1668
    %v1670 = vadd.f32 %v1666, %v1669
    %s1671 = sld [smem:[#allocation7 + $0x6d]]
    %v1672 = vstv %s1671
    %v1673 = vmul.f32 %v640, %v1672
    %1675 = vrot.lane.b32.xlu0 %v1673, 127
    %v1676 = vpop.permute.xlu0 %1675
    %v1678 = vadd.f32 %v1670, %v1676
    %s1679 = sld [smem:[#allocation7 + $0x6e]]
    %v1680 = vstv %s1679
    %v1681 = vmul.f32 %v640, %v1680
    %1683 = vrot.lane.b32.xlu0 %v1681, 126
    %v1684 = vpop.permute.xlu0 %1683
    %v1686 = vadd.f32 %v1678, %v1684
    %s1687 = sld [smem:[#allocation7 + $0x6f]]
    %v1688 = vstv %s1687
    %v1689 = vmul.f32 %v646, %v1688
    %v1690 = vadd.f32 %v1686, %v1689
    %s1691 = sld [smem:[#allocation7 + $0x70]]
    %v1692 = vstv %s1691
    %v1693 = vmul.f32 %v646, %v1692
    %1695 = vrot.lane.b32.xlu0 %v1693, 127
    %v1696 = vpop.permute.xlu0 %1695
    %v1698 = vadd.f32 %v1690, %v1696
    %s1699 = sld [smem:[#allocation7 + $0x71]]
    %v1700 = vstv %s1699
    %v1701 = vmul.f32 %v646, %v1700
    %1703 = vrot.lane.b32.xlu0 %v1701, 126
    %v1704 = vpop.permute.xlu0 %1703
    %v1706 = vadd.f32 %v1698, %v1704
    %s1707 = sld [smem:[#allocation7 + $0x72]]
    %v1708 = vstv %s1707
    %v1709 = vmul.f32 %v652, %v1708
    %v1710 = vadd.f32 %v1706, %v1709
    %s1711 = sld [smem:[#allocation7 + $0x73]]
    %v1712 = vstv %s1711
    %v1713 = vmul.f32 %v652, %v1712
    %1715 = vrot.lane.b32.xlu0 %v1713, 127
    %v1716 = vpop.permute.xlu0 %1715
    %v1718 = vadd.f32 %v1710, %v1716
    %s1719 = sld [smem:[#allocation7 + $0x74]]
    %v1720 = vstv %s1719
    %v1721 = vmul.f32 %v652, %v1720
    %1723 = vrot.lane.b32.xlu0 %v1721, 126
    %v1724 = vpop.permute.xlu0 %1723
    %v1726 = vadd.f32 %v1718, %v1724
    %s1727 = sld [smem:[#allocation7 + $0x75]]
    %v1728 = vstv %s1727
    %v1729 = vmul.f32 %v658, %v1728
    %v1730 = vadd.f32 %v1726, %v1729
    %s1731 = sld [smem:[#allocation7 + $0x76]]
    %v1732 = vstv %s1731
    %v1733 = vmul.f32 %v658, %v1732
    %1735 = vrot.lane.b32.xlu0 %v1733, 127
    %v1736 = vpop.permute.xlu0 %1735
    %v1738 = vadd.f32 %v1730, %v1736
    %s1739 = sld [smem:[#allocation7 + $0x77]]
    %v1740 = vstv %s1739
    %v1741 = vmul.f32 %v658, %v1740
    %1743 = vrot.lane.b32.xlu0 %v1741, 126
    %v1744 = vpop.permute.xlu0 %1743
    %v1746 = vadd.f32 %v1738, %v1744
    %s1747 = sld [smem:[#allocation15 + $0x4]]
    %s1748 = sld [smem:[#allocation16 + $0x4]]
    %v1749 = vsel %vm183, %v1746, 0.0
    %1750 = vadd.xlane.f32.xlu0 %v1749
    %v1751 = vpop.xlane.xlu0 %1750
    %v1752 = vrot.slane %v1751, 4
    %v1753 = vadd.f32 %v1751, %v1752
    %v1754 = vrot.slane %v1753, 2
    %v1755 = vadd.f32 %v1753, %v1754
    %v1756 = vrot.slane %v1755, 1
    %v1757 = vadd.f32 %v1755, %v1756
    %s1758 = vtos %v1757
    %s1759 = smul.f32 %s1758, 0.00390625
    %v1760 = vstv %s1759
    %v1761 = vsub.f32 %v1746, %v1760
    %v1762 = vmul.f32 %v1761, %v1761
    %v1763 = vsel %vm183, %v1762, 0.0
    %1764 = vadd.xlane.f32.xlu0 %v1763
    %v1765 = vpop.xlane.xlu0 %1764
    %v1766 = vrot.slane %v1765, 4
    %v1767 = vadd.f32 %v1765, %v1766
    %v1768 = vrot.slane %v1767, 2
    %v1769 = vadd.f32 %v1767, %v1768
    %v1770 = vrot.slane %v1769, 1
    %v1771 = vadd.f32 %v1769, %v1770
    %s1772 = vtos %v1771
    %s1773 = smul.f32 %s1772, 0.00390625
    %s1774 = sadd.f32 %s1773, 1e-05
    %v1775 = vstv %s1774
    %v1776 = vrsqrt.pop %v1775
    %s1777 = vtos %v1776
    %s1778 = smul.f32 %s1747, %s1777
    %v1779 = vstv %s1778
    %v1780 = vmul.f32 %v1761, %v1779
    %v1781 = vstv %s1748
    %v1782 = vadd.f32 %v1780, %v1781
    %v1783 = vmax.f32 %v1782, 0.0
    %s1784 = sld [smem:[#allocation10 + $0x4]]
    %v1785 = vstv %s1784
    %v1786 = vmul.f32 %v1785, %v153
    %v1787 = vadd.f32 %v1783, %v1786
    %v1788 = vmul.f32 %v862, %v1787
    %v1789 = vadd.f32 %v864, %v1788
    %v1790 = vmul.f32 %v1787, %v1789
    %v1791 = vadd.f32 %v867, %v1790
    %v1792 = vmul.f32 %v1787, %v1791
    %1794 = vrot.lane.b32.xlu0 %v1792, 1
    %v1795 = vpop.permute.xlu0 %1794
    %v1797 = vsel %vm158, 0.0, %v1795
    %v1798 = vsel %vm160, %v1797, 0.0
    %s1799 = sld [smem:[#allocation9 + $0xc]]
    %v1800 = vstv %s1799
    %v1801 = vmul.f32 %v1798, %v1800
    %v1802 = vadd.f32 %v1587, %v1801
    %s1803 = sld [smem:[#allocation9 + $0xd]]
    %v1804 = vstv %s1803
    %v1805 = vmul.f32 %v1798, %v1804
    %1807 = vrot.lane.b32.xlu0 %v1805, 127
    %v1808 = vpop.permute.xlu0 %1807
    %v1810 = vadd.f32 %v1802, %v1808
    %s1811 = sld [smem:[#allocation9 + $0xe]]
    %v1812 = vstv %s1811
    %v1813 = vmul.f32 %v1798, %v1812
    %1815 = vrot.lane.b32.xlu0 %v1813, 126
    %v1816 = vpop.permute.xlu0 %1815
    %v1818 = vadd.f32 %v1810, %v1816
    %s1819 = sld [smem:[#allocation7 + $0x78]]
    %v1820 = vstv %s1819
    %v1821 = vmul.f32 %v616, %v1820
    %s1822 = sld [smem:[#allocation7 + $0x79]]
    %v1823 = vstv %s1822
    %v1824 = vmul.f32 %v616, %v1823
    %1826 = vrot.lane.b32.xlu0 %v1824, 127
    %v1827 = vpop.permute.xlu0 %1826
    %v1829 = vadd.f32 %v1821, %v1827
    %s1830 = sld [smem:[#allocation7 + $0x7a]]
    %v1831 = vstv %s1830
    %v1832 = vmul.f32 %v616, %v1831
    %1834 = vrot.lane.b32.xlu0 %v1832, 126
    %v1835 = vpop.permute.xlu0 %1834
    %v1837 = vadd.f32 %v1829, %v1835
    %s1838 = sld [smem:[#allocation7 + $0x7b]]
    %v1839 = vstv %s1838
    %v1840 = vmul.f32 %v622, %v1839
    %v1841 = vadd.f32 %v1837, %v1840
    %s1842 = sld [smem:[#allocation7 + $0x7c]]
    %v1843 = vstv %s1842
    %v1844 = vmul.f32 %v622, %v1843
    %1846 = vrot.lane.b32.xlu0 %v1844, 127
    %v1847 = vpop.permute.xlu0 %1846
    %v1849 = vadd.f32 %v1841, %v1847
    %s1850 = sld [smem:[#allocation7 + $0x7d]]
    %v1851 = vstv %s1850
    %v1852 = vmul.f32 %v622, %v1851
    %1854 = vrot.lane.b32.xlu0 %v1852, 126
    %v1855 = vpop.permute.xlu0 %1854
    %v1857 = vadd.f32 %v1849, %v1855
    %s1858 = sld [smem:[#allocation7 + $0x7e]]
    %v1859 = vstv %s1858
    %v1860 = vmul.f32 %v628, %v1859
    %v1861 = vadd.f32 %v1857, %v1860
    %s1862 = sld [smem:[#allocation7 + $0x7f]]
    %v1863 = vstv %s1862
    %v1864 = vmul.f32 %v628, %v1863
    %1866 = vrot.lane.b32.xlu0 %v1864, 127
    %v1867 = vpop.permute.xlu0 %1866
    %v1869 = vadd.f32 %v1861, %v1867
    %s1870 = sld [smem:[#allocation7 + $0x80]]
    %v1871 = vstv %s1870
    %v1872 = vmul.f32 %v628, %v1871
    %1874 = vrot.lane.b32.xlu0 %v1872, 126
    %v1875 = vpop.permute.xlu0 %1874
    %v1877 = vadd.f32 %v1869, %v1875
    %s1878 = sld [smem:[#allocation7 + $0x81]]
    %v1879 = vstv %s1878
    %v1880 = vmul.f32 %v634, %v1879
    %v1881 = vadd.f32 %v1877, %v1880
    %s1882 = sld [smem:[#allocation7 + $0x82]]
    %v1883 = vstv %s1882
    %v1884 = vmul.f32 %v634, %v1883
    %1886 = vrot.lane.b32.xlu0 %v1884, 127
    %v1887 = vpop.permute.xlu0 %1886
    %v1889 = vadd.f32 %v1881, %v1887
    %s1890 = sld [smem:[#allocation7 + $0x83]]
    %v1891 = vstv %s1890
    %v1892 = vmul.f32 %v634, %v1891
    %1894 = vrot.lane.b32.xlu0 %v1892, 126
    %v1895 = vpop.permute.xlu0 %1894
    %v1897 = vadd.f32 %v1889, %v1895
    %s1898 = sld [smem:[#allocation7 + $0x84]]
    %v1899 = vstv %s1898
    %v1900 = vmul.f32 %v640, %v1899
    %v1901 = vadd.f32 %v1897, %v1900
    %s1902 = sld [smem:[#allocation7 + $0x85]]
    %v1903 = vstv %s1902
    %v1904 = vmul.f32 %v640, %v1903
    %1906 = vrot.lane.b32.xlu0 %v1904, 127
    %v1907 = vpop.permute.xlu0 %1906
    %v1909 = vadd.f32 %v1901, %v1907
    %s1910 = sld [smem:[#allocation7 + $0x86]]
    %v1911 = vstv %s1910
    %v1912 = vmul.f32 %v640, %v1911
    %1914 = vrot.lane.b32.xlu0 %v1912, 126
    %v1915 = vpop.permute.xlu0 %1914
    %v1917 = vadd.f32 %v1909, %v1915
    %s1918 = sld [smem:[#allocation7 + $0x87]]
    %v1919 = vstv %s1918
    %v1920 = vmul.f32 %v646, %v1919
    %v1921 = vadd.f32 %v1917, %v1920
    %s1922 = sld [smem:[#allocation7 + $0x88]]
    %v1923 = vstv %s1922
    %v1924 = vmul.f32 %v646, %v1923
    %1926 = vrot.lane.b32.xlu0 %v1924, 127
    %v1927 = vpop.permute.xlu0 %1926
    %v1929 = vadd.f32 %v1921, %v1927
    %s1930 = sld [smem:[#allocation7 + $0x89]]
    %v1931 = vstv %s1930
    %v1932 = vmul.f32 %v646, %v1931
    %1934 = vrot.lane.b32.xlu0 %v1932, 126
    %v1935 = vpop.permute.xlu0 %1934
    %v1937 = vadd.f32 %v1929, %v1935
    %s1938 = sld [smem:[#allocation7 + $0x8a]]
    %v1939 = vstv %s1938
    %v1940 = vmul.f32 %v652, %v1939
    %v1941 = vadd.f32 %v1937, %v1940
    %s1942 = sld [smem:[#allocation7 + $0x8b]]
    %v1943 = vstv %s1942
    %v1944 = vmul.f32 %v652, %v1943
    %1946 = vrot.lane.b32.xlu0 %v1944, 127
    %v1947 = vpop.permute.xlu0 %1946
    %v1949 = vadd.f32 %v1941, %v1947
    %s1950 = sld [smem:[#allocation7 + $0x8c]]
    %v1951 = vstv %s1950
    %v1952 = vmul.f32 %v652, %v1951
    %1954 = vrot.lane.b32.xlu0 %v1952, 126
    %v1955 = vpop.permute.xlu0 %1954
    %v1957 = vadd.f32 %v1949, %v1955
    %s1958 = sld [smem:[#allocation7 + $0x8d]]
    %v1959 = vstv %s1958
    %v1960 = vmul.f32 %v658, %v1959
    %v1961 = vadd.f32 %v1957, %v1960
    %s1962 = sld [smem:[#allocation7 + $0x8e]]
    %v1963 = vstv %s1962
    %v1964 = vmul.f32 %v658, %v1963
    %1966 = vrot.lane.b32.xlu0 %v1964, 127
    %v1967 = vpop.permute.xlu0 %1966
    %v1969 = vadd.f32 %v1961, %v1967
    %s1970 = sld [smem:[#allocation7 + $0x8f]]
    %v1971 = vstv %s1970
    %v1972 = vmul.f32 %v658, %v1971
    %1974 = vrot.lane.b32.xlu0 %v1972, 126
    %v1975 = vpop.permute.xlu0 %1974
    %v1977 = vadd.f32 %v1969, %v1975
    %s1978 = sld [smem:[#allocation15 + $0x5]]
    %s1979 = sld [smem:[#allocation16 + $0x5]]
    %v1980 = vsel %vm183, %v1977, 0.0
    %1981 = vadd.xlane.f32.xlu0 %v1980
    %v1982 = vpop.xlane.xlu0 %1981
    %v1983 = vrot.slane %v1982, 4
    %v1984 = vadd.f32 %v1982, %v1983
    %v1985 = vrot.slane %v1984, 2
    %v1986 = vadd.f32 %v1984, %v1985
    %v1987 = vrot.slane %v1986, 1
    %v1988 = vadd.f32 %v1986, %v1987
    %s1989 = vtos %v1988
    %s1990 = smul.f32 %s1989, 0.00390625
    %v1991 = vstv %s1990
    %v1992 = vsub.f32 %v1977, %v1991
    %v1993 = vmul.f32 %v1992, %v1992
    %v1994 = vsel %vm183, %v1993, 0.0
    %1995 = vadd.xlane.f32.xlu0 %v1994
    %v1996 = vpop.xlane.xlu0 %1995
    %v1997 = vrot.slane %v1996, 4
    %v1998 = vadd.f32 %v1996, %v1997
    %v1999 = vrot.slane %v1998, 2
    %v2000 = vadd.f32 %v1998, %v1999
    %v2001 = vrot.slane %v2000, 1
    %v2002 = vadd.f32 %v2000, %v2001
    %s2003 = vtos %v2002
    %s2004 = smul.f32 %s2003, 0.00390625
    %s2005 = sadd.f32 %s2004, 1e-05
    %v2006 = vstv %s2005
    %v2007 = vrsqrt.pop %v2006
    %s2008 = vtos %v2007
    %s2009 = smul.f32 %s1978, %s2008
    %v2010 = vstv %s2009
    %v2011 = vmul.f32 %v1992, %v2010
    %v2012 = vstv %s1979
    %v2013 = vadd.f32 %v2011, %v2012
    %v2014 = vmax.f32 %v2013, 0.0
    %s2015 = sld [smem:[#allocation10 + $0x5]]
    %v2016 = vstv %s2015
    %v2017 = vmul.f32 %v2016, %v153
    %v2018 = vadd.f32 %v2014, %v2017
    %v2019 = vmul.f32 %v862, %v2018
    %v2020 = vadd.f32 %v864, %v2019
    %v2021 = vmul.f32 %v2018, %v2020
    %v2022 = vadd.f32 %v867, %v2021
    %v2023 = vmul.f32 %v2018, %v2022
    %2025 = vrot.lane.b32.xlu0 %v2023, 1
    %v2026 = vpop.permute.xlu0 %2025
    %v2028 = vsel %vm158, 0.0, %v2026
    %v2029 = vsel %vm160, %v2028, 0.0
    %s2030 = sld [smem:[#allocation9 + $0xf]]
    %v2031 = vstv %s2030
    %v2032 = vmul.f32 %v2029, %v2031
    %v2033 = vadd.f32 %v1818, %v2032
    %s2034 = sld [smem:[#allocation9 + $0x10]]
    %v2035 = vstv %s2034
    %v2036 = vmul.f32 %v2029, %v2035
    %2038 = vrot.lane.b32.xlu0 %v2036, 127
    %v2039 = vpop.permute.xlu0 %2038
    %v2041 = vadd.f32 %v2033, %v2039
    %s2042 = sld [smem:[#allocation9 + $0x11]]
    %v2043 = vstv %s2042
    %v2044 = vmul.f32 %v2029, %v2043
    %2046 = vrot.lane.b32.xlu0 %v2044, 126
    %v2047 = vpop.permute.xlu0 %2046
    %v2049 = vadd.f32 %v2041, %v2047
    %s2050 = sld [smem:[#allocation7 + $0x90]]
    %v2051 = vstv %s2050
    %v2052 = vmul.f32 %v616, %v2051
    %s2053 = sld [smem:[#allocation7 + $0x91]]
    %v2054 = vstv %s2053
    %v2055 = vmul.f32 %v616, %v2054
    %2057 = vrot.lane.b32.xlu0 %v2055, 127
    %v2058 = vpop.permute.xlu0 %2057
    %v2060 = vadd.f32 %v2052, %v2058
    %s2061 = sld [smem:[#allocation7 + $0x92]]
    %v2062 = vstv %s2061
    %v2063 = vmul.f32 %v616, %v2062
    %2065 = vrot.lane.b32.xlu0 %v2063, 126
    %v2066 = vpop.permute.xlu0 %2065
    %v2068 = vadd.f32 %v2060, %v2066
    %s2069 = sld [smem:[#allocation7 + $0x93]]
    %v2070 = vstv %s2069
    %v2071 = vmul.f32 %v622, %v2070
    %v2072 = vadd.f32 %v2068, %v2071
    %s2073 = sld [smem:[#allocation7 + $0x94]]
    %v2074 = vstv %s2073
    %v2075 = vmul.f32 %v622, %v2074
    %2077 = vrot.lane.b32.xlu0 %v2075, 127
    %v2078 = vpop.permute.xlu0 %2077
    %v2080 = vadd.f32 %v2072, %v2078
    %s2081 = sld [smem:[#allocation7 + $0x95]]
    %v2082 = vstv %s2081
    %v2083 = vmul.f32 %v622, %v2082
    %2085 = vrot.lane.b32.xlu0 %v2083, 126
    %v2086 = vpop.permute.xlu0 %2085
    %v2088 = vadd.f32 %v2080, %v2086
    %s2089 = sld [smem:[#allocation7 + $0x96]]
    %v2090 = vstv %s2089
    %v2091 = vmul.f32 %v628, %v2090
    %v2092 = vadd.f32 %v2088, %v2091
    %s2093 = sld [smem:[#allocation7 + $0x97]]
    %v2094 = vstv %s2093
    %v2095 = vmul.f32 %v628, %v2094
    %2097 = vrot.lane.b32.xlu0 %v2095, 127
    %v2098 = vpop.permute.xlu0 %2097
    %v2100 = vadd.f32 %v2092, %v2098
    %s2101 = sld [smem:[#allocation7 + $0x98]]
    %v2102 = vstv %s2101
    %v2103 = vmul.f32 %v628, %v2102
    %2105 = vrot.lane.b32.xlu0 %v2103, 126
    %v2106 = vpop.permute.xlu0 %2105
    %v2108 = vadd.f32 %v2100, %v2106
    %s2109 = sld [smem:[#allocation7 + $0x99]]
    %v2110 = vstv %s2109
    %v2111 = vmul.f32 %v634, %v2110
    %v2112 = vadd.f32 %v2108, %v2111
    %s2113 = sld [smem:[#allocation7 + $0x9a]]
    %v2114 = vstv %s2113
    %v2115 = vmul.f32 %v634, %v2114
    %2117 = vrot.lane.b32.xlu0 %v2115, 127
    %v2118 = vpop.permute.xlu0 %2117
    %v2120 = vadd.f32 %v2112, %v2118
    %s2121 = sld [smem:[#allocation7 + $0x9b]]
    %v2122 = vstv %s2121
    %v2123 = vmul.f32 %v634, %v2122
    %2125 = vrot.lane.b32.xlu0 %v2123, 126
    %v2126 = vpop.permute.xlu0 %2125
    %v2128 = vadd.f32 %v2120, %v2126
    %s2129 = sld [smem:[#allocation7 + $0x9c]]
    %v2130 = vstv %s2129
    %v2131 = vmul.f32 %v640, %v2130
    %v2132 = vadd.f32 %v2128, %v2131
    %s2133 = sld [smem:[#allocation7 + $0x9d]]
    %v2134 = vstv %s2133
    %v2135 = vmul.f32 %v640, %v2134
    %2137 = vrot.lane.b32.xlu0 %v2135, 127
    %v2138 = vpop.permute.xlu0 %2137
    %v2140 = vadd.f32 %v2132, %v2138
    %s2141 = sld [smem:[#allocation7 + $0x9e]]
    %v2142 = vstv %s2141
    %v2143 = vmul.f32 %v640, %v2142
    %2145 = vrot.lane.b32.xlu0 %v2143, 126
    %v2146 = vpop.permute.xlu0 %2145
    %v2148 = vadd.f32 %v2140, %v2146
    %s2149 = sld [smem:[#allocation7 + $0x9f]]
    %v2150 = vstv %s2149
    %v2151 = vmul.f32 %v646, %v2150
    %v2152 = vadd.f32 %v2148, %v2151
    %s2153 = sld [smem:[#allocation7 + $0xa0]]
    %v2154 = vstv %s2153
    %v2155 = vmul.f32 %v646, %v2154
    %2157 = vrot.lane.b32.xlu0 %v2155, 127
    %v2158 = vpop.permute.xlu0 %2157
    %v2160 = vadd.f32 %v2152, %v2158
    %s2161 = sld [smem:[#allocation7 + $0xa1]]
    %v2162 = vstv %s2161
    %v2163 = vmul.f32 %v646, %v2162
    %2165 = vrot.lane.b32.xlu0 %v2163, 126
    %v2166 = vpop.permute.xlu0 %2165
    %v2168 = vadd.f32 %v2160, %v2166
    %s2169 = sld [smem:[#allocation7 + $0xa2]]
    %v2170 = vstv %s2169
    %v2171 = vmul.f32 %v652, %v2170
    %v2172 = vadd.f32 %v2168, %v2171
    %s2173 = sld [smem:[#allocation7 + $0xa3]]
    %v2174 = vstv %s2173
    %v2175 = vmul.f32 %v652, %v2174
    %2177 = vrot.lane.b32.xlu0 %v2175, 127
    %v2178 = vpop.permute.xlu0 %2177
    %v2180 = vadd.f32 %v2172, %v2178
    %s2181 = sld [smem:[#allocation7 + $0xa4]]
    %v2182 = vstv %s2181
    %v2183 = vmul.f32 %v652, %v2182
    %2185 = vrot.lane.b32.xlu0 %v2183, 126
    %v2186 = vpop.permute.xlu0 %2185
    %v2188 = vadd.f32 %v2180, %v2186
    %s2189 = sld [smem:[#allocation7 + $0xa5]]
    %v2190 = vstv %s2189
    %v2191 = vmul.f32 %v658, %v2190
    %v2192 = vadd.f32 %v2188, %v2191
    %s2193 = sld [smem:[#allocation7 + $0xa6]]
    %v2194 = vstv %s2193
    %v2195 = vmul.f32 %v658, %v2194
    %2197 = vrot.lane.b32.xlu0 %v2195, 127
    %v2198 = vpop.permute.xlu0 %2197
    %v2200 = vadd.f32 %v2192, %v2198
    %s2201 = sld [smem:[#allocation7 + $0xa7]]
    %v2202 = vstv %s2201
    %v2203 = vmul.f32 %v658, %v2202
    %2205 = vrot.lane.b32.xlu0 %v2203, 126
    %v2206 = vpop.permute.xlu0 %2205
    %v2208 = vadd.f32 %v2200, %v2206
    %s2209 = sld [smem:[#allocation15 + $0x6]]
    %s2210 = sld [smem:[#allocation16 + $0x6]]
    %v2211 = vsel %vm183, %v2208, 0.0
    %2212 = vadd.xlane.f32.xlu0 %v2211
    %v2213 = vpop.xlane.xlu0 %2212
    %v2214 = vrot.slane %v2213, 4
    %v2215 = vadd.f32 %v2213, %v2214
    %v2216 = vrot.slane %v2215, 2
    %v2217 = vadd.f32 %v2215, %v2216
    %v2218 = vrot.slane %v2217, 1
    %v2219 = vadd.f32 %v2217, %v2218
    %s2220 = vtos %v2219
    %s2221 = smul.f32 %s2220, 0.00390625
    %v2222 = vstv %s2221
    %v2223 = vsub.f32 %v2208, %v2222
    %v2224 = vmul.f32 %v2223, %v2223
    %v2225 = vsel %vm183, %v2224, 0.0
    %2226 = vadd.xlane.f32.xlu0 %v2225
    %v2227 = vpop.xlane.xlu0 %2226
    %v2228 = vrot.slane %v2227, 4
    %v2229 = vadd.f32 %v2227, %v2228
    %v2230 = vrot.slane %v2229, 2
    %v2231 = vadd.f32 %v2229, %v2230
    %v2232 = vrot.slane %v2231, 1
    %v2233 = vadd.f32 %v2231, %v2232
    %s2234 = vtos %v2233
    %s2235 = smul.f32 %s2234, 0.00390625
    %s2236 = sadd.f32 %s2235, 1e-05
    %v2237 = vstv %s2236
    %v2238 = vrsqrt.pop %v2237
    %s2239 = vtos %v2238
    %s2240 = smul.f32 %s2209, %s2239
    %v2241 = vstv %s2240
    %v2242 = vmul.f32 %v2223, %v2241
    %v2243 = vstv %s2210
    %v2244 = vadd.f32 %v2242, %v2243
    %v2245 = vmax.f32 %v2244, 0.0
    %s2246 = sld [smem:[#allocation10 + $0x6]]
    %v2247 = vstv %s2246
    %v2248 = vmul.f32 %v2247, %v153
    %v2249 = vadd.f32 %v2245, %v2248
    %v2250 = vmul.f32 %v862, %v2249
    %v2251 = vadd.f32 %v864, %v2250
    %v2252 = vmul.f32 %v2249, %v2251
    %v2253 = vadd.f32 %v867, %v2252
    %v2254 = vmul.f32 %v2249, %v2253
    %2256 = vrot.lane.b32.xlu0 %v2254, 1
    %v2257 = vpop.permute.xlu0 %2256
    %v2259 = vsel %vm158, 0.0, %v2257
    %v2260 = vsel %vm160, %v2259, 0.0
    %s2261 = sld [smem:[#allocation9 + $0x12]]
    %v2262 = vstv %s2261
    %v2263 = vmul.f32 %v2260, %v2262
    %v2264 = vadd.f32 %v2049, %v2263
    %s2265 = sld [smem:[#allocation9 + $0x13]]
    %v2266 = vstv %s2265
    %v2267 = vmul.f32 %v2260, %v2266
    %2269 = vrot.lane.b32.xlu0 %v2267, 127
    %v2270 = vpop.permute.xlu0 %2269
    %v2272 = vadd.f32 %v2264, %v2270
    %s2273 = sld [smem:[#allocation9 + $0x14]]
    %v2274 = vstv %s2273
    %v2275 = vmul.f32 %v2260, %v2274
    %2277 = vrot.lane.b32.xlu0 %v2275, 126
    %v2278 = vpop.permute.xlu0 %2277
    %v2280 = vadd.f32 %v2272, %v2278
    %s2281 = sld [smem:[#allocation7 + $0xa8]]
    %v2282 = vstv %s2281
    %v2283 = vmul.f32 %v616, %v2282
    %s2284 = sld [smem:[#allocation7 + $0xa9]]
    %v2285 = vstv %s2284
    %v2286 = vmul.f32 %v616, %v2285
    %2288 = vrot.lane.b32.xlu0 %v2286, 127
    %v2289 = vpop.permute.xlu0 %2288
    %v2291 = vadd.f32 %v2283, %v2289
    %s2292 = sld [smem:[#allocation7 + $0xaa]]
    %v2293 = vstv %s2292
    %v2294 = vmul.f32 %v616, %v2293
    %2296 = vrot.lane.b32.xlu0 %v2294, 126
    %v2297 = vpop.permute.xlu0 %2296
    %v2299 = vadd.f32 %v2291, %v2297
    %s2300 = sld [smem:[#allocation7 + $0xab]]
    %v2301 = vstv %s2300
    %v2302 = vmul.f32 %v622, %v2301
    %v2303 = vadd.f32 %v2299, %v2302
    %s2304 = sld [smem:[#allocation7 + $0xac]]
    %v2305 = vstv %s2304
    %v2306 = vmul.f32 %v622, %v2305
    %2308 = vrot.lane.b32.xlu0 %v2306, 127
    %v2309 = vpop.permute.xlu0 %2308
    %v2311 = vadd.f32 %v2303, %v2309
    %s2312 = sld [smem:[#allocation7 + $0xad]]
    %v2313 = vstv %s2312
    %v2314 = vmul.f32 %v622, %v2313
    %2316 = vrot.lane.b32.xlu0 %v2314, 126
    %v2317 = vpop.permute.xlu0 %2316
    %v2319 = vadd.f32 %v2311, %v2317
    %s2320 = sld [smem:[#allocation7 + $0xae]]
    %v2321 = vstv %s2320
    %v2322 = vmul.f32 %v628, %v2321
    %v2323 = vadd.f32 %v2319, %v2322
    %s2324 = sld [smem:[#allocation7 + $0xaf]]
    %v2325 = vstv %s2324
    %v2326 = vmul.f32 %v628, %v2325
    %2328 = vrot.lane.b32.xlu0 %v2326, 127
    %v2329 = vpop.permute.xlu0 %2328
    %v2331 = vadd.f32 %v2323, %v2329
    %s2332 = sld [smem:[#allocation7 + $0xb0]]
    %v2333 = vstv %s2332
    %v2334 = vmul.f32 %v628, %v2333
    %2336 = vrot.lane.b32.xlu0 %v2334, 126
    %v2337 = vpop.permute.xlu0 %2336
    %v2339 = vadd.f32 %v2331, %v2337
    %s2340 = sld [smem:[#allocation7 + $0xb1]]
    %v2341 = vstv %s2340
    %v2342 = vmul.f32 %v634, %v2341
    %v2343 = vadd.f32 %v2339, %v2342
    %s2344 = sld [smem:[#allocation7 + $0xb2]]
    %v2345 = vstv %s2344
    %v2346 = vmul.f32 %v634, %v2345
    %2348 = vrot.lane.b32.xlu0 %v2346, 127
    %v2349 = vpop.permute.xlu0 %2348
    %v2351 = vadd.f32 %v2343, %v2349
    %s2352 = sld [smem:[#allocation7 + $0xb3]]
    %v2353 = vstv %s2352
    %v2354 = vmul.f32 %v634, %v2353
    %2356 = vrot.lane.b32.xlu0 %v2354, 126
    %v2357 = vpop.permute.xlu0 %2356
    %v2359 = vadd.f32 %v2351, %v2357
    %s2360 = sld [smem:[#allocation7 + $0xb4]]
    %v2361 = vstv %s2360
    %v2362 = vmul.f32 %v640, %v2361
    %v2363 = vadd.f32 %v2359, %v2362
    %s2364 = sld [smem:[#allocation7 + $0xb5]]
    %v2365 = vstv %s2364
    %v2366 = vmul.f32 %v640, %v2365
    %2368 = vrot.lane.b32.xlu0 %v2366, 127
    %v2369 = vpop.permute.xlu0 %2368
    %v2371 = vadd.f32 %v2363, %v2369
    %s2372 = sld [smem:[#allocation7 + $0xb6]]
    %v2373 = vstv %s2372
    %v2374 = vmul.f32 %v640, %v2373
    %2376 = vrot.lane.b32.xlu0 %v2374, 126
    %v2377 = vpop.permute.xlu0 %2376
    %v2379 = vadd.f32 %v2371, %v2377
    %s2380 = sld [smem:[#allocation7 + $0xb7]]
    %v2381 = vstv %s2380
    %v2382 = vmul.f32 %v646, %v2381
    %v2383 = vadd.f32 %v2379, %v2382
    %s2384 = sld [smem:[#allocation7 + $0xb8]]
    %v2385 = vstv %s2384
    %v2386 = vmul.f32 %v646, %v2385
    %2388 = vrot.lane.b32.xlu0 %v2386, 127
    %v2389 = vpop.permute.xlu0 %2388
    %v2391 = vadd.f32 %v2383, %v2389
    %s2392 = sld [smem:[#allocation7 + $0xb9]]
    %v2393 = vstv %s2392
    %v2394 = vmul.f32 %v646, %v2393
    %2396 = vrot.lane.b32.xlu0 %v2394, 126
    %v2397 = vpop.permute.xlu0 %2396
    %v2399 = vadd.f32 %v2391, %v2397
    %s2400 = sld [smem:[#allocation7 + $0xba]]
    %v2401 = vstv %s2400
    %v2402 = vmul.f32 %v652, %v2401
    %v2403 = vadd.f32 %v2399, %v2402
    %s2404 = sld [smem:[#allocation7 + $0xbb]]
    %v2405 = vstv %s2404
    %v2406 = vmul.f32 %v652, %v2405
    %2408 = vrot.lane.b32.xlu0 %v2406, 127
    %v2409 = vpop.permute.xlu0 %2408
    %v2411 = vadd.f32 %v2403, %v2409
    %s2412 = sld [smem:[#allocation7 + $0xbc]]
    %v2413 = vstv %s2412
    %v2414 = vmul.f32 %v652, %v2413
    %2416 = vrot.lane.b32.xlu0 %v2414, 126
    %v2417 = vpop.permute.xlu0 %2416
    %v2419 = vadd.f32 %v2411, %v2417
    %s2420 = sld [smem:[#allocation7 + $0xbd]]
    %v2421 = vstv %s2420
    %v2422 = vmul.f32 %v658, %v2421
    %v2423 = vadd.f32 %v2419, %v2422
    %s2424 = sld [smem:[#allocation7 + $0xbe]]
    %v2425 = vstv %s2424
    %v2426 = vmul.f32 %v658, %v2425
    %2428 = vrot.lane.b32.xlu0 %v2426, 127
    %v2429 = vpop.permute.xlu0 %2428
    %v2431 = vadd.f32 %v2423, %v2429
    %s2432 = sld [smem:[#allocation7 + $0xbf]]
    %v2433 = vstv %s2432
    %v2434 = vmul.f32 %v658, %v2433
    %2436 = vrot.lane.b32.xlu0 %v2434, 126
    %v2437 = vpop.permute.xlu0 %2436
    %v2439 = vadd.f32 %v2431, %v2437
    %s2440 = sld [smem:[#allocation15 + $0x7]]
    %s2441 = sld [smem:[#allocation16 + $0x7]]
    %v2442 = vsel %vm183, %v2439, 0.0
    %2443 = vadd.xlane.f32.xlu0 %v2442
    %v2444 = vpop.xlane.xlu0 %2443
    %v2445 = vrot.slane %v2444, 4
    %v2446 = vadd.f32 %v2444, %v2445
    %v2447 = vrot.slane %v2446, 2
    %v2448 = vadd.f32 %v2446, %v2447
    %v2449 = vrot.slane %v2448, 1
    %v2450 = vadd.f32 %v2448, %v2449
    %s2451 = vtos %v2450
    %s2452 = smul.f32 %s2451, 0.00390625
    %v2453 = vstv %s2452
    %v2454 = vsub.f32 %v2439, %v2453
    %v2455 = vmul.f32 %v2454, %v2454
    %v2456 = vsel %vm183, %v2455, 0.0
    %2457 = vadd.xlane.f32.xlu0 %v2456
    %v2458 = vpop.xlane.xlu0 %2457
    %v2459 = vrot.slane %v2458, 4
    %v2460 = vadd.f32 %v2458, %v2459
    %v2461 = vrot.slane %v2460, 2
    %v2462 = vadd.f32 %v2460, %v2461
    %v2463 = vrot.slane %v2462, 1
    %v2464 = vadd.f32 %v2462, %v2463
    %s2465 = vtos %v2464
    %s2466 = smul.f32 %s2465, 0.00390625
    %s2467 = sadd.f32 %s2466, 1e-05
    %v2468 = vstv %s2467
    %v2469 = vrsqrt.pop %v2468
    %s2470 = vtos %v2469
    %s2471 = smul.f32 %s2440, %s2470
    %v2472 = vstv %s2471
    %v2473 = vmul.f32 %v2454, %v2472
    %v2474 = vstv %s2441
    %v2475 = vadd.f32 %v2473, %v2474
    %v2476 = vmax.f32 %v2475, 0.0
    %s2477 = sld [smem:[#allocation10 + $0x7]]
    %v2478 = vstv %s2477
    %v2479 = vmul.f32 %v2478, %v153
    %v2480 = vadd.f32 %v2476, %v2479
    %v2481 = vmul.f32 %v862, %v2480
    %v2482 = vadd.f32 %v864, %v2481
    %v2483 = vmul.f32 %v2480, %v2482
    %v2484 = vadd.f32 %v867, %v2483
    %v2485 = vmul.f32 %v2480, %v2484
    %2487 = vrot.lane.b32.xlu0 %v2485, 1
    %v2488 = vpop.permute.xlu0 %2487
    %v2490 = vsel %vm158, 0.0, %v2488
    %v2491 = vsel %vm160, %v2490, 0.0
    %s2492 = sld [smem:[#allocation9 + $0x15]]
    %v2493 = vstv %s2492
    %v2494 = vmul.f32 %v2491, %v2493
    %v2495 = vadd.f32 %v2280, %v2494
    %s2496 = sld [smem:[#allocation9 + $0x16]]
    %v2497 = vstv %s2496
    %v2498 = vmul.f32 %v2491, %v2497
    %2500 = vrot.lane.b32.xlu0 %v2498, 127
    %v2501 = vpop.permute.xlu0 %2500
    %v2503 = vadd.f32 %v2495, %v2501
    %s2504 = sld [smem:[#allocation9 + $0x17]]
    %v2505 = vstv %s2504
    %v2506 = vmul.f32 %v2491, %v2505
    %2508 = vrot.lane.b32.xlu0 %v2506, 126
    %v2509 = vpop.permute.xlu0 %2508
    %v2511 = vadd.f32 %v2503, %v2509
    %2512 = vst.msk [vmem:[#allocation19] sm:$0xf] %vm183, %v2511
    // Predicated region
    $region82: #{tpu_custom_call.1} parent=1 // pred_check
      _
    $region83: #{tpu_custom_call.1} parent=1 // pred_check_branch
      %2514 = sbr.rel (0) target = $region85
    $region84: #{tpu_custom_call.1} parent=1 // pred_region
      %s2516 = ssub.s32 64, 64
      %2517 = vsyncadd [#allocation4], %s2516
      %s2519 = sshll.u32 [#allocation19], 4
      %s2520 = int_to_ptr.vmem [resolvable:$true] %s2519
      %2522 = dma.vmem_to_hbm [thread:$0]  %s2520, 64, %s10, [#allocation4]
    $region85: #{tpu_custom_call.1} parent=1 // pred_fallthru
      _
    // Predicated region
    $region86: #{tpu_custom_call.1} parent=1 // pred_check
      _
    $region87: #{tpu_custom_call.1} parent=1 // pred_check_branch
      %2524 = sbr.rel (0) target = $region89
    $region88: #{tpu_custom_call.1} parent=1 // pred_region
      %2525 = dma.done [#allocation4], 64
    $region89: #{tpu_custom_call.1} parent=1 // pred_fallthru
      _
    %2526 = vsyncpa [#allocation3], 1
    %2527 = vsyncpa [#allocation4], 1
    %2528 = vsyncpa [#allocation5], 1
    %2529 = vsyncpa [#allocation8], 1
    %2530 = vsyncpa [#allocation11], 1
    %2531 = vsyncpa [#allocation14], 1
    %2532 = vsyncpa [#allocation17], 1

</llo_original>
